<compile_context>
chip_gen: v6e
topology: v6e:2x2x1
jax: 0.10.0
libtpu: 0.0.40
codegen_flags: <defaults>
</compile_context>

<pallas_src>
import jax
import jax.numpy as jnp
from jax import lax
from jax.experimental import pallas as pl
from jax.experimental.pallas import tpu as pltpu

# ---------------- synthetic sizes (small, consistent with the module) -------
B, L = 2, 8                      # batch, max_len_of_batch
WORD_VOCAB = 32                  # stand-in wordpiece vocab for the encoder
BERT_DIM = 32                    # args.bert_dim
TRANS_DIM = 32                   # args.bert_trans_dim
POS_VOCAB, POS_DIM = 8, 16       # len(vocabs['pos']), args.pos_dim
KNOW_VOCAB, KNOW_DIM = 8, 16     # len(vocabs['know']), args.knowledge_dim
GAT_HEADS, GAT_HID = 2, 8        # args.gat_heads, args.gat_hidden
GAT_ALPHA = 0.2                  # args.gat_alpha (LeakyReLU slope)
BIAFF_HID = 64                   # args.biaffine_hidden_dim
N_REL = 4                        # len(vocabs['rel'])
BIAFF_IN = TRANS_DIM + POS_DIM + KNOW_DIM   # biaff_input_size = 64
O_TOT = 1 + N_REL                # merged: head scorer at o=0, relations at o=1..


def _leaky_relu(x, alpha):
    return jnp.where(x > 0, x, alpha * x)


def _elu(x):
    return jnp.where(x > 0, x, jnp.exp(x) - 1.0)


# ---------------- fused forward kernel ---------------------------------------
def _fused_parser_kernel(
        word_ids_ref, pos_ids_ref, know_ids_ref,            # per-batch int32 [1,L,1]
        word_emb_ref, wt_ref, bt_ref,                        # encoder stand-in + trans linear
        pos_emb_ref, know_emb_ref, adj_ref,                  # embedding tables + GAT adjacency
        gwh_ref, ga1_ref, ga2_ref, gwo_ref, gao_ref,         # GAT params (packed)
        w1_ref, b1_ref, w2_ref, b2_ref,                      # merged deep-biaffine linears
        uflat_ref, ucol_ref, urow_ref, uconst_ref,           # merged bilinear (analytic split)
        o_ref):                                              # out: [1, O_TOT, L, L]
    f32 = jnp.float32
    adj = adj_ref[...]

    def onehot_gather(idx_ref, table, vocab):
        # Row gather as a single MXU matmul (tables are tiny and VMEM resident).
        ids = idx_ref[0]                                                 # [L, 1] int32
        oh = (lax.broadcasted_iota(jnp.int32, (L, vocab), 1) == ids).astype(f32)
        return jnp.dot(oh, table, preferred_element_type=f32)            # [L, D]

    def masked_softmax(e):
        e = jnp.where(adj > 0, e, -9e15)
        m = jnp.max(e, axis=1, keepdims=True)
        p = jnp.exp(e - m)
        return p * pl.reciprocal(jnp.sum(p, axis=1, keepdims=True), approx=True)

    # ---- GAT over the knowledge-label embedding table -----------------------
    # (batch independent; recomputed per grid step — negligible at N=8)
    know_tab = know_emb_ref[...]                                          # [KV, KD]
    wh_all = jnp.dot(know_tab, gwh_ref[...], preferred_element_type=f32)  # [KV, heads*nhid]
    f1_all = jnp.dot(wh_all, ga1_ref[...], preferred_element_type=f32)    # [KV, heads]
    f2t_all = lax.dot_general(ga2_ref[...], wh_all, (((0,), (1,)), ((), ())),
                              preferred_element_type=f32)                 # [heads, KV]

    head_outs = []
    for h in range(GAT_HEADS):                                            # concat=True heads
        wh_h = wh_all[:, h * GAT_HID:(h + 1) * GAT_HID]                   # [KV, nhid]
        e = _leaky_relu(f1_all[:, h:h + 1] + f2t_all[h:h + 1, :], GAT_ALPHA)
        att = masked_softmax(e)
        head_outs.append(_elu(jnp.dot(att, wh_h, preferred_element_type=f32)))
    hcat = jnp.concatenate(head_outs, axis=1)                             # [KV, heads*nhid]

    # output attention layer (concat=False) + outer ELU (as in pyGAT GAT.forward)
    who = jnp.dot(hcat, gwo_ref[...], preferred_element_type=f32)         # [KV, KD]
    ao = gao_ref[...]                                                     # [KD, 2]
    fo1 = jnp.dot(who, ao[:, 0:1], preferred_element_type=f32)            # [KV, 1]
    fo2 = lax.dot_general(ao[:, 1:2], who, (((0,), (1,)), ((), ())),
                          preferred_element_type=f32)                     # [1, KV]
    e = _leaky_relu(fo1 + fo2, GAT_ALPHA)
    att = masked_softmax(e)
    know_map = _elu(jnp.dot(att, who, preferred_element_type=f32))        # [KV, KD]

    # ---- per-token features --------------------------------------------------
    word_e = onehot_gather(word_ids_ref, word_emb_ref[...], WORD_VOCAB)   # [L, BERT_DIM]
    trans = jnp.dot(word_e, wt_ref[...], preferred_element_type=f32) + bt_ref[...]
    pos_e = onehot_gather(pos_ids_ref, pos_emb_ref[...], POS_VOCAB)       # [L, POS_DIM]
    know_e = onehot_gather(know_ids_ref, know_map, KNOW_VOCAB)            # [L, KNOW_DIM]
    x = jnp.concatenate([trans, pos_e, know_e], axis=1)                   # [L, BIAFF_IN]

    # ---- merged deep-biaffine scorers (head: o=0, relation: o=1..N_REL) -----
    h1 = jnp.maximum(jnp.dot(x, w1_ref[...], preferred_element_type=f32) + b1_ref[...], 0.0)
    h2 = jnp.maximum(jnp.dot(x, w2_ref[...], preferred_element_type=f32) + b2_ref[...], 0.0)
    # bilinear: [h1;1] U [h2;1]^T == h1 Ucore h2^T + h1.ucol + urow.h2 + (corner+bias)
    t_all = jnp.dot(h1, uflat_ref[...], preferred_element_type=f32)       # [L, O*H]
    c_all = jnp.dot(h1, ucol_ref[...], preferred_element_type=f32) + uconst_ref[...]  # [L, O]
    r_all = lax.dot_general(urow_ref[...], h2, (((1,), (1,)), ((), ())),
                            preferred_element_type=f32)                   # [O, L]

    for o in range(O_TOT):                                                # static unroll
        h2_o = h2[:, :BIAFF_HID] if o == 0 else h2[:, BIAFF_HID:]
        t_o = t_all[:, o * BIAFF_HID:(o + 1) * BIAFF_HID]
        s = lax.dot_general(t_o, h2_o, (((1,), (1,)), ((), ())),
                            preferred_element_type=f32)                   # [L, L]
        o_ref[0, o] = s + c_all[:, o:o + 1] + r_all[o:o + 1, :]


def fused_parser_pallas(q, word_ids, pos_ids, know_ids, adj):
    Bb, Ll = word_ids.shape
    wi = word_ids.reshape(Bb, Ll, 1).astype(jnp.int32)
    pi = pos_ids.reshape(Bb, Ll, 1).astype(jnp.int32)
    ki = know_ids.reshape(Bb, Ll, 1).astype(jnp.int32)

    def full(a):
        return pl.BlockSpec(a.shape, lambda b, _n=a.ndim: (0,) * _n)

    idx_spec = pl.BlockSpec((1, Ll, 1), lambda b: (b, 0, 0))
    shared = [q["word_emb"], q["wt"], q["bt"], q["pos_emb"], q["know_emb"], adj,
              q["gat_wh"], q["gat_a1"], q["gat_a2"], q["gat_wo"], q["gat_ao"],
              q["w1"], q["b1"], q["w2"], q["b2"],
              q["u_flat"], q["u_col"], q["u_row"], q["u_const"]]

    return pl.pallas_call(
        _fused_parser_kernel,
        out_shape=jax.ShapeDtypeStruct((Bb, O_TOT, Ll, Ll), jnp.float32),
        grid=(Bb,),
        in_specs=[idx_spec, idx_spec, idx_spec] + [full(a) for a in shared],
        out_specs=pl.BlockSpec((1, O_TOT, Ll, Ll), lambda b: (b, 0, 0, 0)),
        compiler_params=pltpu.CompilerParams(dimension_semantics=("parallel",)),
    )(wi, pi, ki, *shared)


# ---------------- parameters (deterministic) ---------------------------------
def init_params(key):
    ks = jax.random.split(key, 10)

    def nrm(k, shape, scale=0.1):
        return (scale * jax.random.normal(k, shape)).astype(jnp.float32)

    p = {}
    p["word_emb"] = nrm(ks[0], (WORD_VOCAB, BERT_DIM))          # encoder stand-in
    p["wt"] = nrm(ks[1], (BERT_DIM, TRANS_DIM))                 # trans_bert_dim_layer
    p["bt"] = nrm(ks[2], (TRANS_DIM,))
    p["pos_emb"] = nrm(ks[3], (POS_VOCAB, POS_DIM)).at[0].set(0.0)     # padding_idx=0
    p["know_emb"] = nrm(ks[4], (KNOW_VOCAB, KNOW_DIM)).at[0].set(0.0)  # padding_idx=0
    p["gat_wh"] = nrm(ks[5], (GAT_HEADS, KNOW_DIM, GAT_HID))    # per-head W
    p["gat_ah"] = nrm(ks[6], (GAT_HEADS, GAT_HID, 2))           # per-head a (split)
    p["gat_wo"] = nrm(ks[7], (GAT_HEADS * GAT_HID, KNOW_DIM))   # out_att W
    p["gat_ao"] = nrm(ks[8], (KNOW_DIM, 2))                     # out_att a

    def biaff_params(keys, out):
        k1, k2, k3, k4, k5, k6 = keys
        return dict(
            w1=nrm(k1, (BIAFF_IN, BIAFF_HID)), b1=nrm(k2, (BIAFF_HID,)),
            w2=nrm(k3, (BIAFF_IN, BIAFF_HID)), b2=nrm(k4, (BIAFF_HID,)),
            u=nrm(k5, (out, BIAFF_HID + 1, BIAFF_HID + 1)),   # (zero-init in stanza; random here)
            bias=nrm(k6, (out,)))

    sub = jax.random.split(ks[9], 12)
    p["head"] = biaff_params(sub[:6], 1)        # head_biaffine (output size 1)
    p["rel"] = biaff_params(sub[6:12], N_REL)   # relaton_biaffine (output size |rel|)
    return p


def pack_params(p):
    """One-time host-side repack into kernel-friendly (tile-aligned, merged) layouts."""
    Hh, O = BIAFF_HID, O_TOT
    q = dict(word_emb=p["word_emb"], wt=p["wt"], bt=p["bt"].reshape(1, TRANS_DIM),
             pos_emb=p["pos_emb"], know_emb=p["know_emb"])

    # GAT: flatten per-head W -> [F, heads*nhid]; block-diagonal a1/a2 vectors.
    q["gat_wh"] = jnp.transpose(p["gat_wh"], (1, 0, 2)).reshape(KNOW_DIM, GAT_HEADS * GAT_HID)
    a1 = jnp.zeros((GAT_HEADS * GAT_HID, GAT_HEADS), jnp.float32)
    a2 = jnp.zeros((GAT_HEADS * GAT_HID, GAT_HEADS), jnp.float32)
    for h in range(GAT_HEADS):
        a1 = a1.at[h * GAT_HID:(h + 1) * GAT_HID, h].set(p["gat_ah"][h, :, 0])
        a2 = a2.at[h * GAT_HID:(h + 1) * GAT_HID, h].set(p["gat_ah"][h, :, 1])
    q["gat_a1"], q["gat_a2"] = a1, a2
    q["gat_wo"], q["gat_ao"] = p["gat_wo"], p["gat_ao"]

    # merged deep-biaffine: head occupies hidden lanes [0:H], relation [H:2H].
    q["w1"] = jnp.concatenate([p["head"]["w1"], p["rel"]["w1"]], axis=1)
    q["b1"] = jnp.concatenate([p["head"]["b1"], p["rel"]["b1"]]).reshape(1, 2 * Hh)
    q["w2"] = jnp.concatenate([p["head"]["w2"], p["rel"]["w2"]], axis=1)
    q["b2"] = jnp.concatenate([p["head"]["b2"], p["rel"]["b2"]]).reshape(1, 2 * Hh)

    def split_u(u):   # u: [O, H+1, H+1] -> core, boundary-col, boundary-row, corner
        return u[:, :Hh, :Hh], u[:, :Hh, Hh], u[:, Hh, :Hh], u[:, Hh, Hh]

    hcore, hcol, hrow, hcorn = split_u(p["head"]["u"])
    rcore, rcol, rrow, rcorn = split_u(p["rel"]["u"])

    uflat = jnp.zeros((2 * Hh, O * Hh), jnp.float32)
    uflat = uflat.at[:Hh, :Hh].set(hcore[0])
    for o in range(N_REL):
        uflat = uflat.at[Hh:, (1 + o) * Hh:(2 + o) * Hh].set(rcore[o])
    q["u_flat"] = uflat

    ucol = jnp.zeros((2 * Hh, O), jnp.float32)
    q["u_col"] = ucol.at[:Hh, 0].set(hcol[0]).at[Hh:, 1:].set(rcol.T)

    urow = jnp.zeros((O, 2 * Hh), jnp.float32)
    q["u_row"] = urow.at[0, :Hh].set(hrow[0]).at[1:, Hh:].set(rrow)

    q["u_const"] = jnp.concatenate([hcorn + p["head"]["bias"],
                                    rcorn + p["rel"]["bias"]]).reshape(1, O)
    return q


# ---------------- forward (single fused Pallas kernel + tiny glue) -----------
@jax.jit
def _forward_jit(q, input_ids, pos_ids, knowledge_feature, relation_matrix):
    scores = fused_parser_pallas(q, input_ids, pos_ids, knowledge_feature,
                                 relation_matrix)                 # [B, 1+N_REL, L, L]
    head_scores = scores[:, 0]                                    # [B, L, L]
    label_scores = jnp.transpose(scores[:, 1:], (0, 2, 3, 1))     # [B, L, L, N_REL]
    return head_scores, label_scores


def parser_forward(q, input_ids, pos_ids, knowledge_feature, relation_matrix):
    # TODO(synk): pretrained-BERT Parser_encoder replaced by a deterministic
    # embedding-lookup stand-in; max_len_of_batch == full sequence length.
    # TODO(synk): args.use_transformer=False path chosen; nn.TransformerEncoder
    # is not implemented here.
    max_len = input_ids.shape[1]
    head, label = _forward_jit(q, input_ids, pos_ids[:, :max_len],
                               knowledge_feature[:, :max_len], relation_matrix)
    return head, label, max_len


# ---------------- pure-JAX reference (for verification) ----------------------
def ref_forward(p, input_ids, pos_ids, know_ids, adj):
    emb = p["word_emb"][input_ids]
    trans = emb @ p["wt"] + p["bt"]
    pos_e = p["pos_emb"][pos_ids]

    def gat_layer(h, W, a):
        Wh = h @ W
        f = Wh @ a
        e = f[:, 0:1] + f[:, 1:2].T
        e = jnp.where(e > 0, e, GAT_ALPHA * e)
        e = jnp.where(adj > 0, e, -9e15)
        return jax.nn.softmax(e, axis=1) @ Wh

    heads = [jax.nn.elu(gat_layer(p["know_emb"], p["gat_wh"][k], p["gat_ah"][k]))
             for k in range(GAT_HEADS)]
    h = jnp.concatenate(heads, axis=1)
    know_map = jax.nn.elu(gat_layer(h, p["gat_wo"], p["gat_ao"]))
    know_e = know_map[know_ids]
    x = jnp.concatenate([trans, pos_e, know_e], axis=2)

    def biaff(pp):
        h1 = jax.nn.relu(x @ pp["w1"] + pp["b1"])
        h2 = jax.nn.relu(x @ pp["w2"] + pp["b2"])
        ones = jnp.ones(h1.shape[:-1] + (1,), jnp.float32)
        h1a = jnp.concatenate([h1, ones], axis=-1)
        h2a = jnp.concatenate([h2, ones], axis=-1)
        return jnp.einsum("bia,oac,bjc->bijo", h1a, pp["u"], h2a) + pp["bias"]

    return biaff(p["head"])[..., 0], biaff(p["rel"])


if __name__ == "__main__":
    key = jax.random.PRNGKey(0)
    kp, k1, k2, k3 = jax.random.split(key, 4)
    params = init_params(kp)
    packed = pack_params(params)

    input_ids = jax.random.randint(k1, (B, L), 0, WORD_VOCAB)
    pos_ids = jax.random.randint(k2, (B, L), 0, POS_VOCAB)
    knowledge_feature = jax.random.randint(k3, (B, L), 0, KNOW_VOCAB)
    # deterministic relation_matrix (adjacency over knowledge labels): ring + self loops
    idx = jnp.arange(KNOW_VOCAB)
    relation_matrix = (
        (idx[:, None] == idx[None, :])
        | ((idx[:, None] - idx[None, :]) % KNOW_VOCAB == 1)
        | ((idx[None, :] - idx[:, None]) % KNOW_VOCAB == 1)
    ).astype(jnp.float32)

    head_scores, label_scores, max_len = parser_forward(
        packed, input_ids, pos_ids, knowledge_feature, relation_matrix)
    jax.block_until_ready((head_scores, label_scores))

    assert head_scores.shape == (B, L, L)
    assert label_scores.shape == (B, L, L, N_REL)
    assert max_len == L

    ref_head, ref_label = ref_forward(params, input_ids, pos_ids,
                                      knowledge_feature, relation_matrix)
    assert jnp.allclose(head_scores, ref_head, atol=2e-3, rtol=2e-3), (
        float(jnp.max(jnp.abs(head_scores - ref_head))))
    assert jnp.allclose(label_scores, ref_label, atol=2e-3, rtol=2e-3), (
        float(jnp.max(jnp.abs(label_scores - ref_label))))

    print("KERNEL_OK")
</pallas_src>

<mosaic_0001>
module attributes {stable_mosaic.version = 11 : i64} {
  func.func @_fused_parser_kernel(%arg0: i32, %arg1: memref<1x8x1xi32, #tpu.memory_space<vmem>>, %arg2: memref<1x8x1xi32, #tpu.memory_space<vmem>>, %arg3: memref<1x8x1xi32, #tpu.memory_space<vmem>>, %arg4: memref<32x32xf32, #tpu.memory_space<vmem>>, %arg5: memref<32x32xf32, #tpu.memory_space<vmem>>, %arg6: memref<1x32xf32, #tpu.memory_space<vmem>>, %arg7: memref<8x16xf32, #tpu.memory_space<vmem>>, %arg8: memref<8x16xf32, #tpu.memory_space<vmem>>, %arg9: memref<8x8xf32, #tpu.memory_space<vmem>>, %arg10: memref<16x16xf32, #tpu.memory_space<vmem>>, %arg11: memref<16x2xf32, #tpu.memory_space<vmem>>, %arg12: memref<16x2xf32, #tpu.memory_space<vmem>>, %arg13: memref<16x16xf32, #tpu.memory_space<vmem>>, %arg14: memref<16x2xf32, #tpu.memory_space<vmem>>, %arg15: memref<64x128xf32, #tpu.memory_space<vmem>>, %arg16: memref<1x128xf32, #tpu.memory_space<vmem>>, %arg17: memref<64x128xf32, #tpu.memory_space<vmem>>, %arg18: memref<1x128xf32, #tpu.memory_space<vmem>>, %arg19: memref<128x320xf32, #tpu.memory_space<vmem>>, %arg20: memref<128x5xf32, #tpu.memory_space<vmem>>, %arg21: memref<5x128xf32, #tpu.memory_space<vmem>>, %arg22: memref<1x5xf32, #tpu.memory_space<vmem>>, %arg23: memref<1x5x8x8xf32, #tpu.memory_space<vmem>>) attributes {dimension_semantics = [#tpu.dimension_semantics<parallel>], iteration_bounds = array<i64: 2>, scalar_prefetch = 0 : i64, scratch_operands = 0 : i64, tpu.core_type = #tpu.core_type<tc>, window_params = [{transform_indices = @transform_0, window_bounds = array<i64: 1, 8, 1>}, {transform_indices = @transform_1, window_bounds = array<i64: 1, 8, 1>}, {transform_indices = @transform_2, window_bounds = array<i64: 1, 8, 1>}, {pipeline_mode = #tpu.pipeline_mode<synchronous>, transform_indices = @transform_3, window_bounds = array<i64: 32, 32>}, {pipeline_mode = #tpu.pipeline_mode<synchronous>, transform_indices = @transform_4, window_bounds = array<i64: 32, 32>}, {pipeline_mode = #tpu.pipeline_mode<synchronous>, transform_indices = @transform_5, window_bounds = array<i64: 1, 32>}, {pipeline_mode = #tpu.pipeline_mode<synchronous>, transform_indices = @transform_6, window_bounds = array<i64: 8, 16>}, {pipeline_mode = #tpu.pipeline_mode<synchronous>, transform_indices = @transform_7, window_bounds = array<i64: 8, 16>}, {pipeline_mode = #tpu.pipeline_mode<synchronous>, transform_indices = @transform_8, window_bounds = array<i64: 8, 8>}, {pipeline_mode = #tpu.pipeline_mode<synchronous>, transform_indices = @transform_9, window_bounds = array<i64: 16, 16>}, {pipeline_mode = #tpu.pipeline_mode<synchronous>, transform_indices = @transform_10, window_bounds = array<i64: 16, 2>}, {pipeline_mode = #tpu.pipeline_mode<synchronous>, transform_indices = @transform_11, window_bounds = array<i64: 16, 2>}, {pipeline_mode = #tpu.pipeline_mode<synchronous>, transform_indices = @transform_12, window_bounds = array<i64: 16, 16>}, {pipeline_mode = #tpu.pipeline_mode<synchronous>, transform_indices = @transform_13, window_bounds = array<i64: 16, 2>}, {pipeline_mode = #tpu.pipeline_mode<synchronous>, transform_indices = @transform_14, window_bounds = array<i64: 64, 128>}, {pipeline_mode = #tpu.pipeline_mode<synchronous>, transform_indices = @transform_15, window_bounds = array<i64: 1, 128>}, {pipeline_mode = #tpu.pipeline_mode<synchronous>, transform_indices = @transform_16, window_bounds = array<i64: 64, 128>}, {pipeline_mode = #tpu.pipeline_mode<synchronous>, transform_indices = @transform_17, window_bounds = array<i64: 1, 128>}, {pipeline_mode = #tpu.pipeline_mode<synchronous>, transform_indices = @transform_18, window_bounds = array<i64: 128, 320>}, {pipeline_mode = #tpu.pipeline_mode<synchronous>, transform_indices = @transform_19, window_bounds = array<i64: 128, 5>}, {pipeline_mode = #tpu.pipeline_mode<synchronous>, transform_indices = @transform_20, window_bounds = array<i64: 5, 128>}, {pipeline_mode = #tpu.pipeline_mode<synchronous>, transform_indices = @transform_21, window_bounds = array<i64: 1, 5>}, {transform_indices = @transform_22, window_bounds = array<i64: 1, 5, 8, 8>}]} {
    %c0 = arith.constant 0 : index
    %c0_0 = arith.constant 0 : index
    %0 = vector.load %arg9[%c0, %c0_0] : memref<8x8xf32, #tpu.memory_space<vmem>>, vector<8x8xf32>
    %c0_1 = arith.constant 0 : index
    %c0_2 = arith.constant 0 : index
    %1 = vector.load %arg8[%c0_1, %c0_2] : memref<8x16xf32, #tpu.memory_space<vmem>>, vector<8x16xf32>
    %c0_3 = arith.constant 0 : index
    %c0_4 = arith.constant 0 : index
    %2 = vector.load %arg10[%c0_3, %c0_4] : memref<16x16xf32, #tpu.memory_space<vmem>>, vector<16x16xf32>
    %cst = arith.constant dense<0.000000e+00> : vector<8x16xf32>
    %3 = tpu.matmul %1, %2, %cst {dimension_numbers = #tpu.dot_dimension_numbers<[1], [0], [0], [1], [0, 0, 1, 1], [], []>} : vector<8x16xf32>, vector<16x16xf32>, vector<8x16xf32> -> vector<8x16xf32>
    %c0_5 = arith.constant 0 : index
    %c0_6 = arith.constant 0 : index
    %4 = vector.load %arg11[%c0_5, %c0_6] : memref<16x2xf32, #tpu.memory_space<vmem>>, vector<16x2xf32>
    %cst_7 = arith.constant dense<0.000000e+00> : vector<8x2xf32>
    %5 = tpu.matmul %3, %4, %cst_7 {dimension_numbers = #tpu.dot_dimension_numbers<[1], [0], [0], [1], [0, 0, 1, 1], [], []>} : vector<8x16xf32>, vector<16x2xf32>, vector<8x2xf32> -> vector<8x2xf32>
    %c0_8 = arith.constant 0 : index
    %c0_9 = arith.constant 0 : index
    %6 = vector.load %arg12[%c0_8, %c0_9] : memref<16x2xf32, #tpu.memory_space<vmem>>, vector<16x2xf32>
    %cst_10 = arith.constant dense<0.000000e+00> : vector<2x8xf32>
    %7 = tpu.matmul %6, %3, %cst_10 {dimension_numbers = #tpu.dot_dimension_numbers<[0], [1], [1], [0], [0, 1, 1, 0], [], []>} : vector<16x2xf32>, vector<8x16xf32>, vector<2x8xf32> -> vector<2x8xf32>
    %8 = vector.extract_strided_slice %3 {offsets = [0, 0], sizes = [8, 8], strides = [1, 1]} : vector<8x16xf32> to vector<8x8xf32>
    %9 = vector.extract_strided_slice %5 {offsets = [0, 0], sizes = [8, 1], strides = [1, 1]} : vector<8x2xf32> to vector<8x1xf32>
    %10 = vector.extract_strided_slice %7 {offsets = [0, 0], sizes = [1, 8], strides = [1, 1]} : vector<2x8xf32> to vector<1x8xf32>
    %11 = vector.broadcast %9 : vector<8x1xf32> to vector<8x8xf32>
    %12 = vector.broadcast %10 : vector<1x8xf32> to vector<8x8xf32>
    %13 = arith.addf %11, %12 : vector<8x8xf32>
    %cst_11 = arith.constant 0.000000e+00 : f32
    %14 = vector.broadcast %cst_11 : f32 to vector<8x8xf32>
    %15 = arith.cmpf ogt, %13, %14 : vector<8x8xf32>
    %cst_12 = arith.constant 2.000000e-01 : f32
    %16 = vector.broadcast %cst_12 : f32 to vector<8x8xf32>
    %17 = arith.mulf %16, %13 : vector<8x8xf32>
    %18 = arith.select %15, %13, %17 : vector<8x8xi1>, vector<8x8xf32>
    %cst_13 = arith.constant 0.000000e+00 : f32
    %19 = vector.broadcast %cst_13 : f32 to vector<8x8xf32>
    %20 = arith.cmpf ogt, %0, %19 : vector<8x8xf32>
    %cst_14 = arith.constant -9.000000e+15 : f32
    %21 = vector.broadcast %cst_14 : f32 to vector<8x8xf32>
    %22 = arith.select %20, %18, %21 : vector<8x8xi1>, vector<8x8xf32>
    %cst_15 = arith.constant dense<0xFF800000> : vector<8xf32>
    %23 = vector.multi_reduction <maximumf>, %22, %cst_15 [1] : vector<8x8xf32> to vector<8xf32>
    %24 = vector.shape_cast %23 : vector<8xf32> to vector<8x1xf32>
    %25 = vector.broadcast %24 : vector<8x1xf32> to vector<8x8xf32>
    %26 = arith.subf %22, %25 : vector<8x8xf32>
    %27 = math.exp %26 : vector<8x8xf32>
    %cst_16 = arith.constant dense<0.000000e+00> : vector<8xf32>
    %28 = vector.multi_reduction <add>, %27, %cst_16 [1] : vector<8x8xf32> to vector<8xf32>
    %29 = vector.shape_cast %28 : vector<8xf32> to vector<8x1xf32>
    %30 = tpu.reciprocal %29 {approx = true} : vector<8x1xf32> -> vector<8x1xf32>
    %31 = vector.broadcast %30 : vector<8x1xf32> to vector<8x8xf32>
    %32 = arith.mulf %27, %31 : vector<8x8xf32>
    %cst_17 = arith.constant dense<0.000000e+00> : vector<8x8xf32>
    %33 = tpu.matmul %32, %8, %cst_17 {dimension_numbers = #tpu.dot_dimension_numbers<[1], [0], [0], [1], [0, 0, 1, 1], [], []>} : vector<8x8xf32>, vector<8x8xf32>, vector<8x8xf32> -> vector<8x8xf32>
    %cst_18 = arith.constant 0.000000e+00 : f32
    %34 = vector.broadcast %cst_18 : f32 to vector<8x8xf32>
    %35 = arith.cmpf ogt, %33, %34 : vector<8x8xf32>
    %36 = math.exp %33 : vector<8x8xf32>
    %cst_19 = arith.constant 1.000000e+00 : f32
    %37 = vector.broadcast %cst_19 : f32 to vector<8x8xf32>
    %38 = arith.subf %36, %37 : vector<8x8xf32>
    %39 = arith.select %35, %33, %38 : vector<8x8xi1>, vector<8x8xf32>
    %40 = vector.extract_strided_slice %3 {offsets = [0, 8], sizes = [8, 8], strides = [1, 1]} : vector<8x16xf32> to vector<8x8xf32>
    %41 = vector.extract_strided_slice %5 {offsets = [0, 1], sizes = [8, 1], strides = [1, 1]} : vector<8x2xf32> to vector<8x1xf32>
    %42 = vector.extract_strided_slice %7 {offsets = [1, 0], sizes = [1, 8], strides = [1, 1]} : vector<2x8xf32> to vector<1x8xf32>
    %43 = vector.broadcast %41 : vector<8x1xf32> to vector<8x8xf32>
    %44 = vector.broadcast %42 : vector<1x8xf32> to vector<8x8xf32>
    %45 = arith.addf %43, %44 : vector<8x8xf32>
    %cst_20 = arith.constant 0.000000e+00 : f32
    %46 = vector.broadcast %cst_20 : f32 to vector<8x8xf32>
    %47 = arith.cmpf ogt, %45, %46 : vector<8x8xf32>
    %cst_21 = arith.constant 2.000000e-01 : f32
    %48 = vector.broadcast %cst_21 : f32 to vector<8x8xf32>
    %49 = arith.mulf %48, %45 : vector<8x8xf32>
    %50 = arith.select %47, %45, %49 : vector<8x8xi1>, vector<8x8xf32>
    %cst_22 = arith.constant 0.000000e+00 : f32
    %51 = vector.broadcast %cst_22 : f32 to vector<8x8xf32>
    %52 = arith.cmpf ogt, %0, %51 : vector<8x8xf32>
    %cst_23 = arith.constant -9.000000e+15 : f32
    %53 = vector.broadcast %cst_23 : f32 to vector<8x8xf32>
    %54 = arith.select %52, %50, %53 : vector<8x8xi1>, vector<8x8xf32>
    %cst_24 = arith.constant dense<0xFF800000> : vector<8xf32>
    %55 = vector.multi_reduction <maximumf>, %54, %cst_24 [1] : vector<8x8xf32> to vector<8xf32>
    %56 = vector.shape_cast %55 : vector<8xf32> to vector<8x1xf32>
    %57 = vector.broadcast %56 : vector<8x1xf32> to vector<8x8xf32>
    %58 = arith.subf %54, %57 : vector<8x8xf32>
    %59 = math.exp %58 : vector<8x8xf32>
    %cst_25 = arith.constant dense<0.000000e+00> : vector<8xf32>
    %60 = vector.multi_reduction <add>, %59, %cst_25 [1] : vector<8x8xf32> to vector<8xf32>
    %61 = vector.shape_cast %60 : vector<8xf32> to vector<8x1xf32>
    %62 = tpu.reciprocal %61 {approx = true} : vector<8x1xf32> -> vector<8x1xf32>
    %63 = vector.broadcast %62 : vector<8x1xf32> to vector<8x8xf32>
    %64 = arith.mulf %59, %63 : vector<8x8xf32>
    %cst_26 = arith.constant dense<0.000000e+00> : vector<8x8xf32>
    %65 = tpu.matmul %64, %40, %cst_26 {dimension_numbers = #tpu.dot_dimension_numbers<[1], [0], [0], [1], [0, 0, 1, 1], [], []>} : vector<8x8xf32>, vector<8x8xf32>, vector<8x8xf32> -> vector<8x8xf32>
    %cst_27 = arith.constant 0.000000e+00 : f32
    %66 = vector.broadcast %cst_27 : f32 to vector<8x8xf32>
    %67 = arith.cmpf ogt, %65, %66 : vector<8x8xf32>
    %68 = math.exp %65 : vector<8x8xf32>
    %cst_28 = arith.constant 1.000000e+00 : f32
    %69 = vector.broadcast %cst_28 : f32 to vector<8x8xf32>
    %70 = arith.subf %68, %69 : vector<8x8xf32>
    %71 = arith.select %67, %65, %70 : vector<8x8xi1>, vector<8x8xf32>
    %72 = tpu.concatenate %39, %71 in 1 : vector<8x8xf32>, vector<8x8xf32> -> vector<8x16xf32>
    %c0_29 = arith.constant 0 : index
    %c0_30 = arith.constant 0 : index
    %73 = vector.load %arg13[%c0_29, %c0_30] : memref<16x16xf32, #tpu.memory_space<vmem>>, vector<16x16xf32>
    %cst_31 = arith.constant dense<0.000000e+00> : vector<8x16xf32>
    %74 = tpu.matmul %72, %73, %cst_31 {dimension_numbers = #tpu.dot_dimension_numbers<[1], [0], [0], [1], [0, 0, 1, 1], [], []>} : vector<8x16xf32>, vector<16x16xf32>, vector<8x16xf32> -> vector<8x16xf32>
    %c0_32 = arith.constant 0 : index
    %c0_33 = arith.constant 0 : index
    %75 = vector.load %arg14[%c0_32, %c0_33] : memref<16x2xf32, #tpu.memory_space<vmem>>, vector<16x2xf32>
    %76 = vector.extract_strided_slice %75 {offsets = [0, 0], sizes = [16, 1], strides = [1, 1]} : vector<16x2xf32> to vector<16x1xf32>
    %cst_34 = arith.constant dense<0.000000e+00> : vector<8x1xf32>
    %77 = tpu.matmul %74, %76, %cst_34 {dimension_numbers = #tpu.dot_dimension_numbers<[1], [0], [0], [1], [0, 0, 1, 1], [], []>} : vector<8x16xf32>, vector<16x1xf32>, vector<8x1xf32> -> vector<8x1xf32>
    %78 = vector.extract_strided_slice %75 {offsets = [0, 1], sizes = [16, 1], strides = [1, 1]} : vector<16x2xf32> to vector<16x1xf32>
    %cst_35 = arith.constant dense<0.000000e+00> : vector<1x8xf32>
    %79 = tpu.matmul %78, %74, %cst_35 {dimension_numbers = #tpu.dot_dimension_numbers<[0], [1], [1], [0], [0, 1, 1, 0], [], []>} : vector<16x1xf32>, vector<8x16xf32>, vector<1x8xf32> -> vector<1x8xf32>
    %80 = vector.broadcast %77 : vector<8x1xf32> to vector<8x8xf32>
    %81 = vector.broadcast %79 : vector<1x8xf32> to vector<8x8xf32>
    %82 = arith.addf %80, %81 : vector<8x8xf32>
    %cst_36 = arith.constant 0.000000e+00 : f32
    %83 = vector.broadcast %cst_36 : f32 to vector<8x8xf32>
    %84 = arith.cmpf ogt, %82, %83 : vector<8x8xf32>
    %cst_37 = arith.constant 2.000000e-01 : f32
    %85 = vector.broadcast %cst_37 : f32 to vector<8x8xf32>
    %86 = arith.mulf %85, %82 : vector<8x8xf32>
    %87 = arith.select %84, %82, %86 : vector<8x8xi1>, vector<8x8xf32>
    %cst_38 = arith.constant 0.000000e+00 : f32
    %88 = vector.broadcast %cst_38 : f32 to vector<8x8xf32>
    %89 = arith.cmpf ogt, %0, %88 : vector<8x8xf32>
    %cst_39 = arith.constant -9.000000e+15 : f32
    %90 = vector.broadcast %cst_39 : f32 to vector<8x8xf32>
    %91 = arith.select %89, %87, %90 : vector<8x8xi1>, vector<8x8xf32>
    %cst_40 = arith.constant dense<0xFF800000> : vector<8xf32>
    %92 = vector.multi_reduction <maximumf>, %91, %cst_40 [1] : vector<8x8xf32> to vector<8xf32>
    %93 = vector.shape_cast %92 : vector<8xf32> to vector<8x1xf32>
    %94 = vector.broadcast %93 : vector<8x1xf32> to vector<8x8xf32>
    %95 = arith.subf %91, %94 : vector<8x8xf32>
    %96 = math.exp %95 : vector<8x8xf32>
    %cst_41 = arith.constant dense<0.000000e+00> : vector<8xf32>
    %97 = vector.multi_reduction <add>, %96, %cst_41 [1] : vector<8x8xf32> to vector<8xf32>
    %98 = vector.shape_cast %97 : vector<8xf32> to vector<8x1xf32>
    %99 = tpu.reciprocal %98 {approx = true} : vector<8x1xf32> -> vector<8x1xf32>
    %100 = vector.broadcast %99 : vector<8x1xf32> to vector<8x8xf32>
    %101 = arith.mulf %96, %100 : vector<8x8xf32>
    %cst_42 = arith.constant dense<0.000000e+00> : vector<8x16xf32>
    %102 = tpu.matmul %101, %74, %cst_42 {dimension_numbers = #tpu.dot_dimension_numbers<[1], [0], [0], [1], [0, 0, 1, 1], [], []>} : vector<8x8xf32>, vector<8x16xf32>, vector<8x16xf32> -> vector<8x16xf32>
    %cst_43 = arith.constant 0.000000e+00 : f32
    %103 = vector.broadcast %cst_43 : f32 to vector<8x16xf32>
    %104 = arith.cmpf ogt, %102, %103 : vector<8x16xf32>
    %105 = math.exp %102 : vector<8x16xf32>
    %cst_44 = arith.constant 1.000000e+00 : f32
    %106 = vector.broadcast %cst_44 : f32 to vector<8x16xf32>
    %107 = arith.subf %105, %106 : vector<8x16xf32>
    %108 = arith.select %104, %102, %107 : vector<8x16xi1>, vector<8x16xf32>
    %c0_45 = arith.constant 0 : index
    %c0_46 = arith.constant 0 : index
    %109 = vector.load %arg4[%c0_45, %c0_46] : memref<32x32xf32, #tpu.memory_space<vmem>>, vector<32x32xf32>
    %c0_47 = arith.constant 0 : index
    %c0_48 = arith.constant 0 : index
    %c0_49 = arith.constant 0 : index
    %110 = vector.load %arg1[%c0_47, %c0_48, %c0_49] : memref<1x8x1xi32, #tpu.memory_space<vmem>>, vector<1x8x1xi32>
    %111 = vector.shape_cast %110 : vector<1x8x1xi32> to vector<8x1xi32>
    %112 = tpu.iota {dimensions = array<i32: 1>} : vector<8x32xi32>
    %113 = vector.broadcast %111 : vector<8x1xi32> to vector<8x32xi32>
    %114 = arith.cmpi eq, %112, %113 : vector<8x32xi32>
    %115 = arith.extui %114 : vector<8x32xi1> to vector<8x32xi32>
    %116 = arith.sitofp %115 : vector<8x32xi32> to vector<8x32xf32>
    %cst_50 = arith.constant dense<0.000000e+00> : vector<8x32xf32>
    %117 = tpu.matmul %116, %109, %cst_50 {dimension_numbers = #tpu.dot_dimension_numbers<[1], [0], [0], [1], [0, 0, 1, 1], [], []>} : vector<8x32xf32>, vector<32x32xf32>, vector<8x32xf32> -> vector<8x32xf32>
    %c0_51 = arith.constant 0 : index
    %c0_52 = arith.constant 0 : index
    %118 = vector.load %arg5[%c0_51, %c0_52] : memref<32x32xf32, #tpu.memory_space<vmem>>, vector<32x32xf32>
    %cst_53 = arith.constant dense<0.000000e+00> : vector<8x32xf32>
    %119 = tpu.matmul %117, %118, %cst_53 {dimension_numbers = #tpu.dot_dimension_numbers<[1], [0], [0], [1], [0, 0, 1, 1], [], []>} : vector<8x32xf32>, vector<32x32xf32>, vector<8x32xf32> -> vector<8x32xf32>
    %c0_54 = arith.constant 0 : index
    %c0_55 = arith.constant 0 : index
    %120 = vector.load %arg6[%c0_54, %c0_55] : memref<1x32xf32, #tpu.memory_space<vmem>>, vector<1x32xf32>
    %121 = vector.broadcast %120 : vector<1x32xf32> to vector<8x32xf32>
    %122 = arith.addf %119, %121 : vector<8x32xf32>
    %c0_56 = arith.constant 0 : index
    %c0_57 = arith.constant 0 : index
    %123 = vector.load %arg7[%c0_56, %c0_57] : memref<8x16xf32, #tpu.memory_space<vmem>>, vector<8x16xf32>
    %c0_58 = arith.constant 0 : index
    %c0_59 = arith.constant 0 : index
    %c0_60 = arith.constant 0 : index
    %124 = vector.load %arg2[%c0_58, %c0_59, %c0_60] : memref<1x8x1xi32, #tpu.memory_space<vmem>>, vector<1x8x1xi32>
    %125 = vector.shape_cast %124 : vector<1x8x1xi32> to vector<8x1xi32>
    %126 = tpu.iota {dimensions = array<i32: 1>} : vector<8x8xi32>
    %127 = vector.broadcast %125 : vector<8x1xi32> to vector<8x8xi32>
    %128 = arith.cmpi eq, %126, %127 : vector<8x8xi32>
    %129 = arith.extui %128 : vector<8x8xi1> to vector<8x8xi32>
    %130 = arith.sitofp %129 : vector<8x8xi32> to vector<8x8xf32>
    %cst_61 = arith.constant dense<0.000000e+00> : vector<8x16xf32>
    %131 = tpu.matmul %130, %123, %cst_61 {dimension_numbers = #tpu.dot_dimension_numbers<[1], [0], [0], [1], [0, 0, 1, 1], [], []>} : vector<8x8xf32>, vector<8x16xf32>, vector<8x16xf32> -> vector<8x16xf32>
    %c0_62 = arith.constant 0 : index
    %c0_63 = arith.constant 0 : index
    %c0_64 = arith.constant 0 : index
    %132 = vector.load %arg3[%c0_62, %c0_63, %c0_64] : memref<1x8x1xi32, #tpu.memory_space<vmem>>, vector<1x8x1xi32>
    %133 = vector.shape_cast %132 : vector<1x8x1xi32> to vector<8x1xi32>
    %134 = tpu.iota {dimensions = array<i32: 1>} : vector<8x8xi32>
    %135 = vector.broadcast %133 : vector<8x1xi32> to vector<8x8xi32>
    %136 = arith.cmpi eq, %134, %135 : vector<8x8xi32>
    %137 = arith.extui %136 : vector<8x8xi1> to vector<8x8xi32>
    %138 = arith.sitofp %137 : vector<8x8xi32> to vector<8x8xf32>
    %cst_65 = arith.constant dense<0.000000e+00> : vector<8x16xf32>
    %139 = tpu.matmul %138, %108, %cst_65 {dimension_numbers = #tpu.dot_dimension_numbers<[1], [0], [0], [1], [0, 0, 1, 1], [], []>} : vector<8x8xf32>, vector<8x16xf32>, vector<8x16xf32> -> vector<8x16xf32>
    %140 = tpu.concatenate %122, %131, %139 in 1 : vector<8x32xf32>, vector<8x16xf32>, vector<8x16xf32> -> vector<8x64xf32>
    %c0_66 = arith.constant 0 : index
    %c0_67 = arith.constant 0 : index
    %141 = vector.load %arg15[%c0_66, %c0_67] : memref<64x128xf32, #tpu.memory_space<vmem>>, vector<64x128xf32>
    %cst_68 = arith.constant dense<0.000000e+00> : vector<8x128xf32>
    %142 = tpu.matmul %140, %141, %cst_68 {dimension_numbers = #tpu.dot_dimension_numbers<[1], [0], [0], [1], [0, 0, 1, 1], [], []>} : vector<8x64xf32>, vector<64x128xf32>, vector<8x128xf32> -> vector<8x128xf32>
    %c0_69 = arith.constant 0 : index
    %c0_70 = arith.constant 0 : index
    %143 = vector.load %arg16[%c0_69, %c0_70] : memref<1x128xf32, #tpu.memory_space<vmem>>, vector<1x128xf32>
    %144 = vector.broadcast %143 : vector<1x128xf32> to vector<8x128xf32>
    %145 = arith.addf %142, %144 : vector<8x128xf32>
    %cst_71 = arith.constant 0.000000e+00 : f32
    %146 = vector.broadcast %cst_71 : f32 to vector<8x128xf32>
    %147 = arith.maximumf %145, %146 : vector<8x128xf32>
    %c0_72 = arith.constant 0 : index
    %c0_73 = arith.constant 0 : index
    %148 = vector.load %arg17[%c0_72, %c0_73] : memref<64x128xf32, #tpu.memory_space<vmem>>, vector<64x128xf32>
    %cst_74 = arith.constant dense<0.000000e+00> : vector<8x128xf32>
    %149 = tpu.matmul %140, %148, %cst_74 {dimension_numbers = #tpu.dot_dimension_numbers<[1], [0], [0], [1], [0, 0, 1, 1], [], []>} : vector<8x64xf32>, vector<64x128xf32>, vector<8x128xf32> -> vector<8x128xf32>
    %c0_75 = arith.constant 0 : index
    %c0_76 = arith.constant 0 : index
    %150 = vector.load %arg18[%c0_75, %c0_76] : memref<1x128xf32, #tpu.memory_space<vmem>>, vector<1x128xf32>
    %151 = vector.broadcast %150 : vector<1x128xf32> to vector<8x128xf32>
    %152 = arith.addf %149, %151 : vector<8x128xf32>
    %cst_77 = arith.constant 0.000000e+00 : f32
    %153 = vector.broadcast %cst_77 : f32 to vector<8x128xf32>
    %154 = arith.maximumf %152, %153 : vector<8x128xf32>
    %c0_78 = arith.constant 0 : index
    %c0_79 = arith.constant 0 : index
    %155 = vector.load %arg19[%c0_78, %c0_79] : memref<128x320xf32, #tpu.memory_space<vmem>>, vector<128x320xf32>
    %cst_80 = arith.constant dense<0.000000e+00> : vector<8x320xf32>
    %156 = tpu.matmul %147, %155, %cst_80 {dimension_numbers = #tpu.dot_dimension_numbers<[1], [0], [0], [1], [0, 0, 1, 1], [], []>} : vector<8x128xf32>, vector<128x320xf32>, vector<8x320xf32> -> vector<8x320xf32>
    %c0_81 = arith.constant 0 : index
    %c0_82 = arith.constant 0 : index
    %157 = vector.load %arg20[%c0_81, %c0_82] : memref<128x5xf32, #tpu.memory_space<vmem>>, vector<128x5xf32>
    %cst_83 = arith.constant dense<0.000000e+00> : vector<8x5xf32>
    %158 = tpu.matmul %147, %157, %cst_83 {dimension_numbers = #tpu.dot_dimension_numbers<[1], [0], [0], [1], [0, 0, 1, 1], [], []>} : vector<8x128xf32>, vector<128x5xf32>, vector<8x5xf32> -> vector<8x5xf32>
    %c0_84 = arith.constant 0 : index
    %c0_85 = arith.constant 0 : index
    %159 = vector.load %arg22[%c0_84, %c0_85] : memref<1x5xf32, #tpu.memory_space<vmem>>, vector<1x5xf32>
    %160 = vector.broadcast %159 : vector<1x5xf32> to vector<8x5xf32>
    %161 = arith.addf %158, %160 : vector<8x5xf32>
    %c0_86 = arith.constant 0 : index
    %c0_87 = arith.constant 0 : index
    %162 = vector.load %arg21[%c0_86, %c0_87] : memref<5x128xf32, #tpu.memory_space<vmem>>, vector<5x128xf32>
    %cst_88 = arith.constant dense<0.000000e+00> : vector<5x8xf32>
    %163 = tpu.matmul %162, %154, %cst_88 {dimension_numbers = #tpu.dot_dimension_numbers<[1], [1], [0], [0], [0, 0, 1, 0], [], []>} : vector<5x128xf32>, vector<8x128xf32>, vector<5x8xf32> -> vector<5x8xf32>
    %164 = vector.extract_strided_slice %154 {offsets = [0, 0], sizes = [8, 64], strides = [1, 1]} : vector<8x128xf32> to vector<8x64xf32>
    %165 = vector.extract_strided_slice %156 {offsets = [0, 0], sizes = [8, 64], strides = [1, 1]} : vector<8x320xf32> to vector<8x64xf32>
    %cst_89 = arith.constant dense<0.000000e+00> : vector<8x8xf32>
    %166 = tpu.matmul %165, %164, %cst_89 {dimension_numbers = #tpu.dot_dimension_numbers<[1], [1], [0], [0], [0, 0, 1, 0], [], []>} : vector<8x64xf32>, vector<8x64xf32>, vector<8x8xf32> -> vector<8x8xf32>
    %167 = vector.extract_strided_slice %161 {offsets = [0, 0], sizes = [8, 1], strides = [1, 1]} : vector<8x5xf32> to vector<8x1xf32>
    %168 = vector.broadcast %167 : vector<8x1xf32> to vector<8x8xf32>
    %169 = arith.addf %166, %168 : vector<8x8xf32>
    %170 = vector.extract_strided_slice %163 {offsets = [0, 0], sizes = [1, 8], strides = [1, 1]} : vector<5x8xf32> to vector<1x8xf32>
    %171 = vector.broadcast %170 : vector<1x8xf32> to vector<8x8xf32>
    %172 = arith.addf %169, %171 : vector<8x8xf32>
    %c0_90 = arith.constant 0 : index
    %c0_91 = arith.constant 0 : index
    %c0_92 = arith.constant 0 : index
    %c0_93 = arith.constant 0 : index
    %173 = vector.load %arg23[%c0_90, %c0_91, %c0_92, %c0_93] : memref<1x5x8x8xf32, #tpu.memory_space<vmem>>, vector<1x1x8x8xf32>
    %174 = vector.shape_cast %173 : vector<1x1x8x8xf32> to vector<8x8xf32>
    %175 = vector.shape_cast %172 : vector<8x8xf32> to vector<1x1x8x8xf32>
    tpu.vector_store %arg23[%c0_90, %c0_91, %c0_92, %c0_93], %175 {strides = array<i32>} : memref<1x5x8x8xf32, #tpu.memory_space<vmem>>, vector<1x1x8x8xf32>,
    %176 = vector.extract_strided_slice %154 {offsets = [0, 64], sizes = [8, 64], strides = [1, 1]} : vector<8x128xf32> to vector<8x64xf32>
    %177 = vector.extract_strided_slice %156 {offsets = [0, 64], sizes = [8, 64], strides = [1, 1]} : vector<8x320xf32> to vector<8x64xf32>
    %cst_94 = arith.constant dense<0.000000e+00> : vector<8x8xf32>
    %178 = tpu.matmul %177, %176, %cst_94 {dimension_numbers = #tpu.dot_dimension_numbers<[1], [1], [0], [0], [0, 0, 1, 0], [], []>} : vector<8x64xf32>, vector<8x64xf32>, vector<8x8xf32> -> vector<8x8xf32>
    %179 = vector.extract_strided_slice %161 {offsets = [0, 1], sizes = [8, 1], strides = [1, 1]} : vector<8x5xf32> to vector<8x1xf32>
    %180 = vector.broadcast %179 : vector<8x1xf32> to vector<8x8xf32>
    %181 = arith.addf %178, %180 : vector<8x8xf32>
    %182 = vector.extract_strided_slice %163 {offsets = [1, 0], sizes = [1, 8], strides = [1, 1]} : vector<5x8xf32> to vector<1x8xf32>
    %183 = vector.broadcast %182 : vector<1x8xf32> to vector<8x8xf32>
    %184 = arith.addf %181, %183 : vector<8x8xf32>
    %c0_95 = arith.constant 0 : index
    %c1 = arith.constant 1 : index
    %c0_96 = arith.constant 0 : index
    %c0_97 = arith.constant 0 : index
    %185 = vector.load %arg23[%c0_95, %c1, %c0_96, %c0_97] : memref<1x5x8x8xf32, #tpu.memory_space<vmem>>, vector<1x1x8x8xf32>
    %186 = vector.shape_cast %185 : vector<1x1x8x8xf32> to vector<8x8xf32>
    %187 = vector.shape_cast %184 : vector<8x8xf32> to vector<1x1x8x8xf32>
    tpu.vector_store %arg23[%c0_95, %c1, %c0_96, %c0_97], %187 {strides = array<i32>} : memref<1x5x8x8xf32, #tpu.memory_space<vmem>>, vector<1x1x8x8xf32>,
    %188 = vector.extract_strided_slice %154 {offsets = [0, 64], sizes = [8, 64], strides = [1, 1]} : vector<8x128xf32> to vector<8x64xf32>
    %189 = vector.extract_strided_slice %156 {offsets = [0, 128], sizes = [8, 64], strides = [1, 1]} : vector<8x320xf32> to vector<8x64xf32>
    %cst_98 = arith.constant dense<0.000000e+00> : vector<8x8xf32>
    %190 = tpu.matmul %189, %188, %cst_98 {dimension_numbers = #tpu.dot_dimension_numbers<[1], [1], [0], [0], [0, 0, 1, 0], [], []>} : vector<8x64xf32>, vector<8x64xf32>, vector<8x8xf32> -> vector<8x8xf32>
    %191 = vector.extract_strided_slice %161 {offsets = [0, 2], sizes = [8, 1], strides = [1, 1]} : vector<8x5xf32> to vector<8x1xf32>
    %192 = vector.broadcast %191 : vector<8x1xf32> to vector<8x8xf32>
    %193 = arith.addf %190, %192 : vector<8x8xf32>
    %194 = vector.extract_strided_slice %163 {offsets = [2, 0], sizes = [1, 8], strides = [1, 1]} : vector<5x8xf32> to vector<1x8xf32>
    %195 = vector.broadcast %194 : vector<1x8xf32> to vector<8x8xf32>
    %196 = arith.addf %193, %195 : vector<8x8xf32>
    %c0_99 = arith.constant 0 : index
    %c2 = arith.constant 2 : index
    %c0_100 = arith.constant 0 : index
    %c0_101 = arith.constant 0 : index
    %197 = vector.load %arg23[%c0_99, %c2, %c0_100, %c0_101] : memref<1x5x8x8xf32, #tpu.memory_space<vmem>>, vector<1x1x8x8xf32>
    %198 = vector.shape_cast %197 : vector<1x1x8x8xf32> to vector<8x8xf32>
    %199 = vector.shape_cast %196 : vector<8x8xf32> to vector<1x1x8x8xf32>
    tpu.vector_store %arg23[%c0_99, %c2, %c0_100, %c0_101], %199 {strides = array<i32>} : memref<1x5x8x8xf32, #tpu.memory_space<vmem>>, vector<1x1x8x8xf32>,
    %200 = vector.extract_strided_slice %154 {offsets = [0, 64], sizes = [8, 64], strides = [1, 1]} : vector<8x128xf32> to vector<8x64xf32>
    %201 = vector.extract_strided_slice %156 {offsets = [0, 192], sizes = [8, 64], strides = [1, 1]} : vector<8x320xf32> to vector<8x64xf32>
    %cst_102 = arith.constant dense<0.000000e+00> : vector<8x8xf32>
    %202 = tpu.matmul %201, %200, %cst_102 {dimension_numbers = #tpu.dot_dimension_numbers<[1], [1], [0], [0], [0, 0, 1, 0], [], []>} : vector<8x64xf32>, vector<8x64xf32>, vector<8x8xf32> -> vector<8x8xf32>
    %203 = vector.extract_strided_slice %161 {offsets = [0, 3], sizes = [8, 1], strides = [1, 1]} : vector<8x5xf32> to vector<8x1xf32>
    %204 = vector.broadcast %203 : vector<8x1xf32> to vector<8x8xf32>
    %205 = arith.addf %202, %204 : vector<8x8xf32>
    %206 = vector.extract_strided_slice %163 {offsets = [3, 0], sizes = [1, 8], strides = [1, 1]} : vector<5x8xf32> to vector<1x8xf32>
    %207 = vector.broadcast %206 : vector<1x8xf32> to vector<8x8xf32>
    %208 = arith.addf %205, %207 : vector<8x8xf32>
    %c0_103 = arith.constant 0 : index
    %c3 = arith.constant 3 : index
    %c0_104 = arith.constant 0 : index
    %c0_105 = arith.constant 0 : index
    %209 = vector.load %arg23[%c0_103, %c3, %c0_104, %c0_105] : memref<1x5x8x8xf32, #tpu.memory_space<vmem>>, vector<1x1x8x8xf32>
    %210 = vector.shape_cast %209 : vector<1x1x8x8xf32> to vector<8x8xf32>
    %211 = vector.shape_cast %208 : vector<8x8xf32> to vector<1x1x8x8xf32>
    tpu.vector_store %arg23[%c0_103, %c3, %c0_104, %c0_105], %211 {strides = array<i32>} : memref<1x5x8x8xf32, #tpu.memory_space<vmem>>, vector<1x1x8x8xf32>,
    %212 = vector.extract_strided_slice %154 {offsets = [0, 64], sizes = [8, 64], strides = [1, 1]} : vector<8x128xf32> to vector<8x64xf32>
    %213 = vector.extract_strided_slice %156 {offsets = [0, 256], sizes = [8, 64], strides = [1, 1]} : vector<8x320xf32> to vector<8x64xf32>
    %cst_106 = arith.constant dense<0.000000e+00> : vector<8x8xf32>
    %214 = tpu.matmul %213, %212, %cst_106 {dimension_numbers = #tpu.dot_dimension_numbers<[1], [1], [0], [0], [0, 0, 1, 0], [], []>} : vector<8x64xf32>, vector<8x64xf32>, vector<8x8xf32> -> vector<8x8xf32>
    %215 = vector.extract_strided_slice %161 {offsets = [0, 4], sizes = [8, 1], strides = [1, 1]} : vector<8x5xf32> to vector<8x1xf32>
    %216 = vector.broadcast %215 : vector<8x1xf32> to vector<8x8xf32>
    %217 = arith.addf %214, %216 : vector<8x8xf32>
    %218 = vector.extract_strided_slice %163 {offsets = [4, 0], sizes = [1, 8], strides = [1, 1]} : vector<5x8xf32> to vector<1x8xf32>
    %219 = vector.broadcast %218 : vector<1x8xf32> to vector<8x8xf32>
    %220 = arith.addf %217, %219 : vector<8x8xf32>
    %c0_107 = arith.constant 0 : index
    %c4 = arith.constant 4 : index
    %c0_108 = arith.constant 0 : index
    %c0_109 = arith.constant 0 : index
    %221 = vector.load %arg23[%c0_107, %c4, %c0_108, %c0_109] : memref<1x5x8x8xf32, #tpu.memory_space<vmem>>, vector<1x1x8x8xf32>
    %222 = vector.shape_cast %221 : vector<1x1x8x8xf32> to vector<8x8xf32>
    %223 = vector.shape_cast %220 : vector<8x8xf32> to vector<1x1x8x8xf32>
    tpu.vector_store %arg23[%c0_107, %c4, %c0_108, %c0_109], %223 {strides = array<i32>} : memref<1x5x8x8xf32, #tpu.memory_space<vmem>>, vector<1x1x8x8xf32>,
    return
  }
  func.func @transform_0(%arg0: i32) -> (i32, i32, i32) {
    %c0_i32 = arith.constant 0 : i32
    %c0_i32_0 = arith.constant 0 : i32
    %c0_i32_1 = arith.constant 0 : i32
    return %arg0, %c0_i32, %c0_i32_0 : i32, i32, i32
  }
  func.func @transform_1(%arg0: i32) -> (i32, i32, i32) {
    %c0_i32 = arith.constant 0 : i32
    %c0_i32_0 = arith.constant 0 : i32
    %c0_i32_1 = arith.constant 0 : i32
    return %arg0, %c0_i32, %c0_i32_0 : i32, i32, i32
  }
  func.func @transform_2(%arg0: i32) -> (i32, i32, i32) {
    %c0_i32 = arith.constant 0 : i32
    %c0_i32_0 = arith.constant 0 : i32
    %c0_i32_1 = arith.constant 0 : i32
    return %arg0, %c0_i32, %c0_i32_0 : i32, i32, i32
  }
  func.func @transform_3(%arg0: i32) -> (i32, i32) {
    %c0_i32 = arith.constant 0 : i32
    %c0_i32_0 = arith.constant 0 : i32
    %c0_i32_1 = arith.constant 0 : i32
    return %c0_i32, %c0_i32_0 : i32, i32
  }
  func.func @transform_4(%arg0: i32) -> (i32, i32) {
    %c0_i32 = arith.constant 0 : i32
    %c0_i32_0 = arith.constant 0 : i32
    %c0_i32_1 = arith.constant 0 : i32
    return %c0_i32, %c0_i32_0 : i32, i32
  }
  func.func @transform_5(%arg0: i32) -> (i32, i32) {
    %c0_i32 = arith.constant 0 : i32
    %c0_i32_0 = arith.constant 0 : i32
    %c0_i32_1 = arith.constant 0 : i32
    return %c0_i32, %c0_i32_0 : i32, i32
  }
  func.func @transform_6(%arg0: i32) -> (i32, i32) {
    %c0_i32 = arith.constant 0 : i32
    %c0_i32_0 = arith.constant 0 : i32
    %c0_i32_1 = arith.constant 0 : i32
    return %c0_i32, %c0_i32_0 : i32, i32
  }
  func.func @transform_7(%arg0: i32) -> (i32, i32) {
    %c0_i32 = arith.constant 0 : i32
    %c0_i32_0 = arith.constant 0 : i32
    %c0_i32_1 = arith.constant 0 : i32
    return %c0_i32, %c0_i32_0 : i32, i32
  }
  func.func @transform_8(%arg0: i32) -> (i32, i32) {
    %c0_i32 = arith.constant 0 : i32
    %c0_i32_0 = arith.constant 0 : i32
    %c0_i32_1 = arith.constant 0 : i32
    return %c0_i32, %c0_i32_0 : i32, i32
  }
  func.func @transform_9(%arg0: i32) -> (i32, i32) {
    %c0_i32 = arith.constant 0 : i32
    %c0_i32_0 = arith.constant 0 : i32
    %c0_i32_1 = arith.constant 0 : i32
    return %c0_i32, %c0_i32_0 : i32, i32
  }
  func.func @transform_10(%arg0: i32) -> (i32, i32) {
    %c0_i32 = arith.constant 0 : i32
    %c0_i32_0 = arith.constant 0 : i32
    %c0_i32_1 = arith.constant 0 : i32
    return %c0_i32, %c0_i32_0 : i32, i32
  }
  func.func @transform_11(%arg0: i32) -> (i32, i32) {
    %c0_i32 = arith.constant 0 : i32
    %c0_i32_0 = arith.constant 0 : i32
    %c0_i32_1 = arith.constant 0 : i32
    return %c0_i32, %c0_i32_0 : i32, i32
  }
  func.func @transform_12(%arg0: i32) -> (i32, i32) {
    %c0_i32 = arith.constant 0 : i32
    %c0_i32_0 = arith.constant 0 : i32
    %c0_i32_1 = arith.constant 0 : i32
    return %c0_i32, %c0_i32_0 : i32, i32
  }
  func.func @transform_13(%arg0: i32) -> (i32, i32) {
    %c0_i32 = arith.constant 0 : i32
    %c0_i32_0 = arith.constant 0 : i32
    %c0_i32_1 = arith.constant 0 : i32
    return %c0_i32, %c0_i32_0 : i32, i32
  }
  func.func @transform_14(%arg0: i32) -> (i32, i32) {
    %c0_i32 = arith.constant 0 : i32
    %c0_i32_0 = arith.constant 0 : i32
    %c0_i32_1 = arith.constant 0 : i32
    return %c0_i32, %c0_i32_0 : i32, i32
  }
  func.func @transform_15(%arg0: i32) -> (i32, i32) {
    %c0_i32 = arith.constant 0 : i32
    %c0_i32_0 = arith.constant 0 : i32
    %c0_i32_1 = arith.constant 0 : i32
    return %c0_i32, %c0_i32_0 : i32, i32
  }
  func.func @transform_16(%arg0: i32) -> (i32, i32) {
    %c0_i32 = arith.constant 0 : i32
    %c0_i32_0 = arith.constant 0 : i32
    %c0_i32_1 = arith.constant 0 : i32
    return %c0_i32, %c0_i32_0 : i32, i32
  }
  func.func @transform_17(%arg0: i32) -> (i32, i32) {
    %c0_i32 = arith.constant 0 : i32
    %c0_i32_0 = arith.constant 0 : i32
    %c0_i32_1 = arith.constant 0 : i32
    return %c0_i32, %c0_i32_0 : i32, i32
  }
  func.func @transform_18(%arg0: i32) -> (i32, i32) {
    %c0_i32 = arith.constant 0 : i32
    %c0_i32_0 = arith.constant 0 : i32
    %c0_i32_1 = arith.constant 0 : i32
    return %c0_i32, %c0_i32_0 : i32, i32
  }
  func.func @transform_19(%arg0: i32) -> (i32, i32) {
    %c0_i32 = arith.constant 0 : i32
    %c0_i32_0 = arith.constant 0 : i32
    %c0_i32_1 = arith.constant 0 : i32
    return %c0_i32, %c0_i32_0 : i32, i32
  }
  func.func @transform_20(%arg0: i32) -> (i32, i32) {
    %c0_i32 = arith.constant 0 : i32
    %c0_i32_0 = arith.constant 0 : i32
    %c0_i32_1 = arith.constant 0 : i32
    return %c0_i32, %c0_i32_0 : i32, i32
  }
  func.func @transform_21(%arg0: i32) -> (i32, i32) {
    %c0_i32 = arith.constant 0 : i32
    %c0_i32_0 = arith.constant 0 : i32
    %c0_i32_1 = arith.constant 0 : i32
    return %c0_i32, %c0_i32_0 : i32, i32
  }
  func.func @transform_22(%arg0: i32) -> (i32, i32, i32, i32) {
    %c0_i32 = arith.constant 0 : i32
    %c0_i32_0 = arith.constant 0 : i32
    %c0_i32_1 = arith.constant 0 : i32
    %c0_i32_2 = arith.constant 0 : i32
    return %arg0, %c0_i32, %c0_i32_0, %c0_i32_1 : i32, i32, i32, i32
  }
}

</mosaic_0001>

<llo_original>
// kernel: _forward_jit.1
$region0: #{_forward_jit.1}
  #allocation0 [shape = 'u32[]', space=smem, size = 0x4, offset = 0x4, fixed_abs, tag = 'smem constant byte address 0x4 - core index']
  #allocation1 [shape = 'u32[144,128]{1,0:T(1,128)}', space=vmem, size = 0x12000, scoped, tag = 'internal scratch']
  %s0 = inlined_call_operand.vmem [shape: s32[2,8,1], index: 0, kind: input, shape index: {}]
  %s1 = inlined_call_operand.vmem [shape: s32[2,8,1], index: 1, kind: input, shape index: {}]
  %s2 = inlined_call_operand.vmem [shape: s32[2,8,1], index: 2, kind: input, shape index: {}]
  %s3 = inlined_call_operand.vmem [shape: f32[32,32], index: 3, kind: input, shape index: {}]
  %s4 = inlined_call_operand.vmem [shape: f32[32,32], index: 4, kind: input, shape index: {}]
  %s5 = inlined_call_operand.vmem [shape: f32[1,32], index: 5, kind: input, shape index: {}]
  %s6 = inlined_call_operand.vmem [shape: f32[8,16], index: 6, kind: input, shape index: {}]
  %s7 = inlined_call_operand.vmem [shape: f32[8,16], index: 7, kind: input, shape index: {}]
  %s8 = inlined_call_operand.vmem [shape: f32[8,8], index: 8, kind: input, shape index: {}]
  %s9 = inlined_call_operand.vmem [shape: f32[16,16], index: 9, kind: input, shape index: {}]
  %s10 = inlined_call_operand.vmem [shape: f32[16,2], index: 10, kind: input, shape index: {}]
  %s11 = inlined_call_operand.vmem [shape: f32[16,2], index: 11, kind: input, shape index: {}]
  %s12 = inlined_call_operand.vmem [shape: f32[16,16], index: 12, kind: input, shape index: {}]
  %s13 = inlined_call_operand.vmem [shape: f32[16,2], index: 13, kind: input, shape index: {}]
  %s14 = inlined_call_operand.vmem [shape: f32[64,128], index: 14, kind: input, shape index: {}]
  %s15 = inlined_call_operand.vmem [shape: f32[1,128], index: 15, kind: input, shape index: {}]
  %s16 = inlined_call_operand.vmem [shape: f32[64,128], index: 16, kind: input, shape index: {}]
  %s17 = inlined_call_operand.vmem [shape: f32[1,128], index: 17, kind: input, shape index: {}]
  %s18 = inlined_call_operand.vmem [shape: f32[128,320], index: 18, kind: input, shape index: {}]
  %s19 = inlined_call_operand.vmem [shape: f32[128,5], index: 19, kind: input, shape index: {}]
  %s20 = inlined_call_operand.vmem [shape: f32[5,128], index: 20, kind: input, shape index: {}]
  %s21 = inlined_call_operand.vmem [shape: f32[1,5], index: 21, kind: input, shape index: {}]
  %s22 = inlined_call_operand.vmem [shape: f32[2,5,8,8], index: 22, kind: output, shape index: {}]
  %s23 = sld [smem:[#allocation0]]
  $region121: #{_forward_jit.1} parent=0
    _
  %s25 = ssub.s32 1, %s23
  %s26 = scalar_select 0, %s25, %s23
  loop: start=0, step=1, limit=4
  $region2: #{_forward_jit.1} parent=0 // loop_pre_header
    _
  $region3: #{_forward_jit.1} parent=0 // loop_header
    %s28 = sphi 0, %s32
    %p29 = scmp.ge.s32.totalorder %s28, 4
    %s38 = sphi 0, %s40
    %s41 = sphi 0, %s38
    %s42 = sphi 0, %s41
    %s58 = sphi 0, %s42
    %s64 = sphi 0, %s66
    %s67 = sphi 0, %s64
    %s68 = sphi 0, %s67
    %s84 = sphi 0, %s68
    %s90 = sphi 0, %s92
    %s93 = sphi 0, %s90
    %s94 = sphi 0, %s93
    %s110 = sphi 0, %s94
    %s114 = sphi 0, %s114
    %s116 = sphi 0, %s114
    %s117 = sphi 0, %s116
    %s131 = sphi 0, %s117
    %s135 = sphi 0, %s135
    %s137 = sphi 0, %s135
    %s138 = sphi 0, %s137
    %s152 = sphi 0, %s138
    %s156 = sphi 0, %s156
    %s158 = sphi 0, %s156
    %s159 = sphi 0, %s158
    %s173 = sphi 0, %s159
    %s177 = sphi 0, %s177
    %s179 = sphi 0, %s177
    %s180 = sphi 0, %s179
    %s194 = sphi 0, %s180
    %s198 = sphi 0, %s198
    %s200 = sphi 0, %s198
    %s201 = sphi 0, %s200
    %s215 = sphi 0, %s201
    %s219 = sphi 0, %s219
    %s221 = sphi 0, %s219
    %s222 = sphi 0, %s221
    %s236 = sphi 0, %s222
    %s240 = sphi 0, %s240
    %s242 = sphi 0, %s240
    %s243 = sphi 0, %s242
    %s257 = sphi 0, %s243
    %s261 = sphi 0, %s261
    %s263 = sphi 0, %s261
    %s264 = sphi 0, %s263
    %s278 = sphi 0, %s264
    %s282 = sphi 0, %s282
    %s284 = sphi 0, %s282
    %s285 = sphi 0, %s284
    %s299 = sphi 0, %s285
    %s303 = sphi 0, %s303
    %s305 = sphi 0, %s303
    %s306 = sphi 0, %s305
    %s320 = sphi 0, %s306
    %s324 = sphi 0, %s324
    %s326 = sphi 0, %s324
    %s327 = sphi 0, %s326
    %s341 = sphi 0, %s327
    %s345 = sphi 0, %s345
    %s347 = sphi 0, %s345
    %s348 = sphi 0, %s347
    %s362 = sphi 0, %s348
    %s366 = sphi 0, %s366
    %s368 = sphi 0, %s366
    %s369 = sphi 0, %s368
    %s383 = sphi 0, %s369
    %s387 = sphi 0, %s387
    %s389 = sphi 0, %s387
    %s390 = sphi 0, %s389
    %s404 = sphi 0, %s390
    %s408 = sphi 0, %s408
    %s410 = sphi 0, %s408
    %s411 = sphi 0, %s410
    %s425 = sphi 0, %s411
    %s429 = sphi 0, %s429
    %s431 = sphi 0, %s429
    %s432 = sphi 0, %s431
    %s446 = sphi 0, %s432
    %s450 = sphi 0, %s450
    %s452 = sphi 0, %s450
    %s453 = sphi 0, %s452
    %s467 = sphi 0, %s453
    %s471 = sphi 0, %s471
    %s473 = sphi 0, %s471
    %s474 = sphi 0, %s473
    %s488 = sphi 0, %s474
    %s492 = sphi 0, %s492
    %s494 = sphi 0, %s492
    %s495 = sphi 0, %s494
    %s509 = sphi 0, %s495
    %s515 = sphi 0, %s517
    %s518 = sphi 0, %s515
    %s519 = sphi 0, %s518
    %s535 = sphi 0, %s519
  $region4: #{_forward_jit.1} parent=0 // loop_header_branch
    %31 = sbr.rel (%p29) target = $region8
  $region5: #{_forward_jit.1} parent=0 // loop_body
    %s33 = ssub.s32 %s28, 1
    %s34 = ssub.s32 %s28, 2
    %s35 = sadd.s32 %s28, 1
    %s36 = ssub.s32 %s28, %s35
    %p37 = scmp.eq.s32.totalorder %s36, 0
    %s39 = sadd.s32 %s38, 1
    %s40 = scalar_select %p37, %s38, %s39
    %p43 = pneg %p37
    %p44 = scmp.eq.s32.totalorder %s28, 1
    %p45 = por %p43, %p44
    %p46 = scmp.ne.s32.totalorder %s38, %s41
    %p47 = scmp.eq.s32.totalorder %s28, 0
    %p48 = por %p46, %p47
    %p49 = scmp.ne.s32.totalorder %s38, %s41
    %p50 = scmp.eq.s32.totalorder %s33, 1
    %p51 = por %p49, %p50
    %p52 = scmp.ne.s32.totalorder %s41, %s42
    %p53 = scmp.eq.s32.totalorder %s33, 0
    %p54 = por %p52, %p53
    %p55 = scmp.ne.s32.totalorder %s41, %s42
    %p56 = scmp.eq.s32.totalorder %s34, 1
    %p57 = por %p55, %p56
    %p59 = scmp.ne.s32.totalorder %s42, %s58
    %p60 = scmp.eq.s32.totalorder %s34, 0
    %p61 = por %p59, %p60
    %s62 = ssub.s32 %s28, %s35
    %p63 = scmp.eq.s32.totalorder %s62, 0
    %s65 = sadd.s32 %s64, 1
    %s66 = scalar_select %p63, %s64, %s65
    %p69 = pneg %p63
    %p70 = scmp.eq.s32.totalorder %s28, 1
    %p71 = por %p69, %p70
    %p72 = scmp.ne.s32.totalorder %s64, %s67
    %p73 = scmp.eq.s32.totalorder %s28, 0
    %p74 = por %p72, %p73
    %p75 = scmp.ne.s32.totalorder %s64, %s67
    %p76 = scmp.eq.s32.totalorder %s33, 1
    %p77 = por %p75, %p76
    %p78 = scmp.ne.s32.totalorder %s67, %s68
    %p79 = scmp.eq.s32.totalorder %s33, 0
    %p80 = por %p78, %p79
    %p81 = scmp.ne.s32.totalorder %s67, %s68
    %p82 = scmp.eq.s32.totalorder %s34, 1
    %p83 = por %p81, %p82
    %p85 = scmp.ne.s32.totalorder %s68, %s84
    %p86 = scmp.eq.s32.totalorder %s34, 0
    %p87 = por %p85, %p86
    %s88 = ssub.s32 %s28, %s35
    %p89 = scmp.eq.s32.totalorder %s88, 0
    %s91 = sadd.s32 %s90, 1
    %s92 = scalar_select %p89, %s90, %s91
    %p95 = pneg %p89
    %p96 = scmp.eq.s32.totalorder %s28, 1
    %p97 = por %p95, %p96
    %p98 = scmp.ne.s32.totalorder %s90, %s93
    %p99 = scmp.eq.s32.totalorder %s28, 0
    %p100 = por %p98, %p99
    %p101 = scmp.ne.s32.totalorder %s90, %s93
    %p102 = scmp.eq.s32.totalorder %s33, 1
    %p103 = por %p101, %p102
    %p104 = scmp.ne.s32.totalorder %s93, %s94
    %p105 = scmp.eq.s32.totalorder %s33, 0
    %p106 = por %p104, %p105
    %p107 = scmp.ne.s32.totalorder %s93, %s94
    %p108 = scmp.eq.s32.totalorder %s34, 1
    %p109 = por %p107, %p108
    %p111 = scmp.ne.s32.totalorder %s94, %s110
    %p112 = scmp.eq.s32.totalorder %s34, 0
    %p113 = por %p111, %p112
    %s115 = sadd.s32 %s114, 1
    %p118 = scmp.eq.s32.totalorder %s28, 1
    %p119 = scmp.ne.s32.totalorder %s114, %s116
    %p120 = scmp.eq.s32.totalorder %s28, 0
    %p121 = por %p119, %p120
    %p122 = scmp.ne.s32.totalorder %s114, %s116
    %p123 = scmp.eq.s32.totalorder %s33, 1
    %p124 = por %p122, %p123
    %p125 = scmp.ne.s32.totalorder %s116, %s117
    %p126 = scmp.eq.s32.totalorder %s33, 0
    %p127 = por %p125, %p126
    %p128 = scmp.ne.s32.totalorder %s116, %s117
    %p129 = scmp.eq.s32.totalorder %s34, 1
    %p130 = por %p128, %p129
    %p132 = scmp.ne.s32.totalorder %s117, %s131
    %p133 = scmp.eq.s32.totalorder %s34, 0
    %p134 = por %p132, %p133
    %s136 = sadd.s32 %s135, 1
    %p139 = scmp.eq.s32.totalorder %s28, 1
    %p140 = scmp.ne.s32.totalorder %s135, %s137
    %p141 = scmp.eq.s32.totalorder %s28, 0
    %p142 = por %p140, %p141
    %p143 = scmp.ne.s32.totalorder %s135, %s137
    %p144 = scmp.eq.s32.totalorder %s33, 1
    %p145 = por %p143, %p144
    %p146 = scmp.ne.s32.totalorder %s137, %s138
    %p147 = scmp.eq.s32.totalorder %s33, 0
    %p148 = por %p146, %p147
    %p149 = scmp.ne.s32.totalorder %s137, %s138
    %p150 = scmp.eq.s32.totalorder %s34, 1
    %p151 = por %p149, %p150
    %p153 = scmp.ne.s32.totalorder %s138, %s152
    %p154 = scmp.eq.s32.totalorder %s34, 0
    %p155 = por %p153, %p154
    %s157 = sadd.s32 %s156, 1
    %p160 = scmp.eq.s32.totalorder %s28, 1
    %p161 = scmp.ne.s32.totalorder %s156, %s158
    %p162 = scmp.eq.s32.totalorder %s28, 0
    %p163 = por %p161, %p162
    %p164 = scmp.ne.s32.totalorder %s156, %s158
    %p165 = scmp.eq.s32.totalorder %s33, 1
    %p166 = por %p164, %p165
    %p167 = scmp.ne.s32.totalorder %s158, %s159
    %p168 = scmp.eq.s32.totalorder %s33, 0
    %p169 = por %p167, %p168
    %p170 = scmp.ne.s32.totalorder %s158, %s159
    %p171 = scmp.eq.s32.totalorder %s34, 1
    %p172 = por %p170, %p171
    %p174 = scmp.ne.s32.totalorder %s159, %s173
    %p175 = scmp.eq.s32.totalorder %s34, 0
    %p176 = por %p174, %p175
    %s178 = sadd.s32 %s177, 1
    %p181 = scmp.eq.s32.totalorder %s28, 1
    %p182 = scmp.ne.s32.totalorder %s177, %s179
    %p183 = scmp.eq.s32.totalorder %s28, 0
    %p184 = por %p182, %p183
    %p185 = scmp.ne.s32.totalorder %s177, %s179
    %p186 = scmp.eq.s32.totalorder %s33, 1
    %p187 = por %p185, %p186
    %p188 = scmp.ne.s32.totalorder %s179, %s180
    %p189 = scmp.eq.s32.totalorder %s33, 0
    %p190 = por %p188, %p189
    %p191 = scmp.ne.s32.totalorder %s179, %s180
    %p192 = scmp.eq.s32.totalorder %s34, 1
    %p193 = por %p191, %p192
    %p195 = scmp.ne.s32.totalorder %s180, %s194
    %p196 = scmp.eq.s32.totalorder %s34, 0
    %p197 = por %p195, %p196
    %s199 = sadd.s32 %s198, 1
    %p202 = scmp.eq.s32.totalorder %s28, 1
    %p203 = scmp.ne.s32.totalorder %s198, %s200
    %p204 = scmp.eq.s32.totalorder %s28, 0
    %p205 = por %p203, %p204
    %p206 = scmp.ne.s32.totalorder %s198, %s200
    %p207 = scmp.eq.s32.totalorder %s33, 1
    %p208 = por %p206, %p207
    %p209 = scmp.ne.s32.totalorder %s200, %s201
    %p210 = scmp.eq.s32.totalorder %s33, 0
    %p211 = por %p209, %p210
    %p212 = scmp.ne.s32.totalorder %s200, %s201
    %p213 = scmp.eq.s32.totalorder %s34, 1
    %p214 = por %p212, %p213
    %p216 = scmp.ne.s32.totalorder %s201, %s215
    %p217 = scmp.eq.s32.totalorder %s34, 0
    %p218 = por %p216, %p217
    %s220 = sadd.s32 %s219, 1
    %p223 = scmp.eq.s32.totalorder %s28, 1
    %p224 = scmp.ne.s32.totalorder %s219, %s221
    %p225 = scmp.eq.s32.totalorder %s28, 0
    %p226 = por %p224, %p225
    %p227 = scmp.ne.s32.totalorder %s219, %s221
    %p228 = scmp.eq.s32.totalorder %s33, 1
    %p229 = por %p227, %p228
    %p230 = scmp.ne.s32.totalorder %s221, %s222
    %p231 = scmp.eq.s32.totalorder %s33, 0
    %p232 = por %p230, %p231
    %p233 = scmp.ne.s32.totalorder %s221, %s222
    %p234 = scmp.eq.s32.totalorder %s34, 1
    %p235 = por %p233, %p234
    %p237 = scmp.ne.s32.totalorder %s222, %s236
    %p238 = scmp.eq.s32.totalorder %s34, 0
    %p239 = por %p237, %p238
    %s241 = sadd.s32 %s240, 1
    %p244 = scmp.eq.s32.totalorder %s28, 1
    %p245 = scmp.ne.s32.totalorder %s240, %s242
    %p246 = scmp.eq.s32.totalorder %s28, 0
    %p247 = por %p245, %p246
    %p248 = scmp.ne.s32.totalorder %s240, %s242
    %p249 = scmp.eq.s32.totalorder %s33, 1
    %p250 = por %p248, %p249
    %p251 = scmp.ne.s32.totalorder %s242, %s243
    %p252 = scmp.eq.s32.totalorder %s33, 0
    %p253 = por %p251, %p252
    %p254 = scmp.ne.s32.totalorder %s242, %s243
    %p255 = scmp.eq.s32.totalorder %s34, 1
    %p256 = por %p254, %p255
    %p258 = scmp.ne.s32.totalorder %s243, %s257
    %p259 = scmp.eq.s32.totalorder %s34, 0
    %p260 = por %p258, %p259
    %s262 = sadd.s32 %s261, 1
    %p265 = scmp.eq.s32.totalorder %s28, 1
    %p266 = scmp.ne.s32.totalorder %s261, %s263
    %p267 = scmp.eq.s32.totalorder %s28, 0
    %p268 = por %p266, %p267
    %p269 = scmp.ne.s32.totalorder %s261, %s263
    %p270 = scmp.eq.s32.totalorder %s33, 1
    %p271 = por %p269, %p270
    %p272 = scmp.ne.s32.totalorder %s263, %s264
    %p273 = scmp.eq.s32.totalorder %s33, 0
    %p274 = por %p272, %p273
    %p275 = scmp.ne.s32.totalorder %s263, %s264
    %p276 = scmp.eq.s32.totalorder %s34, 1
    %p277 = por %p275, %p276
    %p279 = scmp.ne.s32.totalorder %s264, %s278
    %p280 = scmp.eq.s32.totalorder %s34, 0
    %p281 = por %p279, %p280
    %s283 = sadd.s32 %s282, 1
    %p286 = scmp.eq.s32.totalorder %s28, 1
    %p287 = scmp.ne.s32.totalorder %s282, %s284
    %p288 = scmp.eq.s32.totalorder %s28, 0
    %p289 = por %p287, %p288
    %p290 = scmp.ne.s32.totalorder %s282, %s284
    %p291 = scmp.eq.s32.totalorder %s33, 1
    %p292 = por %p290, %p291
    %p293 = scmp.ne.s32.totalorder %s284, %s285
    %p294 = scmp.eq.s32.totalorder %s33, 0
    %p295 = por %p293, %p294
    %p296 = scmp.ne.s32.totalorder %s284, %s285
    %p297 = scmp.eq.s32.totalorder %s34, 1
    %p298 = por %p296, %p297
    %p300 = scmp.ne.s32.totalorder %s285, %s299
    %p301 = scmp.eq.s32.totalorder %s34, 0
    %p302 = por %p300, %p301
    %s304 = sadd.s32 %s303, 1
    %p307 = scmp.eq.s32.totalorder %s28, 1
    %p308 = scmp.ne.s32.totalorder %s303, %s305
    %p309 = scmp.eq.s32.totalorder %s28, 0
    %p310 = por %p308, %p309
    %p311 = scmp.ne.s32.totalorder %s303, %s305
    %p312 = scmp.eq.s32.totalorder %s33, 1
    %p313 = por %p311, %p312
    %p314 = scmp.ne.s32.totalorder %s305, %s306
    %p315 = scmp.eq.s32.totalorder %s33, 0
    %p316 = por %p314, %p315
    %p317 = scmp.ne.s32.totalorder %s305, %s306
    %p318 = scmp.eq.s32.totalorder %s34, 1
    %p319 = por %p317, %p318
    %p321 = scmp.ne.s32.totalorder %s306, %s320
    %p322 = scmp.eq.s32.totalorder %s34, 0
    %p323 = por %p321, %p322
    %s325 = sadd.s32 %s324, 1
    %p328 = scmp.eq.s32.totalorder %s28, 1
    %p329 = scmp.ne.s32.totalorder %s324, %s326
    %p330 = scmp.eq.s32.totalorder %s28, 0
    %p331 = por %p329, %p330
    %p332 = scmp.ne.s32.totalorder %s324, %s326
    %p333 = scmp.eq.s32.totalorder %s33, 1
    %p334 = por %p332, %p333
    %p335 = scmp.ne.s32.totalorder %s326, %s327
    %p336 = scmp.eq.s32.totalorder %s33, 0
    %p337 = por %p335, %p336
    %p338 = scmp.ne.s32.totalorder %s326, %s327
    %p339 = scmp.eq.s32.totalorder %s34, 1
    %p340 = por %p338, %p339
    %p342 = scmp.ne.s32.totalorder %s327, %s341
    %p343 = scmp.eq.s32.totalorder %s34, 0
    %p344 = por %p342, %p343
    %s346 = sadd.s32 %s345, 1
    %p349 = scmp.eq.s32.totalorder %s28, 1
    %p350 = scmp.ne.s32.totalorder %s345, %s347
    %p351 = scmp.eq.s32.totalorder %s28, 0
    %p352 = por %p350, %p351
    %p353 = scmp.ne.s32.totalorder %s345, %s347
    %p354 = scmp.eq.s32.totalorder %s33, 1
    %p355 = por %p353, %p354
    %p356 = scmp.ne.s32.totalorder %s347, %s348
    %p357 = scmp.eq.s32.totalorder %s33, 0
    %p358 = por %p356, %p357
    %p359 = scmp.ne.s32.totalorder %s347, %s348
    %p360 = scmp.eq.s32.totalorder %s34, 1
    %p361 = por %p359, %p360
    %p363 = scmp.ne.s32.totalorder %s348, %s362
    %p364 = scmp.eq.s32.totalorder %s34, 0
    %p365 = por %p363, %p364
    %s367 = sadd.s32 %s366, 1
    %p370 = scmp.eq.s32.totalorder %s28, 1
    %p371 = scmp.ne.s32.totalorder %s366, %s368
    %p372 = scmp.eq.s32.totalorder %s28, 0
    %p373 = por %p371, %p372
    %p374 = scmp.ne.s32.totalorder %s366, %s368
    %p375 = scmp.eq.s32.totalorder %s33, 1
    %p376 = por %p374, %p375
    %p377 = scmp.ne.s32.totalorder %s368, %s369
    %p378 = scmp.eq.s32.totalorder %s33, 0
    %p379 = por %p377, %p378
    %p380 = scmp.ne.s32.totalorder %s368, %s369
    %p381 = scmp.eq.s32.totalorder %s34, 1
    %p382 = por %p380, %p381
    %p384 = scmp.ne.s32.totalorder %s369, %s383
    %p385 = scmp.eq.s32.totalorder %s34, 0
    %p386 = por %p384, %p385
    %s388 = sadd.s32 %s387, 1
    %p391 = scmp.eq.s32.totalorder %s28, 1
    %p392 = scmp.ne.s32.totalorder %s387, %s389
    %p393 = scmp.eq.s32.totalorder %s28, 0
    %p394 = por %p392, %p393
    %p395 = scmp.ne.s32.totalorder %s387, %s389
    %p396 = scmp.eq.s32.totalorder %s33, 1
    %p397 = por %p395, %p396
    %p398 = scmp.ne.s32.totalorder %s389, %s390
    %p399 = scmp.eq.s32.totalorder %s33, 0
    %p400 = por %p398, %p399
    %p401 = scmp.ne.s32.totalorder %s389, %s390
    %p402 = scmp.eq.s32.totalorder %s34, 1
    %p403 = por %p401, %p402
    %p405 = scmp.ne.s32.totalorder %s390, %s404
    %p406 = scmp.eq.s32.totalorder %s34, 0
    %p407 = por %p405, %p406
    %s409 = sadd.s32 %s408, 1
    %p412 = scmp.eq.s32.totalorder %s28, 1
    %p413 = scmp.ne.s32.totalorder %s408, %s410
    %p414 = scmp.eq.s32.totalorder %s28, 0
    %p415 = por %p413, %p414
    %p416 = scmp.ne.s32.totalorder %s408, %s410
    %p417 = scmp.eq.s32.totalorder %s33, 1
    %p418 = por %p416, %p417
    %p419 = scmp.ne.s32.totalorder %s410, %s411
    %p420 = scmp.eq.s32.totalorder %s33, 0
    %p421 = por %p419, %p420
    %p422 = scmp.ne.s32.totalorder %s410, %s411
    %p423 = scmp.eq.s32.totalorder %s34, 1
    %p424 = por %p422, %p423
    %p426 = scmp.ne.s32.totalorder %s411, %s425
    %p427 = scmp.eq.s32.totalorder %s34, 0
    %p428 = por %p426, %p427
    %s430 = sadd.s32 %s429, 1
    %p433 = scmp.eq.s32.totalorder %s28, 1
    %p434 = scmp.ne.s32.totalorder %s429, %s431
    %p435 = scmp.eq.s32.totalorder %s28, 0
    %p436 = por %p434, %p435
    %p437 = scmp.ne.s32.totalorder %s429, %s431
    %p438 = scmp.eq.s32.totalorder %s33, 1
    %p439 = por %p437, %p438
    %p440 = scmp.ne.s32.totalorder %s431, %s432
    %p441 = scmp.eq.s32.totalorder %s33, 0
    %p442 = por %p440, %p441
    %p443 = scmp.ne.s32.totalorder %s431, %s432
    %p444 = scmp.eq.s32.totalorder %s34, 1
    %p445 = por %p443, %p444
    %p447 = scmp.ne.s32.totalorder %s432, %s446
    %p448 = scmp.eq.s32.totalorder %s34, 0
    %p449 = por %p447, %p448
    %s451 = sadd.s32 %s450, 1
    %p454 = scmp.eq.s32.totalorder %s28, 1
    %p455 = scmp.ne.s32.totalorder %s450, %s452
    %p456 = scmp.eq.s32.totalorder %s28, 0
    %p457 = por %p455, %p456
    %p458 = scmp.ne.s32.totalorder %s450, %s452
    %p459 = scmp.eq.s32.totalorder %s33, 1
    %p460 = por %p458, %p459
    %p461 = scmp.ne.s32.totalorder %s452, %s453
    %p462 = scmp.eq.s32.totalorder %s33, 0
    %p463 = por %p461, %p462
    %p464 = scmp.ne.s32.totalorder %s452, %s453
    %p465 = scmp.eq.s32.totalorder %s34, 1
    %p466 = por %p464, %p465
    %p468 = scmp.ne.s32.totalorder %s453, %s467
    %p469 = scmp.eq.s32.totalorder %s34, 0
    %p470 = por %p468, %p469
    %s472 = sadd.s32 %s471, 1
    %p475 = scmp.eq.s32.totalorder %s28, 1
    %p476 = scmp.ne.s32.totalorder %s471, %s473
    %p477 = scmp.eq.s32.totalorder %s28, 0
    %p478 = por %p476, %p477
    %p479 = scmp.ne.s32.totalorder %s471, %s473
    %p480 = scmp.eq.s32.totalorder %s33, 1
    %p481 = por %p479, %p480
    %p482 = scmp.ne.s32.totalorder %s473, %s474
    %p483 = scmp.eq.s32.totalorder %s33, 0
    %p484 = por %p482, %p483
    %p485 = scmp.ne.s32.totalorder %s473, %s474
    %p486 = scmp.eq.s32.totalorder %s34, 1
    %p487 = por %p485, %p486
    %p489 = scmp.ne.s32.totalorder %s474, %s488
    %p490 = scmp.eq.s32.totalorder %s34, 0
    %p491 = por %p489, %p490
    %s493 = sadd.s32 %s492, 1
    %p496 = scmp.eq.s32.totalorder %s28, 1
    %p497 = scmp.ne.s32.totalorder %s492, %s494
    %p498 = scmp.eq.s32.totalorder %s28, 0
    %p499 = por %p497, %p498
    %p500 = scmp.ne.s32.totalorder %s492, %s494
    %p501 = scmp.eq.s32.totalorder %s33, 1
    %p502 = por %p500, %p501
    %p503 = scmp.ne.s32.totalorder %s494, %s495
    %p504 = scmp.eq.s32.totalorder %s33, 0
    %p505 = por %p503, %p504
    %p506 = scmp.ne.s32.totalorder %s494, %s495
    %p507 = scmp.eq.s32.totalorder %s34, 1
    %p508 = por %p506, %p507
    %p510 = scmp.ne.s32.totalorder %s495, %s509
    %p511 = scmp.eq.s32.totalorder %s34, 0
    %p512 = por %p510, %p511
    %s513 = ssub.s32 %s28, %s35
    %p514 = scmp.eq.s32.totalorder %s513, 0
    %s516 = sadd.s32 %s515, 1
    %s517 = scalar_select %p514, %s515, %s516
    %p520 = pneg %p514
    %p521 = scmp.eq.s32.totalorder %s28, 1
    %p522 = por %p520, %p521
    %p523 = scmp.ne.s32.totalorder %s515, %s518
    %p524 = scmp.eq.s32.totalorder %s28, 0
    %p525 = por %p523, %p524
    %p526 = scmp.ne.s32.totalorder %s515, %s518
    %p527 = scmp.eq.s32.totalorder %s33, 1
    %p528 = por %p526, %p527
    %p529 = scmp.ne.s32.totalorder %s518, %s519
    %p530 = scmp.eq.s32.totalorder %s33, 0
    %p531 = por %p529, %p530
    %p532 = scmp.ne.s32.totalorder %s518, %s519
    %p533 = scmp.eq.s32.totalorder %s34, 1
    %p534 = por %p532, %p533
    %p536 = scmp.ne.s32.totalorder %s519, %s535
    %p537 = scmp.eq.s32.totalorder %s34, 0
    %p538 = por %p536, %p537
    %p539 = scmp.le.s32.totalorder 1, %s28
    %p540 = scmp.lt.s32.totalorder %s28, 3
    %p541 = pnand %p539, %p540
    %p542 = pneg %p541
    // Predicated region
    $region9: #{_forward_jit.1} parent=5 // pred_check
      _
    $region10: #{_forward_jit.1} parent=5 // pred_check_branch
      %544 = sbr.rel (%p541) target = $region12
    $region11: #{_forward_jit.1} parent=5 // pred_region
      %s545 = ssub.s32 %s28, 1
      // Predicated region
      $region13: #{_forward_jit.1} parent=11 // pred_check
        %p546 = pneg %p127
      $region14: #{_forward_jit.1} parent=11 // pred_check_branch
        %548 = sbr.rel (%p546) target = $region16
      $region15: #{_forward_jit.1} parent=11 // pred_region
        _
      $region16: #{_forward_jit.1} parent=11 // pred_fallthru
        _
      // Predicated region
      $region17: #{_forward_jit.1} parent=11 // pred_check
        %p549 = pneg %p148
      $region18: #{_forward_jit.1} parent=11 // pred_check_branch
        %551 = sbr.rel (%p549) target = $region20
      $region19: #{_forward_jit.1} parent=11 // pred_region
        _
      $region20: #{_forward_jit.1} parent=11 // pred_fallthru
        _
      // Predicated region
      $region21: #{_forward_jit.1} parent=11 // pred_check
        %p552 = pneg %p169
      $region22: #{_forward_jit.1} parent=11 // pred_check_branch
        %554 = sbr.rel (%p552) target = $region24
      $region23: #{_forward_jit.1} parent=11 // pred_region
        _
      $region24: #{_forward_jit.1} parent=11 // pred_fallthru
        _
      // Predicated region
      $region25: #{_forward_jit.1} parent=11 // pred_check
        %p555 = pneg %p190
      $region26: #{_forward_jit.1} parent=11 // pred_check_branch
        %557 = sbr.rel (%p555) target = $region28
      $region27: #{_forward_jit.1} parent=11 // pred_region
        _
      $region28: #{_forward_jit.1} parent=11 // pred_fallthru
        _
      // Predicated region
      $region29: #{_forward_jit.1} parent=11 // pred_check
        %p558 = pneg %p211
      $region30: #{_forward_jit.1} parent=11 // pred_check_branch
        %560 = sbr.rel (%p558) target = $region32
      $region31: #{_forward_jit.1} parent=11 // pred_region
        _
      $region32: #{_forward_jit.1} parent=11 // pred_fallthru
        _
      // Predicated region
      $region33: #{_forward_jit.1} parent=11 // pred_check
        %p561 = pneg %p232
      $region34: #{_forward_jit.1} parent=11 // pred_check_branch
        %563 = sbr.rel (%p561) target = $region36
      $region35: #{_forward_jit.1} parent=11 // pred_region
        _
      $region36: #{_forward_jit.1} parent=11 // pred_fallthru
        _
      // Predicated region
      $region37: #{_forward_jit.1} parent=11 // pred_check
        %p564 = pneg %p253
      $region38: #{_forward_jit.1} parent=11 // pred_check_branch
        %566 = sbr.rel (%p564) target = $region40
      $region39: #{_forward_jit.1} parent=11 // pred_region
        _
      $region40: #{_forward_jit.1} parent=11 // pred_fallthru
        _
      // Predicated region
      $region41: #{_forward_jit.1} parent=11 // pred_check
        %p567 = pneg %p274
      $region42: #{_forward_jit.1} parent=11 // pred_check_branch
        %569 = sbr.rel (%p567) target = $region44
      $region43: #{_forward_jit.1} parent=11 // pred_region
        _
      $region44: #{_forward_jit.1} parent=11 // pred_fallthru
        _
      // Predicated region
      $region45: #{_forward_jit.1} parent=11 // pred_check
        %p570 = pneg %p295
      $region46: #{_forward_jit.1} parent=11 // pred_check_branch
        %572 = sbr.rel (%p570) target = $region48
      $region47: #{_forward_jit.1} parent=11 // pred_region
        _
      $region48: #{_forward_jit.1} parent=11 // pred_fallthru
        _
      // Predicated region
      $region49: #{_forward_jit.1} parent=11 // pred_check
        %p573 = pneg %p316
      $region50: #{_forward_jit.1} parent=11 // pred_check_branch
        %575 = sbr.rel (%p573) target = $region52
      $region51: #{_forward_jit.1} parent=11 // pred_region
        _
      $region52: #{_forward_jit.1} parent=11 // pred_fallthru
        _
      // Predicated region
      $region53: #{_forward_jit.1} parent=11 // pred_check
        %p576 = pneg %p337
      $region54: #{_forward_jit.1} parent=11 // pred_check_branch
        %578 = sbr.rel (%p576) target = $region56
      $region55: #{_forward_jit.1} parent=11 // pred_region
        _
      $region56: #{_forward_jit.1} parent=11 // pred_fallthru
        _
      // Predicated region
      $region57: #{_forward_jit.1} parent=11 // pred_check
        %p579 = pneg %p358
      $region58: #{_forward_jit.1} parent=11 // pred_check_branch
        %581 = sbr.rel (%p579) target = $region60
      $region59: #{_forward_jit.1} parent=11 // pred_region
        _
      $region60: #{_forward_jit.1} parent=11 // pred_fallthru
        _
      // Predicated region
      $region61: #{_forward_jit.1} parent=11 // pred_check
        %p582 = pneg %p379
      $region62: #{_forward_jit.1} parent=11 // pred_check_branch
        %584 = sbr.rel (%p582) target = $region64
      $region63: #{_forward_jit.1} parent=11 // pred_region
        _
      $region64: #{_forward_jit.1} parent=11 // pred_fallthru
        _
      // Predicated region
      $region65: #{_forward_jit.1} parent=11 // pred_check
        %p585 = pneg %p400
      $region66: #{_forward_jit.1} parent=11 // pred_check_branch
        %587 = sbr.rel (%p585) target = $region68
      $region67: #{_forward_jit.1} parent=11 // pred_region
        _
      $region68: #{_forward_jit.1} parent=11 // pred_fallthru
        _
      // Predicated region
      $region69: #{_forward_jit.1} parent=11 // pred_check
        %p588 = pneg %p421
      $region70: #{_forward_jit.1} parent=11 // pred_check_branch
        %590 = sbr.rel (%p588) target = $region72
      $region71: #{_forward_jit.1} parent=11 // pred_region
        _
      $region72: #{_forward_jit.1} parent=11 // pred_fallthru
        _
      // Predicated region
      $region73: #{_forward_jit.1} parent=11 // pred_check
        %p591 = pneg %p442
      $region74: #{_forward_jit.1} parent=11 // pred_check_branch
        %593 = sbr.rel (%p591) target = $region76
      $region75: #{_forward_jit.1} parent=11 // pred_region
        _
      $region76: #{_forward_jit.1} parent=11 // pred_fallthru
        _
      // Predicated region
      $region77: #{_forward_jit.1} parent=11 // pred_check
        %p594 = pneg %p463
      $region78: #{_forward_jit.1} parent=11 // pred_check_branch
        %596 = sbr.rel (%p594) target = $region80
      $region79: #{_forward_jit.1} parent=11 // pred_region
        _
      $region80: #{_forward_jit.1} parent=11 // pred_fallthru
        _
      // Predicated region
      $region81: #{_forward_jit.1} parent=11 // pred_check
        %p597 = pneg %p484
      $region82: #{_forward_jit.1} parent=11 // pred_check_branch
        %599 = sbr.rel (%p597) target = $region84
      $region83: #{_forward_jit.1} parent=11 // pred_region
        _
      $region84: #{_forward_jit.1} parent=11 // pred_fallthru
        _
      // Predicated region
      $region85: #{_forward_jit.1} parent=11 // pred_check
        %p600 = pneg %p505
      $region86: #{_forward_jit.1} parent=11 // pred_check_branch
        %602 = sbr.rel (%p600) target = $region88
      $region87: #{_forward_jit.1} parent=11 // pred_region
        _
      $region88: #{_forward_jit.1} parent=11 // pred_fallthru
        _
    $region12: #{_forward_jit.1} parent=5 // pred_fallthru
      _
    %p603 = scmp.lt.s32.totalorder %s28, 2
    // Predicated region
    $region89: #{_forward_jit.1} parent=5 // pred_check
      %p604 = pneg %p603
    $region90: #{_forward_jit.1} parent=5 // pred_check_branch
      %606 = sbr.rel (%p604) target = $region92
    $region91: #{_forward_jit.1} parent=5 // pred_region
      // Predicated region
      $region93: #{_forward_jit.1} parent=91 // pred_check
        %p607 = pneg %p48
      $region94: #{_forward_jit.1} parent=91 // pred_check_branch
        %609 = sbr.rel (%p607) target = $region96
      $region95: #{_forward_jit.1} parent=91 // pred_region
        %p610 = scmp.lt.s32.totalorder %s28, 1
        %s611 = scalar_select %p610, %s28, 1
        %s612 = smul.addr %s611, 8
        %s613 = scalar_lea.vmem %s0, %s612
      $region96: #{_forward_jit.1} parent=91 // pred_fallthru
        _
      // Predicated region
      $region97: #{_forward_jit.1} parent=91 // pred_check
        %p614 = pneg %p74
      $region98: #{_forward_jit.1} parent=91 // pred_check_branch
        %616 = sbr.rel (%p614) target = $region100
      $region99: #{_forward_jit.1} parent=91 // pred_region
        %p617 = scmp.lt.s32.totalorder %s28, 1
        %s618 = scalar_select %p617, %s28, 1
        %s619 = smul.addr %s618, 8
        %s620 = scalar_lea.vmem %s1, %s619
      $region100: #{_forward_jit.1} parent=91 // pred_fallthru
        _
      // Predicated region
      $region101: #{_forward_jit.1} parent=91 // pred_check
        %p621 = pneg %p100
      $region102: #{_forward_jit.1} parent=91 // pred_check_branch
        %623 = sbr.rel (%p621) target = $region104
      $region103: #{_forward_jit.1} parent=91 // pred_region
        %p624 = scmp.lt.s32.totalorder %s28, 1
        %s625 = scalar_select %p624, %s28, 1
        %s626 = smul.addr %s625, 8
        %s627 = scalar_lea.vmem %s2, %s626
      $region104: #{_forward_jit.1} parent=91 // pred_fallthru
        _
    $region92: #{_forward_jit.1} parent=5 // pred_fallthru
      _
    %p628 = scmp.le.s32.totalorder 1, %s28
    %p629 = scmp.lt.s32.totalorder %s28, 3
    %p630 = pnand %p628, %p629
    %p631 = pneg %p630
    // Predicated region
    $region105: #{_forward_jit.1} parent=5 // pred_check
      _
    $region106: #{_forward_jit.1} parent=5 // pred_check_branch
      %633 = sbr.rel (%p630) target = $region108
    $region107: #{_forward_jit.1} parent=5 // pred_region
      %s634 = ssub.s32 %s28, 1
      %p635 = scmp.lt.s32.totalorder %s33, 1
      %s636 = scalar_select %p635, %s33, 1
      %s637 = smul.addr %s636, 8
      %s638 = scalar_lea.vmem %s0, %s637
      %p639 = pneg %p54
      %p640 = pneg %p51
      %p641 = scmp.lt.s32.totalorder %s33, 1
      %s642 = scalar_select %p641, %s33, 1
      %s643 = smul.addr %s642, 8
      %s644 = scalar_lea.vmem %s1, %s643
      %p645 = pneg %p80
      %p646 = pneg %p77
      %p647 = scmp.lt.s32.totalorder %s33, 1
      %s648 = scalar_select %p647, %s33, 1
      %s649 = smul.addr %s648, 8
      %s650 = scalar_lea.vmem %s2, %s649
      %p651 = pneg %p106
      %p652 = pneg %p103
      %p653 = pneg %p127
      %p654 = pneg %p124
      %p655 = pneg %p148
      %p656 = pneg %p145
      %p657 = pneg %p169
      %p658 = pneg %p166
      %p659 = pneg %p190
      %p660 = pneg %p187
      %p661 = pneg %p211
      %p662 = pneg %p208
      %p663 = pneg %p232
      %p664 = pneg %p229
      %p665 = pneg %p253
      %p666 = pneg %p250
      %p667 = pneg %p274
      %p668 = pneg %p271
      %p669 = pneg %p295
      %p670 = pneg %p292
      %p671 = pneg %p316
      %p672 = pneg %p313
      %p673 = pneg %p337
      %p674 = pneg %p334
      %p675 = pneg %p358
      %p676 = pneg %p355
      %p677 = pneg %p379
      %p678 = pneg %p376
      %p679 = pneg %p400
      %p680 = pneg %p397
      %p681 = pneg %p421
      %p682 = pneg %p418
      %p683 = pneg %p442
      %p684 = pneg %p439
      %p685 = pneg %p463
      %p686 = pneg %p460
      %p687 = pneg %p484
      %p688 = pneg %p481
      %p689 = pneg %p505
      %p690 = pneg %p502
      %p691 = pneg %p531
      %p692 = pneg %p528
      %p693 = scmp.lt.s32.totalorder %s33, 1
      %s694 = scalar_select %p693, %s33, 1
      %s695 = smul.addr %s694, 5
      %s696 = smul.addr %s695, 8
      %s697 = scalar_lea.vmem %s22, %s696
      %p698 = scmp.lt.s32.totalorder %s33, 1
      %s699 = scalar_select %p698, %s33, 1
      %s700 = smul.addr %s699, 8
      %s701 = scalar_lea.vmem %s0, %s700
      %p702 = scmp.lt.s32.totalorder %s33, 1
      %s703 = scalar_select %p702, %s33, 1
      %s704 = smul.addr %s703, 8
      %s705 = scalar_lea.vmem %s1, %s704
      %p706 = scmp.lt.s32.totalorder %s33, 1
      %s707 = scalar_select %p706, %s33, 1
      %s708 = smul.addr %s707, 8
      %s709 = scalar_lea.vmem %s2, %s708
      %p710 = scmp.lt.s32.totalorder %s33, 1
      %s711 = scalar_select %p710, %s33, 1
      %s712 = smul.addr %s711, 5
      %s713 = smul.addr %s712, 8
      %s714 = scalar_lea.vmem %s22, %s713
      %v715 = vld [vmem:[%s8] sm:$0xff]
      %v716 = vld [vmem:[%s7] sm:$0xff]
      %v717 = vld [vmem:[%s9] sm:$0xff]
      %v718 = vld [vmem:[%s9 + $0x8] sm:$0xff]
      %vm719 = vcmask 130048
      %v721 = vsel %vm719, %v716, 0
      %723 = vmatprep.subr.mxu0 0.0
      %724 = vmatpush1.msra.mxu0 0.0
      %725 = vmatprep.subr.mxu0 0.0
      %726 = vmatpush1.msra.mxu0 0.0
      %727 = vmatprep.subr.mxu0 0.0
      %728 = vmatpush1.msra.mxu0 0.0
      %729 = vmatprep.subr.mxu0 0.0
      %730 = vmatpush1.msra.mxu0 0.0
      %731 = vmatprep.subr.mxu0 0.0
      %732 = vmatpush1.msra.mxu0 0.0
      %733 = vmatprep.subr.mxu0 0.0
      %734 = vmatpush1.msra.mxu0 0.0
      %735 = vmatprep.subr.mxu0 0.0
      %736 = vmatpush1.msra.mxu0 0.0
      %737 = vmatprep.subr.mxu0 0.0
      %738 = vmatpush1.msra.mxu0 0.0
      %739 = vmatprep.subr.mxu0 0.0
      %740 = vmatpush1.msra.mxu0 0.0
      %741 = vmatprep.subr.mxu0 0.0
      %742 = vmatpush1.msra.mxu0 0.0
      %743 = vmatprep.subr.mxu0 0.0
      %744 = vmatpush1.msra.mxu0 0.0
      %745 = vmatprep.subr.mxu0 0.0
      %746 = vmatpush1.msra.mxu0 0.0
      %747 = vmatprep.subr.mxu0 0.0
      %748 = vmatpush1.msra.mxu0 0.0
      %749 = vmatprep.subr.mxu0 0.0
      %750 = vmatpush1.msra.mxu0 0.0
      %751 = vmatprep.subr.mxu0 0.0
      %752 = vmatpush1.msra.mxu0 %v718
      %753 = vmatprep.subr.mxu0 0.0
      %754 = vmatpush1.msra.mxu0 %v717
      %755 = vmatprep.subr.mxu0 0.0
      %756 = vmatpush2.msra.mxu0 0.0
      %757 = vmatprep.subr.mxu0 0.0
      %758 = vmatpush2.msra.mxu0 0.0
      %759 = vmatprep.subr.mxu0 0.0
      %760 = vmatpush2.msra.mxu0 0.0
      %761 = vmatprep.subr.mxu0 0.0
      %762 = vmatpush2.msra.mxu0 0.0
      %763 = vmatprep.subr.mxu0 0.0
      %764 = vmatpush2.msra.mxu0 0.0
      %765 = vmatprep.subr.mxu0 0.0
      %766 = vmatpush2.msra.mxu0 0.0
      %767 = vmatprep.subr.mxu0 0.0
      %768 = vmatpush2.msra.mxu0 0.0
      %769 = vmatprep.subr.mxu0 0.0
      %770 = vmatpush2.msra.mxu0 0.0
      %771 = vmatprep.subr.mxu0 0.0
      %772 = vmatpush2.msra.mxu0 0.0
      %773 = vmatprep.subr.mxu0 0.0
      %774 = vmatpush2.msra.mxu0 0.0
      %775 = vmatprep.subr.mxu0 0.0
      %776 = vmatpush2.msra.mxu0 0.0
      %777 = vmatprep.subr.mxu0 0.0
      %778 = vmatpush2.msra.mxu0 0.0
      %779 = vmatprep.subr.mxu0 0.0
      %780 = vmatpush2.msra.mxu0 0.0
      %781 = vmatprep.subr.mxu0 0.0
      %782 = vmatpush2.msra.mxu0 0.0
      %783 = vmatprep.subr.mxu0 0.0
      %784 = vmatpush2.msra.mxu0 0.0
      %785 = vmatprep.subr.mxu0 0.0
      %786 = vmatpush2.msra.mxu0 0.0
      %787 = vmatprep.mubr.f32.mxu0 0.0
      %788 = vmatmul.mubr.f32.gmra.mxu0 %v721
      %v789 = vpop.f32.mrf.mxu0
      %v790 = vadd.f32 0.0, %v789
      %v791 = vpop.f32.mrf.mxu0
      %792 = vdwg.mxu0
      %v793 = vld [vmem:[%s10] sm:$0xff]
      %v794 = vld [vmem:[%s10 + $0x8] sm:$0xff]
      %v796 = vsel %vm719, %v790, 0
      %798 = vmatprep.subr.mxu0 0.0
      %799 = vmatpush1.msra.mxu0 0.0
      %800 = vmatprep.subr.mxu0 0.0
      %801 = vmatpush1.msra.mxu0 0.0
      %802 = vmatprep.subr.mxu0 0.0
      %803 = vmatpush1.msra.mxu0 0.0
      %804 = vmatprep.subr.mxu0 0.0
      %805 = vmatpush1.msra.mxu0 0.0
      %806 = vmatprep.subr.mxu0 0.0
      %807 = vmatpush1.msra.mxu0 0.0
      %808 = vmatprep.subr.mxu0 0.0
      %809 = vmatpush1.msra.mxu0 0.0
      %810 = vmatprep.subr.mxu0 0.0
      %811 = vmatpush1.msra.mxu0 0.0
      %812 = vmatprep.subr.mxu0 0.0
      %813 = vmatpush1.msra.mxu0 0.0
      %814 = vmatprep.subr.mxu0 0.0
      %815 = vmatpush1.msra.mxu0 0.0
      %816 = vmatprep.subr.mxu0 0.0
      %817 = vmatpush1.msra.mxu0 0.0
      %818 = vmatprep.subr.mxu0 0.0
      %819 = vmatpush1.msra.mxu0 0.0
      %820 = vmatprep.subr.mxu0 0.0
      %821 = vmatpush1.msra.mxu0 0.0
      %822 = vmatprep.subr.mxu0 0.0
      %823 = vmatpush1.msra.mxu0 0.0
      %824 = vmatprep.subr.mxu0 0.0
      %825 = vmatpush1.msra.mxu0 0.0
      %826 = vmatprep.subr.mxu0 0.0
      %827 = vmatpush1.msra.mxu0 %v794
      %828 = vmatprep.subr.mxu0 0.0
      %829 = vmatpush1.msra.mxu0 %v793
      %830 = vmatprep.subr.mxu0 0.0
      %831 = vmatpush2.msra.mxu0 0.0
      %832 = vmatprep.subr.mxu0 0.0
      %833 = vmatpush2.msra.mxu0 0.0
      %834 = vmatprep.subr.mxu0 0.0
      %835 = vmatpush2.msra.mxu0 0.0
      %836 = vmatprep.subr.mxu0 0.0
      %837 = vmatpush2.msra.mxu0 0.0
      %838 = vmatprep.subr.mxu0 0.0
      %839 = vmatpush2.msra.mxu0 0.0
      %840 = vmatprep.subr.mxu0 0.0
      %841 = vmatpush2.msra.mxu0 0.0
      %842 = vmatprep.subr.mxu0 0.0
      %843 = vmatpush2.msra.mxu0 0.0
      %844 = vmatprep.subr.mxu0 0.0
      %845 = vmatpush2.msra.mxu0 0.0
      %846 = vmatprep.subr.mxu0 0.0
      %847 = vmatpush2.msra.mxu0 0.0
      %848 = vmatprep.subr.mxu0 0.0
      %849 = vmatpush2.msra.mxu0 0.0
      %850 = vmatprep.subr.mxu0 0.0
      %851 = vmatpush2.msra.mxu0 0.0
      %852 = vmatprep.subr.mxu0 0.0
      %853 = vmatpush2.msra.mxu0 0.0
      %854 = vmatprep.subr.mxu0 0.0
      %855 = vmatpush2.msra.mxu0 0.0
      %856 = vmatprep.subr.mxu0 0.0
      %857 = vmatpush2.msra.mxu0 0.0
      %858 = vmatprep.subr.mxu0 0.0
      %859 = vmatpush2.msra.mxu0 0.0
      %860 = vmatprep.subr.mxu0 0.0
      %861 = vmatpush2.msra.mxu0 0.0
      %862 = vmatprep.mubr.f32.mxu0 0.0
      %863 = vmatmul.mubr.f32.gmra.mxu0 %v796
      %v864 = vpop.f32.mrf.mxu0
      %v865 = vadd.f32 0.0, %v864
      %v866 = vpop.f32.mrf.mxu0
      %867 = vdwg.mxu0
      %v868 = vld [vmem:[%s11] sm:$0xff]
      %v869 = vld [vmem:[%s11 + $0x8] sm:$0xff]
      %870 = vxpose.xlu0.b32.start [1/16] %v868, 128
      %871 = vxpose.xlu0.b32.cont [2/16] %v869, 128
      %872 = vxpose.xlu0.b32.cont [3/16] 0.0, 128
      %873 = vxpose.xlu0.b32.cont [4/16] 0.0, 128
      %874 = vxpose.xlu0.b32.cont [5/16] 0.0, 128
      %875 = vxpose.xlu0.b32.cont [6/16] 0.0, 128
      %876 = vxpose.xlu0.b32.cont [7/16] 0.0, 128
      %877 = vxpose.xlu0.b32.cont [8/16] 0.0, 128
      %878 = vxpose.xlu0.b32.cont [9/16] 0.0, 128
      %879 = vxpose.xlu0.b32.cont [10/16] 0.0, 128
      %880 = vxpose.xlu0.b32.cont [11/16] 0.0, 128
      %881 = vxpose.xlu0.b32.cont [12/16] 0.0, 128
      %882 = vxpose.xlu0.b32.cont [13/16] 0.0, 128
      %883 = vxpose.xlu0.b32.cont [14/16] 0.0, 128
      %884 = vxpose.xlu0.b32.cont [15/16] 0.0, 128
      %885 = vxpose.xlu0.b32.end [16/16] 0.0, 128
      %v886 = vpop.trf.xlu0
      %v887 = vpop.trf.xlu0
      %v888 = vpop.trf.xlu0
      %v889 = vpop.trf.xlu0
      %v890 = vpop.trf.xlu0
      %v891 = vpop.trf.xlu0
      %v892 = vpop.trf.xlu0
      %v893 = vpop.trf.xlu0
      %v894 = vpop.trf.xlu0
      %v895 = vpop.trf.xlu0
      %v896 = vpop.trf.xlu0
      %v897 = vpop.trf.xlu0
      %v898 = vpop.trf.xlu0
      %v899 = vpop.trf.xlu0
      %v900 = vpop.trf.xlu0
      %v901 = vpop.trf.xlu0
      %v903 = vsel %vm719, %v886, 0
      %905 = vmatprep.subr.mxu0 0.0
      %906 = vmatpush1.xpose.msra.mxu0 0.0
      %907 = vmatprep.subr.mxu0 0.0
      %908 = vmatpush1.xpose.msra.mxu0 0.0
      %909 = vmatprep.subr.mxu0 0.0
      %910 = vmatpush1.xpose.msra.mxu0 0.0
      %911 = vmatprep.subr.mxu0 0.0
      %912 = vmatpush1.xpose.msra.mxu0 0.0
      %913 = vmatprep.subr.mxu0 0.0
      %914 = vmatpush1.xpose.msra.mxu0 0.0
      %915 = vmatprep.subr.mxu0 0.0
      %916 = vmatpush1.xpose.msra.mxu0 0.0
      %917 = vmatprep.subr.mxu0 0.0
      %918 = vmatpush1.xpose.msra.mxu0 0.0
      %919 = vmatprep.subr.mxu0 0.0
      %920 = vmatpush1.xpose.msra.mxu0 0.0
      %921 = vmatprep.subr.mxu0 0.0
      %922 = vmatpush1.xpose.msra.mxu0 0.0
      %923 = vmatprep.subr.mxu0 0.0
      %924 = vmatpush1.xpose.msra.mxu0 0.0
      %925 = vmatprep.subr.mxu0 0.0
      %926 = vmatpush1.xpose.msra.mxu0 0.0
      %927 = vmatprep.subr.mxu0 0.0
      %928 = vmatpush1.xpose.msra.mxu0 0.0
      %929 = vmatprep.subr.mxu0 0.0
      %930 = vmatpush1.xpose.msra.mxu0 0.0
      %931 = vmatprep.subr.mxu0 0.0
      %932 = vmatpush1.xpose.msra.mxu0 0.0
      %933 = vmatprep.subr.mxu0 0.0
      %934 = vmatpush1.xpose.msra.mxu0 0.0
      %935 = vmatprep.subr.mxu0 0.0
      %936 = vmatpush1.xpose.msra.mxu0 %v796
      %937 = vmatprep.subr.mxu0 0.0
      %938 = vmatpush2.xpose.msra.mxu0 0.0
      %939 = vmatprep.subr.mxu0 0.0
      %940 = vmatpush2.xpose.msra.mxu0 0.0
      %941 = vmatprep.subr.mxu0 0.0
      %942 = vmatpush2.xpose.msra.mxu0 0.0
      %943 = vmatprep.subr.mxu0 0.0
      %944 = vmatpush2.xpose.msra.mxu0 0.0
      %945 = vmatprep.subr.mxu0 0.0
      %946 = vmatpush2.xpose.msra.mxu0 0.0
      %947 = vmatprep.subr.mxu0 0.0
      %948 = vmatpush2.xpose.msra.mxu0 0.0
      %949 = vmatprep.subr.mxu0 0.0
      %950 = vmatpush2.xpose.msra.mxu0 0.0
      %951 = vmatprep.subr.mxu0 0.0
      %952 = vmatpush2.xpose.msra.mxu0 0.0
      %953 = vmatprep.subr.mxu0 0.0
      %954 = vmatpush2.xpose.msra.mxu0 0.0
      %955 = vmatprep.subr.mxu0 0.0
      %956 = vmatpush2.xpose.msra.mxu0 0.0
      %957 = vmatprep.subr.mxu0 0.0
      %958 = vmatpush2.xpose.msra.mxu0 0.0
      %959 = vmatprep.subr.mxu0 0.0
      %960 = vmatpush2.xpose.msra.mxu0 0.0
      %961 = vmatprep.subr.mxu0 0.0
      %962 = vmatpush2.xpose.msra.mxu0 0.0
      %963 = vmatprep.subr.mxu0 0.0
      %964 = vmatpush2.xpose.msra.mxu0 0.0
      %965 = vmatprep.subr.mxu0 0.0
      %966 = vmatpush2.xpose.msra.mxu0 0.0
      %967 = vmatprep.subr.mxu0 0.0
      %968 = vmatpush2.xpose.msra.mxu0 0.0
      %969 = vmatprep.mubr.f32.mxu0 0.0
      %970 = vmatmul.mubr.f32.gmra.mxu0 %v903
      %v971 = vpop.f32.mrf.mxu0
      %v972 = vadd.f32 0.0, %v971
      %v973 = vpop.f32.mrf.mxu0
      %974 = vdwg.mxu0
      %976 = vset.pattern.permute.xlu0 0
      %977 = vperm.xlu0 %976, %v865
      %v978 = vpop.permute.xlu0 %977
      %v980 = vlaneseq
      %v981 = vshrl.u32 %v980, 7
      %v982 = vsub.s32 0, %v981
      %v983 = vrot.slane %v972, %v982
      %v984 = vadd.f32 %v978, %v983
      %vm985 = vcmp.gt.f32.partialorder %v984, 0.0
      %v986 = vmul.f32 %v984, 0.2
      %v987 = vsel %vm985, %v984, %v986
      %vm988 = vcmp.gt.f32.partialorder %v715, 0.0
      %v989 = vsel %vm988, %v987, -9e+15
      %vm990 = vcmask 64512
      %v991 = vsel %vm990, %v989, -inf
      %992 = vmax.xlane.f32.xlu0 %v991
      %v993 = vpop.xlane.xlu0 %992
      %v994 = vsub.f32 %v989, %v993
      %v995 = vmul.f32 %v994, 1.442695
      %v996 = vpow.pop %v995
      %v997 = vsel %vm990, %v996, 0.0
      %998 = vadd.xlane.f32.xlu0 %v997
      %v999 = vpop.xlane.xlu0 %998
      %v1000 = vrcp.pop %v999
      %v1001 = vmul.f32 %v996, %v1000
      %v1003 = vsel %vm990, %v1001, 0
      %1005 = vmatprep.subr.mxu0 0.0
      %1006 = vmatpush1.msra.mxu0 0.0
      %1007 = vmatprep.subr.mxu0 0.0
      %1008 = vmatpush1.msra.mxu0 0.0
      %1009 = vmatprep.subr.mxu0 0.0
      %1010 = vmatpush1.msra.mxu0 0.0
      %1011 = vmatprep.subr.mxu0 0.0
      %1012 = vmatpush1.msra.mxu0 0.0
      %1013 = vmatprep.subr.mxu0 0.0
      %1014 = vmatpush1.msra.mxu0 0.0
      %1015 = vmatprep.subr.mxu0 0.0
      %1016 = vmatpush1.msra.mxu0 0.0
      %1017 = vmatprep.subr.mxu0 0.0
      %1018 = vmatpush1.msra.mxu0 0.0
      %1019 = vmatprep.subr.mxu0 0.0
      %1020 = vmatpush1.msra.mxu0 0.0
      %1021 = vmatprep.subr.mxu0 0.0
      %1022 = vmatpush1.msra.mxu0 0.0
      %1023 = vmatprep.subr.mxu0 0.0
      %1024 = vmatpush1.msra.mxu0 0.0
      %1025 = vmatprep.subr.mxu0 0.0
      %1026 = vmatpush1.msra.mxu0 0.0
      %1027 = vmatprep.subr.mxu0 0.0
      %1028 = vmatpush1.msra.mxu0 0.0
      %1029 = vmatprep.subr.mxu0 0.0
      %1030 = vmatpush1.msra.mxu0 0.0
      %1031 = vmatprep.subr.mxu0 0.0
      %1032 = vmatpush1.msra.mxu0 0.0
      %1033 = vmatprep.subr.mxu0 0.0
      %1034 = vmatpush1.msra.mxu0 0.0
      %1035 = vmatprep.subr.mxu0 0.0
      %1036 = vmatpush1.msra.mxu0 %v790
      %1037 = vmatprep.subr.mxu0 0.0
      %1038 = vmatpush2.msra.mxu0 0.0
      %1039 = vmatprep.subr.mxu0 0.0
      %1040 = vmatpush2.msra.mxu0 0.0
      %1041 = vmatprep.subr.mxu0 0.0
      %1042 = vmatpush2.msra.mxu0 0.0
      %1043 = vmatprep.subr.mxu0 0.0
      %1044 = vmatpush2.msra.mxu0 0.0
      %1045 = vmatprep.subr.mxu0 0.0
      %1046 = vmatpush2.msra.mxu0 0.0
      %1047 = vmatprep.subr.mxu0 0.0
      %1048 = vmatpush2.msra.mxu0 0.0
      %1049 = vmatprep.subr.mxu0 0.0
      %1050 = vmatpush2.msra.mxu0 0.0
      %1051 = vmatprep.subr.mxu0 0.0
      %1052 = vmatpush2.msra.mxu0 0.0
      %1053 = vmatprep.subr.mxu0 0.0
      %1054 = vmatpush2.msra.mxu0 0.0
      %1055 = vmatprep.subr.mxu0 0.0
      %1056 = vmatpush2.msra.mxu0 0.0
      %1057 = vmatprep.subr.mxu0 0.0
      %1058 = vmatpush2.msra.mxu0 0.0
      %1059 = vmatprep.subr.mxu0 0.0
      %1060 = vmatpush2.msra.mxu0 0.0
      %1061 = vmatprep.subr.mxu0 0.0
      %1062 = vmatpush2.msra.mxu0 0.0
      %1063 = vmatprep.subr.mxu0 0.0
      %1064 = vmatpush2.msra.mxu0 0.0
      %1065 = vmatprep.subr.mxu0 0.0
      %1066 = vmatpush2.msra.mxu0 0.0
      %1067 = vmatprep.subr.mxu0 0.0
      %1068 = vmatpush2.msra.mxu0 0.0
      %1069 = vmatprep.mubr.f32.mxu0 0.0
      %1070 = vmatmul.mubr.f32.gmra.mxu0 %v1003
      %v1071 = vpop.f32.mrf.mxu0
      %v1072 = vadd.f32 0.0, %v1071
      %v1073 = vpop.f32.mrf.mxu0
      %1074 = vdwg.mxu0
      %vm1075 = vcmp.gt.f32.partialorder %v1072, 0.0
      %v1076 = vmul.f32 %v1072, 1.442695
      %v1077 = vpow.pop %v1076
      %v1078 = vsub.f32 %v1077, 1.0
      %v1079 = vsel %vm1075, %v1072, %v1078
      %1080 = vset.pattern.permute.xlu0 1
      %1081 = vperm.xlu0 %1080, %v865
      %v1082 = vpop.permute.xlu0 %1081
      %v1084 = vlaneseq
      %v1085 = vshrl.u32 %v1084, 7
      %v1086 = vsub.s32 1, %v1085
      %v1087 = vrot.slane %v972, %v1086
      %v1088 = vadd.f32 %v1082, %v1087
      %vm1089 = vcmp.gt.f32.partialorder %v1088, 0.0
      %v1090 = vmul.f32 %v1088, 0.2
      %v1091 = vsel %vm1089, %v1088, %v1090
      %v1092 = vsel %vm988, %v1091, -9e+15
      %v1093 = vsel %vm990, %v1092, -inf
      %1094 = vmax.xlane.f32.xlu0 %v1093
      %v1095 = vpop.xlane.xlu0 %1094
      %v1096 = vsub.f32 %v1092, %v1095
      %v1097 = vmul.f32 %v1096, 1.442695
      %v1098 = vpow.pop %v1097
      %v1099 = vsel %vm990, %v1098, 0.0
      %1100 = vadd.xlane.f32.xlu0 %v1099
      %v1101 = vpop.xlane.xlu0 %1100
      %v1102 = vrcp.pop %v1101
      %v1103 = vmul.f32 %v1098, %v1102
      %1104 = vrot.lane.b32.xlu0 %v790, 120
      %v1105 = vpop.permute.xlu0 %1104
      %v1108 = vsel %vm990, %v1103, 0
      %1110 = vmatprep.subr.mxu0 0.0
      %1111 = vmatpush1.msra.mxu0 0.0
      %1112 = vmatprep.subr.mxu0 0.0
      %1113 = vmatpush1.msra.mxu0 0.0
      %1114 = vmatprep.subr.mxu0 0.0
      %1115 = vmatpush1.msra.mxu0 0.0
      %1116 = vmatprep.subr.mxu0 0.0
      %1117 = vmatpush1.msra.mxu0 0.0
      %1118 = vmatprep.subr.mxu0 0.0
      %1119 = vmatpush1.msra.mxu0 0.0
      %1120 = vmatprep.subr.mxu0 0.0
      %1121 = vmatpush1.msra.mxu0 0.0
      %1122 = vmatprep.subr.mxu0 0.0
      %1123 = vmatpush1.msra.mxu0 0.0
      %1124 = vmatprep.subr.mxu0 0.0
      %1125 = vmatpush1.msra.mxu0 0.0
      %1126 = vmatprep.subr.mxu0 0.0
      %1127 = vmatpush1.msra.mxu0 0.0
      %1128 = vmatprep.subr.mxu0 0.0
      %1129 = vmatpush1.msra.mxu0 0.0
      %1130 = vmatprep.subr.mxu0 0.0
      %1131 = vmatpush1.msra.mxu0 0.0
      %1132 = vmatprep.subr.mxu0 0.0
      %1133 = vmatpush1.msra.mxu0 0.0
      %1134 = vmatprep.subr.mxu0 0.0
      %1135 = vmatpush1.msra.mxu0 0.0
      %1136 = vmatprep.subr.mxu0 0.0
      %1137 = vmatpush1.msra.mxu0 0.0
      %1138 = vmatprep.subr.mxu0 0.0
      %1139 = vmatpush1.msra.mxu0 0.0
      %1140 = vmatprep.subr.mxu0 0.0
      %1141 = vmatpush1.msra.mxu0 %v1105
      %1142 = vmatprep.subr.mxu0 0.0
      %1143 = vmatpush2.msra.mxu0 0.0
      %1144 = vmatprep.subr.mxu0 0.0
      %1145 = vmatpush2.msra.mxu0 0.0
      %1146 = vmatprep.subr.mxu0 0.0
      %1147 = vmatpush2.msra.mxu0 0.0
      %1148 = vmatprep.subr.mxu0 0.0
      %1149 = vmatpush2.msra.mxu0 0.0
      %1150 = vmatprep.subr.mxu0 0.0
      %1151 = vmatpush2.msra.mxu0 0.0
      %1152 = vmatprep.subr.mxu0 0.0
      %1153 = vmatpush2.msra.mxu0 0.0
      %1154 = vmatprep.subr.mxu0 0.0
      %1155 = vmatpush2.msra.mxu0 0.0
      %1156 = vmatprep.subr.mxu0 0.0
      %1157 = vmatpush2.msra.mxu0 0.0
      %1158 = vmatprep.subr.mxu0 0.0
      %1159 = vmatpush2.msra.mxu0 0.0
      %1160 = vmatprep.subr.mxu0 0.0
      %1161 = vmatpush2.msra.mxu0 0.0
      %1162 = vmatprep.subr.mxu0 0.0
      %1163 = vmatpush2.msra.mxu0 0.0
      %1164 = vmatprep.subr.mxu0 0.0
      %1165 = vmatpush2.msra.mxu0 0.0
      %1166 = vmatprep.subr.mxu0 0.0
      %1167 = vmatpush2.msra.mxu0 0.0
      %1168 = vmatprep.subr.mxu0 0.0
      %1169 = vmatpush2.msra.mxu0 0.0
      %1170 = vmatprep.subr.mxu0 0.0
      %1171 = vmatpush2.msra.mxu0 0.0
      %1172 = vmatprep.subr.mxu0 0.0
      %1173 = vmatpush2.msra.mxu0 0.0
      %1174 = vmatprep.mubr.f32.mxu0 0.0
      %1175 = vmatmul.mubr.f32.gmra.mxu0 %v1108
      %v1176 = vpop.f32.mrf.mxu0
      %v1177 = vadd.f32 0.0, %v1176
      %v1178 = vpop.f32.mrf.mxu0
      %1179 = vdwg.mxu0
      %vm1180 = vcmp.gt.f32.partialorder %v1177, 0.0
      %v1181 = vmul.f32 %v1177, 1.442695
      %v1182 = vpow.pop %v1181
      %v1183 = vsub.f32 %v1182, 1.0
      %v1184 = vsel %vm1180, %v1177, %v1183
      %1186 = vrot.lane.b32.xlu0 %v1184, 8
      %v1187 = vpop.permute.xlu0 %1186
      %v1189 = vsel %vm990, %v1079, %v1187
      %v1190 = vld [vmem:[%s12] sm:$0xff]
      %v1191 = vld [vmem:[%s12 + $0x8] sm:$0xff]
      %v1193 = vsel %vm719, %v1189, 0
      %1195 = vmatprep.subr.mxu0 0.0
      %1196 = vmatpush1.msra.mxu0 0.0
      %1197 = vmatprep.subr.mxu0 0.0
      %1198 = vmatpush1.msra.mxu0 0.0
      %1199 = vmatprep.subr.mxu0 0.0
      %1200 = vmatpush1.msra.mxu0 0.0
      %1201 = vmatprep.subr.mxu0 0.0
      %1202 = vmatpush1.msra.mxu0 0.0
      %1203 = vmatprep.subr.mxu0 0.0
      %1204 = vmatpush1.msra.mxu0 0.0
      %1205 = vmatprep.subr.mxu0 0.0
      %1206 = vmatpush1.msra.mxu0 0.0
      %1207 = vmatprep.subr.mxu0 0.0
      %1208 = vmatpush1.msra.mxu0 0.0
      %1209 = vmatprep.subr.mxu0 0.0
      %1210 = vmatpush1.msra.mxu0 0.0
      %1211 = vmatprep.subr.mxu0 0.0
      %1212 = vmatpush1.msra.mxu0 0.0
      %1213 = vmatprep.subr.mxu0 0.0
      %1214 = vmatpush1.msra.mxu0 0.0
      %1215 = vmatprep.subr.mxu0 0.0
      %1216 = vmatpush1.msra.mxu0 0.0
      %1217 = vmatprep.subr.mxu0 0.0
      %1218 = vmatpush1.msra.mxu0 0.0
      %1219 = vmatprep.subr.mxu0 0.0
      %1220 = vmatpush1.msra.mxu0 0.0
      %1221 = vmatprep.subr.mxu0 0.0
      %1222 = vmatpush1.msra.mxu0 0.0
      %1223 = vmatprep.subr.mxu0 0.0
      %1224 = vmatpush1.msra.mxu0 %v1191
      %1225 = vmatprep.subr.mxu0 0.0
      %1226 = vmatpush1.msra.mxu0 %v1190
      %1227 = vmatprep.subr.mxu0 0.0
      %1228 = vmatpush2.msra.mxu0 0.0
      %1229 = vmatprep.subr.mxu0 0.0
      %1230 = vmatpush2.msra.mxu0 0.0
      %1231 = vmatprep.subr.mxu0 0.0
      %1232 = vmatpush2.msra.mxu0 0.0
      %1233 = vmatprep.subr.mxu0 0.0
      %1234 = vmatpush2.msra.mxu0 0.0
      %1235 = vmatprep.subr.mxu0 0.0
      %1236 = vmatpush2.msra.mxu0 0.0
      %1237 = vmatprep.subr.mxu0 0.0
      %1238 = vmatpush2.msra.mxu0 0.0
      %1239 = vmatprep.subr.mxu0 0.0
      %1240 = vmatpush2.msra.mxu0 0.0
      %1241 = vmatprep.subr.mxu0 0.0
      %1242 = vmatpush2.msra.mxu0 0.0
      %1243 = vmatprep.subr.mxu0 0.0
      %1244 = vmatpush2.msra.mxu0 0.0
      %1245 = vmatprep.subr.mxu0 0.0
      %1246 = vmatpush2.msra.mxu0 0.0
      %1247 = vmatprep.subr.mxu0 0.0
      %1248 = vmatpush2.msra.mxu0 0.0
      %1249 = vmatprep.subr.mxu0 0.0
      %1250 = vmatpush2.msra.mxu0 0.0
      %1251 = vmatprep.subr.mxu0 0.0
      %1252 = vmatpush2.msra.mxu0 0.0
      %1253 = vmatprep.subr.mxu0 0.0
      %1254 = vmatpush2.msra.mxu0 0.0
      %1255 = vmatprep.subr.mxu0 0.0
      %1256 = vmatpush2.msra.mxu0 0.0
      %1257 = vmatprep.subr.mxu0 0.0
      %1258 = vmatpush2.msra.mxu0 0.0
      %1259 = vmatprep.mubr.f32.mxu0 0.0
      %1260 = vmatmul.mubr.f32.gmra.mxu0 %v1193
      %v1261 = vpop.f32.mrf.mxu0
      %v1262 = vadd.f32 0.0, %v1261
      %v1263 = vpop.f32.mrf.mxu0
      %1264 = vdwg.mxu0
      %v1265 = vld [vmem:[%s13] sm:$0xff]
      %v1266 = vld [vmem:[%s13 + $0x8] sm:$0xff]
      %v1268 = vsel %vm719, %v1262, 0
      %1270 = vmatprep.subr.mxu0 0.0
      %1271 = vmatpush1.msra.mxu0 0.0
      %1272 = vmatprep.subr.mxu0 0.0
      %1273 = vmatpush1.msra.mxu0 0.0
      %1274 = vmatprep.subr.mxu0 0.0
      %1275 = vmatpush1.msra.mxu0 0.0
      %1276 = vmatprep.subr.mxu0 0.0
      %1277 = vmatpush1.msra.mxu0 0.0
      %1278 = vmatprep.subr.mxu0 0.0
      %1279 = vmatpush1.msra.mxu0 0.0
      %1280 = vmatprep.subr.mxu0 0.0
      %1281 = vmatpush1.msra.mxu0 0.0
      %1282 = vmatprep.subr.mxu0 0.0
      %1283 = vmatpush1.msra.mxu0 0.0
      %1284 = vmatprep.subr.mxu0 0.0
      %1285 = vmatpush1.msra.mxu0 0.0
      %1286 = vmatprep.subr.mxu0 0.0
      %1287 = vmatpush1.msra.mxu0 0.0
      %1288 = vmatprep.subr.mxu0 0.0
      %1289 = vmatpush1.msra.mxu0 0.0
      %1290 = vmatprep.subr.mxu0 0.0
      %1291 = vmatpush1.msra.mxu0 0.0
      %1292 = vmatprep.subr.mxu0 0.0
      %1293 = vmatpush1.msra.mxu0 0.0
      %1294 = vmatprep.subr.mxu0 0.0
      %1295 = vmatpush1.msra.mxu0 0.0
      %1296 = vmatprep.subr.mxu0 0.0
      %1297 = vmatpush1.msra.mxu0 0.0
      %1298 = vmatprep.subr.mxu0 0.0
      %1299 = vmatpush1.msra.mxu0 %v1266
      %1300 = vmatprep.subr.mxu0 0.0
      %1301 = vmatpush1.msra.mxu0 %v1265
      %1302 = vmatprep.subr.mxu0 0.0
      %1303 = vmatpush2.msra.mxu0 0.0
      %1304 = vmatprep.subr.mxu0 0.0
      %1305 = vmatpush2.msra.mxu0 0.0
      %1306 = vmatprep.subr.mxu0 0.0
      %1307 = vmatpush2.msra.mxu0 0.0
      %1308 = vmatprep.subr.mxu0 0.0
      %1309 = vmatpush2.msra.mxu0 0.0
      %1310 = vmatprep.subr.mxu0 0.0
      %1311 = vmatpush2.msra.mxu0 0.0
      %1312 = vmatprep.subr.mxu0 0.0
      %1313 = vmatpush2.msra.mxu0 0.0
      %1314 = vmatprep.subr.mxu0 0.0
      %1315 = vmatpush2.msra.mxu0 0.0
      %1316 = vmatprep.subr.mxu0 0.0
      %1317 = vmatpush2.msra.mxu0 0.0
      %1318 = vmatprep.subr.mxu0 0.0
      %1319 = vmatpush2.msra.mxu0 0.0
      %1320 = vmatprep.subr.mxu0 0.0
      %1321 = vmatpush2.msra.mxu0 0.0
      %1322 = vmatprep.subr.mxu0 0.0
      %1323 = vmatpush2.msra.mxu0 0.0
      %1324 = vmatprep.subr.mxu0 0.0
      %1325 = vmatpush2.msra.mxu0 0.0
      %1326 = vmatprep.subr.mxu0 0.0
      %1327 = vmatpush2.msra.mxu0 0.0
      %1328 = vmatprep.subr.mxu0 0.0
      %1329 = vmatpush2.msra.mxu0 0.0
      %1330 = vmatprep.subr.mxu0 0.0
      %1331 = vmatpush2.msra.mxu0 0.0
      %1332 = vmatprep.subr.mxu0 0.0
      %1333 = vmatpush2.msra.mxu0 0.0
      %1334 = vmatprep.mubr.f32.mxu0 0.0
      %1335 = vmatmul.mubr.f32.gmra.mxu0 %v1268
      %v1336 = vpop.f32.mrf.mxu0
      %v1337 = vadd.f32 0.0, %v1336
      %v1338 = vpop.f32.mrf.mxu0
      %1339 = vdwg.mxu0
      %1342 = vrot.lane.b32.xlu0 %v1265, 127
      %v1343 = vpop.permute.xlu0 %1342
      %1344 = vrot.lane.b32.xlu0 %v1266, 127
      %v1345 = vpop.permute.xlu0 %1344
      %1348 = vxpose.xlu0.b32.start [1/16] %v1343, 128
      %1349 = vxpose.xlu0.b32.cont [2/16] %v1345, 128
      %1350 = vxpose.xlu0.b32.cont [3/16] 0.0, 128
      %1351 = vxpose.xlu0.b32.cont [4/16] 0.0, 128
      %1352 = vxpose.xlu0.b32.cont [5/16] 0.0, 128
      %1353 = vxpose.xlu0.b32.cont [6/16] 0.0, 128
      %1354 = vxpose.xlu0.b32.cont [7/16] 0.0, 128
      %1355 = vxpose.xlu0.b32.cont [8/16] 0.0, 128
      %1356 = vxpose.xlu0.b32.cont [9/16] 0.0, 128
      %1357 = vxpose.xlu0.b32.cont [10/16] 0.0, 128
      %1358 = vxpose.xlu0.b32.cont [11/16] 0.0, 128
      %1359 = vxpose.xlu0.b32.cont [12/16] 0.0, 128
      %1360 = vxpose.xlu0.b32.cont [13/16] 0.0, 128
      %1361 = vxpose.xlu0.b32.cont [14/16] 0.0, 128
      %1362 = vxpose.xlu0.b32.cont [15/16] 0.0, 128
      %1363 = vxpose.xlu0.b32.end [16/16] 0.0, 128
      %v1364 = vpop.trf.xlu0
      %v1365 = vpop.trf.xlu0
      %v1366 = vpop.trf.xlu0
      %v1367 = vpop.trf.xlu0
      %v1368 = vpop.trf.xlu0
      %v1369 = vpop.trf.xlu0
      %v1370 = vpop.trf.xlu0
      %v1371 = vpop.trf.xlu0
      %v1372 = vpop.trf.xlu0
      %v1373 = vpop.trf.xlu0
      %v1374 = vpop.trf.xlu0
      %v1375 = vpop.trf.xlu0
      %v1376 = vpop.trf.xlu0
      %v1377 = vpop.trf.xlu0
      %v1378 = vpop.trf.xlu0
      %v1379 = vpop.trf.xlu0
      %v1381 = vsel %vm719, %v1364, 0
      %1383 = vmatprep.subr.mxu0 0.0
      %1384 = vmatpush1.xpose.msra.mxu0 0.0
      %1385 = vmatprep.subr.mxu0 0.0
      %1386 = vmatpush1.xpose.msra.mxu0 0.0
      %1387 = vmatprep.subr.mxu0 0.0
      %1388 = vmatpush1.xpose.msra.mxu0 0.0
      %1389 = vmatprep.subr.mxu0 0.0
      %1390 = vmatpush1.xpose.msra.mxu0 0.0
      %1391 = vmatprep.subr.mxu0 0.0
      %1392 = vmatpush1.xpose.msra.mxu0 0.0
      %1393 = vmatprep.subr.mxu0 0.0
      %1394 = vmatpush1.xpose.msra.mxu0 0.0
      %1395 = vmatprep.subr.mxu0 0.0
      %1396 = vmatpush1.xpose.msra.mxu0 0.0
      %1397 = vmatprep.subr.mxu0 0.0
      %1398 = vmatpush1.xpose.msra.mxu0 0.0
      %1399 = vmatprep.subr.mxu0 0.0
      %1400 = vmatpush1.xpose.msra.mxu0 0.0
      %1401 = vmatprep.subr.mxu0 0.0
      %1402 = vmatpush1.xpose.msra.mxu0 0.0
      %1403 = vmatprep.subr.mxu0 0.0
      %1404 = vmatpush1.xpose.msra.mxu0 0.0
      %1405 = vmatprep.subr.mxu0 0.0
      %1406 = vmatpush1.xpose.msra.mxu0 0.0
      %1407 = vmatprep.subr.mxu0 0.0
      %1408 = vmatpush1.xpose.msra.mxu0 0.0
      %1409 = vmatprep.subr.mxu0 0.0
      %1410 = vmatpush1.xpose.msra.mxu0 0.0
      %1411 = vmatprep.subr.mxu0 0.0
      %1412 = vmatpush1.xpose.msra.mxu0 0.0
      %1413 = vmatprep.subr.mxu0 0.0
      %1414 = vmatpush1.xpose.msra.mxu0 %v1268
      %1415 = vmatprep.subr.mxu0 0.0
      %1416 = vmatpush2.xpose.msra.mxu0 0.0
      %1417 = vmatprep.subr.mxu0 0.0
      %1418 = vmatpush2.xpose.msra.mxu0 0.0
      %1419 = vmatprep.subr.mxu0 0.0
      %1420 = vmatpush2.xpose.msra.mxu0 0.0
      %1421 = vmatprep.subr.mxu0 0.0
      %1422 = vmatpush2.xpose.msra.mxu0 0.0
      %1423 = vmatprep.subr.mxu0 0.0
      %1424 = vmatpush2.xpose.msra.mxu0 0.0
      %1425 = vmatprep.subr.mxu0 0.0
      %1426 = vmatpush2.xpose.msra.mxu0 0.0
      %1427 = vmatprep.subr.mxu0 0.0
      %1428 = vmatpush2.xpose.msra.mxu0 0.0
      %1429 = vmatprep.subr.mxu0 0.0
      %1430 = vmatpush2.xpose.msra.mxu0 0.0
      %1431 = vmatprep.subr.mxu0 0.0
      %1432 = vmatpush2.xpose.msra.mxu0 0.0
      %1433 = vmatprep.subr.mxu0 0.0
      %1434 = vmatpush2.xpose.msra.mxu0 0.0
      %1435 = vmatprep.subr.mxu0 0.0
      %1436 = vmatpush2.xpose.msra.mxu0 0.0
      %1437 = vmatprep.subr.mxu0 0.0
      %1438 = vmatpush2.xpose.msra.mxu0 0.0
      %1439 = vmatprep.subr.mxu0 0.0
      %1440 = vmatpush2.xpose.msra.mxu0 0.0
      %1441 = vmatprep.subr.mxu0 0.0
      %1442 = vmatpush2.xpose.msra.mxu0 0.0
      %1443 = vmatprep.subr.mxu0 0.0
      %1444 = vmatpush2.xpose.msra.mxu0 0.0
      %1445 = vmatprep.subr.mxu0 0.0
      %1446 = vmatpush2.xpose.msra.mxu0 0.0
      %1447 = vmatprep.mubr.f32.mxu0 0.0
      %1448 = vmatmul.mubr.f32.gmra.mxu0 %v1381
      %v1449 = vpop.f32.mrf.mxu0
      %v1450 = vadd.f32 0.0, %v1449
      %v1451 = vpop.f32.mrf.mxu0
      %1452 = vdwg.mxu0
      %1454 = vset.pattern.permute.xlu0 0
      %1455 = vperm.xlu0 %1454, %v1337
      %v1456 = vpop.permute.xlu0 %1455
      %v1458 = vlaneseq
      %v1459 = vshrl.u32 %v1458, 7
      %v1460 = vsub.s32 0, %v1459
      %v1461 = vrot.slane %v1450, %v1460
      %v1462 = vadd.f32 %v1456, %v1461
      %vm1463 = vcmp.gt.f32.partialorder %v1462, 0.0
      %v1464 = vmul.f32 %v1462, 0.2
      %v1465 = vsel %vm1463, %v1462, %v1464
      %v1466 = vsel %vm988, %v1465, -9e+15
      %v1467 = vsel %vm990, %v1466, -inf
      %1468 = vmax.xlane.f32.xlu0 %v1467
      %v1469 = vpop.xlane.xlu0 %1468
      %v1470 = vsub.f32 %v1466, %v1469
      %v1471 = vmul.f32 %v1470, 1.442695
      %v1472 = vpow.pop %v1471
      %v1473 = vsel %vm990, %v1472, 0.0
      %1474 = vadd.xlane.f32.xlu0 %v1473
      %v1475 = vpop.xlane.xlu0 %1474
      %v1476 = vrcp.pop %v1475
      %v1477 = vmul.f32 %v1472, %v1476
      %v1479 = vsel %vm990, %v1477, 0
      %1481 = vmatprep.subr.mxu0 0.0
      %1482 = vmatpush1.msra.mxu0 0.0
      %1483 = vmatprep.subr.mxu0 0.0
      %1484 = vmatpush1.msra.mxu0 0.0
      %1485 = vmatprep.subr.mxu0 0.0
      %1486 = vmatpush1.msra.mxu0 0.0
      %1487 = vmatprep.subr.mxu0 0.0
      %1488 = vmatpush1.msra.mxu0 0.0
      %1489 = vmatprep.subr.mxu0 0.0
      %1490 = vmatpush1.msra.mxu0 0.0
      %1491 = vmatprep.subr.mxu0 0.0
      %1492 = vmatpush1.msra.mxu0 0.0
      %1493 = vmatprep.subr.mxu0 0.0
      %1494 = vmatpush1.msra.mxu0 0.0
      %1495 = vmatprep.subr.mxu0 0.0
      %1496 = vmatpush1.msra.mxu0 0.0
      %1497 = vmatprep.subr.mxu0 0.0
      %1498 = vmatpush1.msra.mxu0 0.0
      %1499 = vmatprep.subr.mxu0 0.0
      %1500 = vmatpush1.msra.mxu0 0.0
      %1501 = vmatprep.subr.mxu0 0.0
      %1502 = vmatpush1.msra.mxu0 0.0
      %1503 = vmatprep.subr.mxu0 0.0
      %1504 = vmatpush1.msra.mxu0 0.0
      %1505 = vmatprep.subr.mxu0 0.0
      %1506 = vmatpush1.msra.mxu0 0.0
      %1507 = vmatprep.subr.mxu0 0.0
      %1508 = vmatpush1.msra.mxu0 0.0
      %1509 = vmatprep.subr.mxu0 0.0
      %1510 = vmatpush1.msra.mxu0 0.0
      %1511 = vmatprep.subr.mxu0 0.0
      %1512 = vmatpush1.msra.mxu0 %v1262
      %1513 = vmatprep.subr.mxu0 0.0
      %1514 = vmatpush2.msra.mxu0 0.0
      %1515 = vmatprep.subr.mxu0 0.0
      %1516 = vmatpush2.msra.mxu0 0.0
      %1517 = vmatprep.subr.mxu0 0.0
      %1518 = vmatpush2.msra.mxu0 0.0
      %1519 = vmatprep.subr.mxu0 0.0
      %1520 = vmatpush2.msra.mxu0 0.0
      %1521 = vmatprep.subr.mxu0 0.0
      %1522 = vmatpush2.msra.mxu0 0.0
      %1523 = vmatprep.subr.mxu0 0.0
      %1524 = vmatpush2.msra.mxu0 0.0
      %1525 = vmatprep.subr.mxu0 0.0
      %1526 = vmatpush2.msra.mxu0 0.0
      %1527 = vmatprep.subr.mxu0 0.0
      %1528 = vmatpush2.msra.mxu0 0.0
      %1529 = vmatprep.subr.mxu0 0.0
      %1530 = vmatpush2.msra.mxu0 0.0
      %1531 = vmatprep.subr.mxu0 0.0
      %1532 = vmatpush2.msra.mxu0 0.0
      %1533 = vmatprep.subr.mxu0 0.0
      %1534 = vmatpush2.msra.mxu0 0.0
      %1535 = vmatprep.subr.mxu0 0.0
      %1536 = vmatpush2.msra.mxu0 0.0
      %1537 = vmatprep.subr.mxu0 0.0
      %1538 = vmatpush2.msra.mxu0 0.0
      %1539 = vmatprep.subr.mxu0 0.0
      %1540 = vmatpush2.msra.mxu0 0.0
      %1541 = vmatprep.subr.mxu0 0.0
      %1542 = vmatpush2.msra.mxu0 0.0
      %1543 = vmatprep.subr.mxu0 0.0
      %1544 = vmatpush2.msra.mxu0 0.0
      %1545 = vmatprep.mubr.f32.mxu0 0.0
      %1546 = vmatmul.mubr.f32.gmra.mxu0 %v1479
      %v1547 = vpop.f32.mrf.mxu0
      %v1548 = vadd.f32 0.0, %v1547
      %v1549 = vpop.f32.mrf.mxu0
      %1550 = vdwg.mxu0
      %vm1551 = vcmp.gt.f32.partialorder %v1548, 0.0
      %v1552 = vmul.f32 %v1548, 1.442695
      %v1553 = vpow.pop %v1552
      %v1554 = vsub.f32 %v1553, 1.0
      %v1555 = vsel %vm1551, %v1548, %v1554
      %v1556 = vld [vmem:[%s3] sm:$0xff]
      %v1557 = vld [vmem:[%s3 + $0x8] sm:$0xff]
      %v1558 = vld [vmem:[%s3 + $0x10] sm:$0xff]
      %v1559 = vld [vmem:[%s3 + $0x18] sm:$0xff]
      %v1560 = vld [vmem:[%s701] sm:$0xff]
      %v1561 = vlaneseq
      %v1562 = vand.u32 %v1561, 127
      %1563 = vset.pattern.permute.xlu0 0
      %1564 = vperm.xlu0 %1563, %v1560
      %v1565 = vpop.permute.xlu0 %1564
      %vm1566 = vcmp.eq.s32.totalorder %v1562, %v1565
      %v1567 = vsel %vm1566, 1, 0
      %v1568 = vcvt.s32.f32 %v1567
      %vm1569 = vcmask 261120
      %v1571 = vsel %vm1569, %v1568, 0
      %1573 = vmatprep.subr.mxu0 0.0
      %1574 = vmatpush1.msra.mxu0 0.0
      %1575 = vmatprep.subr.mxu0 0.0
      %1576 = vmatpush1.msra.mxu0 0.0
      %1577 = vmatprep.subr.mxu0 0.0
      %1578 = vmatpush1.msra.mxu0 0.0
      %1579 = vmatprep.subr.mxu0 0.0
      %1580 = vmatpush1.msra.mxu0 0.0
      %1581 = vmatprep.subr.mxu0 0.0
      %1582 = vmatpush1.msra.mxu0 0.0
      %1583 = vmatprep.subr.mxu0 0.0
      %1584 = vmatpush1.msra.mxu0 0.0
      %1585 = vmatprep.subr.mxu0 0.0
      %1586 = vmatpush1.msra.mxu0 0.0
      %1587 = vmatprep.subr.mxu0 0.0
      %1588 = vmatpush1.msra.mxu0 0.0
      %1589 = vmatprep.subr.mxu0 0.0
      %1590 = vmatpush1.msra.mxu0 0.0
      %1591 = vmatprep.subr.mxu0 0.0
      %1592 = vmatpush1.msra.mxu0 0.0
      %1593 = vmatprep.subr.mxu0 0.0
      %1594 = vmatpush1.msra.mxu0 0.0
      %1595 = vmatprep.subr.mxu0 0.0
      %1596 = vmatpush1.msra.mxu0 0.0
      %1597 = vmatprep.subr.mxu0 0.0
      %1598 = vmatpush1.msra.mxu0 %v1559
      %1599 = vmatprep.subr.mxu0 0.0
      %1600 = vmatpush1.msra.mxu0 %v1558
      %1601 = vmatprep.subr.mxu0 0.0
      %1602 = vmatpush1.msra.mxu0 %v1557
      %1603 = vmatprep.subr.mxu0 0.0
      %1604 = vmatpush1.msra.mxu0 %v1556
      %1605 = vmatprep.subr.mxu0 0.0
      %1606 = vmatpush2.msra.mxu0 0.0
      %1607 = vmatprep.subr.mxu0 0.0
      %1608 = vmatpush2.msra.mxu0 0.0
      %1609 = vmatprep.subr.mxu0 0.0
      %1610 = vmatpush2.msra.mxu0 0.0
      %1611 = vmatprep.subr.mxu0 0.0
      %1612 = vmatpush2.msra.mxu0 0.0
      %1613 = vmatprep.subr.mxu0 0.0
      %1614 = vmatpush2.msra.mxu0 0.0
      %1615 = vmatprep.subr.mxu0 0.0
      %1616 = vmatpush2.msra.mxu0 0.0
      %1617 = vmatprep.subr.mxu0 0.0
      %1618 = vmatpush2.msra.mxu0 0.0
      %1619 = vmatprep.subr.mxu0 0.0
      %1620 = vmatpush2.msra.mxu0 0.0
      %1621 = vmatprep.subr.mxu0 0.0
      %1622 = vmatpush2.msra.mxu0 0.0
      %1623 = vmatprep.subr.mxu0 0.0
      %1624 = vmatpush2.msra.mxu0 0.0
      %1625 = vmatprep.subr.mxu0 0.0
      %1626 = vmatpush2.msra.mxu0 0.0
      %1627 = vmatprep.subr.mxu0 0.0
      %1628 = vmatpush2.msra.mxu0 0.0
      %1629 = vmatprep.subr.mxu0 0.0
      %1630 = vmatpush2.msra.mxu0 0.0
      %1631 = vmatprep.subr.mxu0 0.0
      %1632 = vmatpush2.msra.mxu0 0.0
      %1633 = vmatprep.subr.mxu0 0.0
      %1634 = vmatpush2.msra.mxu0 0.0
      %1635 = vmatprep.subr.mxu0 0.0
      %1636 = vmatpush2.msra.mxu0 0.0
      %1637 = vmatprep.mubr.f32.mxu0 0.0
      %1638 = vmatmul.mubr.f32.gmra.mxu0 %v1571
      %v1639 = vpop.f32.mrf.mxu0
      %v1640 = vadd.f32 0.0, %v1639
      %v1641 = vpop.f32.mrf.mxu0
      %1642 = vdwg.mxu0
      %v1643 = vld [vmem:[%s4] sm:$0xff]
      %v1644 = vld [vmem:[%s4 + $0x8] sm:$0xff]
      %v1645 = vld [vmem:[%s4 + $0x10] sm:$0xff]
      %v1646 = vld [vmem:[%s4 + $0x18] sm:$0xff]
      %v1647 = vld [vmem:[%s5] sm:$0x1]
      %v1649 = vlaneseq
      %v1650 = vshrl.u32 %v1649, 7
      %v1651 = vsub.s32 0, %v1650
      %v1652 = vrot.slane %v1647, %v1651
      %v1655 = vsel %vm1569, %v1640, 0
      %1657 = vmatprep.subr.mxu0 0.0
      %1658 = vmatpush1.msra.mxu0 0.0
      %1659 = vmatprep.subr.mxu0 0.0
      %1660 = vmatpush1.msra.mxu0 0.0
      %1661 = vmatprep.subr.mxu0 0.0
      %1662 = vmatpush1.msra.mxu0 0.0
      %1663 = vmatprep.subr.mxu0 0.0
      %1664 = vmatpush1.msra.mxu0 0.0
      %1665 = vmatprep.subr.mxu0 0.0
      %1666 = vmatpush1.msra.mxu0 0.0
      %1667 = vmatprep.subr.mxu0 0.0
      %1668 = vmatpush1.msra.mxu0 0.0
      %1669 = vmatprep.subr.mxu0 0.0
      %1670 = vmatpush1.msra.mxu0 0.0
      %1671 = vmatprep.subr.mxu0 0.0
      %1672 = vmatpush1.msra.mxu0 0.0
      %1673 = vmatprep.subr.mxu0 0.0
      %1674 = vmatpush1.msra.mxu0 0.0
      %1675 = vmatprep.subr.mxu0 0.0
      %1676 = vmatpush1.msra.mxu0 0.0
      %1677 = vmatprep.subr.mxu0 0.0
      %1678 = vmatpush1.msra.mxu0 0.0
      %1679 = vmatprep.subr.mxu0 0.0
      %1680 = vmatpush1.msra.mxu0 0.0
      %1681 = vmatprep.subr.mxu0 0.0
      %1682 = vmatpush1.msra.mxu0 %v1646
      %1683 = vmatprep.subr.mxu0 0.0
      %1684 = vmatpush1.msra.mxu0 %v1645
      %1685 = vmatprep.subr.mxu0 0.0
      %1686 = vmatpush1.msra.mxu0 %v1644
      %1687 = vmatprep.subr.mxu0 0.0
      %1688 = vmatpush1.msra.mxu0 %v1643
      %1689 = vmatprep.subr.mxu0 0.0
      %1690 = vmatpush2.msra.mxu0 0.0
      %1691 = vmatprep.subr.mxu0 0.0
      %1692 = vmatpush2.msra.mxu0 0.0
      %1693 = vmatprep.subr.mxu0 0.0
      %1694 = vmatpush2.msra.mxu0 0.0
      %1695 = vmatprep.subr.mxu0 0.0
      %1696 = vmatpush2.msra.mxu0 0.0
      %1697 = vmatprep.subr.mxu0 0.0
      %1698 = vmatpush2.msra.mxu0 0.0
      %1699 = vmatprep.subr.mxu0 0.0
      %1700 = vmatpush2.msra.mxu0 0.0
      %1701 = vmatprep.subr.mxu0 0.0
      %1702 = vmatpush2.msra.mxu0 0.0
      %1703 = vmatprep.subr.mxu0 0.0
      %1704 = vmatpush2.msra.mxu0 0.0
      %1705 = vmatprep.subr.mxu0 0.0
      %1706 = vmatpush2.msra.mxu0 0.0
      %1707 = vmatprep.subr.mxu0 0.0
      %1708 = vmatpush2.msra.mxu0 0.0
      %1709 = vmatprep.subr.mxu0 0.0
      %1710 = vmatpush2.msra.mxu0 0.0
      %1711 = vmatprep.subr.mxu0 0.0
      %1712 = vmatpush2.msra.mxu0 0.0
      %1713 = vmatprep.subr.mxu0 0.0
      %1714 = vmatpush2.msra.mxu0 0.0
      %1715 = vmatprep.subr.mxu0 0.0
      %1716 = vmatpush2.msra.mxu0 0.0
      %1717 = vmatprep.subr.mxu0 0.0
      %1718 = vmatpush2.msra.mxu0 0.0
      %1719 = vmatprep.subr.mxu0 0.0
      %1720 = vmatpush2.msra.mxu0 0.0
      %1721 = vmatprep.mubr.f32.mxu0 0.0
      %1722 = vmatmul.mubr.f32.gmra.mxu0 %v1655
      %v1723 = vpop.f32.mrf.mxu0
      %v1724 = vadd.f32 %v1652, %v1723
      %v1725 = vpop.f32.mrf.mxu0
      %1726 = vdwg.mxu0
      %v1727 = vld [vmem:[%s6] sm:$0xff]
      %v1728 = vld [vmem:[%s705] sm:$0xff]
      %1729 = vset.pattern.permute.xlu0 0
      %1730 = vperm.xlu0 %1729, %v1728
      %v1731 = vpop.permute.xlu0 %1730
      %vm1732 = vcmp.eq.s32.totalorder %v1562, %v1731
      %v1733 = vsel %vm1732, 1, 0
      %v1734 = vcvt.s32.f32 %v1733
      %v1736 = vsel %vm990, %v1734, 0
      %1738 = vmatprep.subr.mxu0 0.0
      %1739 = vmatpush1.msra.mxu0 0.0
      %1740 = vmatprep.subr.mxu0 0.0
      %1741 = vmatpush1.msra.mxu0 0.0
      %1742 = vmatprep.subr.mxu0 0.0
      %1743 = vmatpush1.msra.mxu0 0.0
      %1744 = vmatprep.subr.mxu0 0.0
      %1745 = vmatpush1.msra.mxu0 0.0
      %1746 = vmatprep.subr.mxu0 0.0
      %1747 = vmatpush1.msra.mxu0 0.0
      %1748 = vmatprep.subr.mxu0 0.0
      %1749 = vmatpush1.msra.mxu0 0.0
      %1750 = vmatprep.subr.mxu0 0.0
      %1751 = vmatpush1.msra.mxu0 0.0
      %1752 = vmatprep.subr.mxu0 0.0
      %1753 = vmatpush1.msra.mxu0 0.0
      %1754 = vmatprep.subr.mxu0 0.0
      %1755 = vmatpush1.msra.mxu0 0.0
      %1756 = vmatprep.subr.mxu0 0.0
      %1757 = vmatpush1.msra.mxu0 0.0
      %1758 = vmatprep.subr.mxu0 0.0
      %1759 = vmatpush1.msra.mxu0 0.0
      %1760 = vmatprep.subr.mxu0 0.0
      %1761 = vmatpush1.msra.mxu0 0.0
      %1762 = vmatprep.subr.mxu0 0.0
      %1763 = vmatpush1.msra.mxu0 0.0
      %1764 = vmatprep.subr.mxu0 0.0
      %1765 = vmatpush1.msra.mxu0 0.0
      %1766 = vmatprep.subr.mxu0 0.0
      %1767 = vmatpush1.msra.mxu0 0.0
      %1768 = vmatprep.subr.mxu0 0.0
      %1769 = vmatpush1.msra.mxu0 %v1727
      %1770 = vmatprep.subr.mxu0 0.0
      %1771 = vmatpush2.msra.mxu0 0.0
      %1772 = vmatprep.subr.mxu0 0.0
      %1773 = vmatpush2.msra.mxu0 0.0
      %1774 = vmatprep.subr.mxu0 0.0
      %1775 = vmatpush2.msra.mxu0 0.0
      %1776 = vmatprep.subr.mxu0 0.0
      %1777 = vmatpush2.msra.mxu0 0.0
      %1778 = vmatprep.subr.mxu0 0.0
      %1779 = vmatpush2.msra.mxu0 0.0
      %1780 = vmatprep.subr.mxu0 0.0
      %1781 = vmatpush2.msra.mxu0 0.0
      %1782 = vmatprep.subr.mxu0 0.0
      %1783 = vmatpush2.msra.mxu0 0.0
      %1784 = vmatprep.subr.mxu0 0.0
      %1785 = vmatpush2.msra.mxu0 0.0
      %1786 = vmatprep.subr.mxu0 0.0
      %1787 = vmatpush2.msra.mxu0 0.0
      %1788 = vmatprep.subr.mxu0 0.0
      %1789 = vmatpush2.msra.mxu0 0.0
      %1790 = vmatprep.subr.mxu0 0.0
      %1791 = vmatpush2.msra.mxu0 0.0
      %1792 = vmatprep.subr.mxu0 0.0
      %1793 = vmatpush2.msra.mxu0 0.0
      %1794 = vmatprep.subr.mxu0 0.0
      %1795 = vmatpush2.msra.mxu0 0.0
      %1796 = vmatprep.subr.mxu0 0.0
      %1797 = vmatpush2.msra.mxu0 0.0
      %1798 = vmatprep.subr.mxu0 0.0
      %1799 = vmatpush2.msra.mxu0 0.0
      %1800 = vmatprep.subr.mxu0 0.0
      %1801 = vmatpush2.msra.mxu0 0.0
      %1802 = vmatprep.mubr.f32.mxu0 0.0
      %1803 = vmatmul.mubr.f32.gmra.mxu0 %v1736
      %v1804 = vpop.f32.mrf.mxu0
      %v1805 = vadd.f32 0.0, %v1804
      %v1806 = vpop.f32.mrf.mxu0
      %1807 = vdwg.mxu0
      %v1808 = vld [vmem:[%s709] sm:$0xff]
      %1809 = vset.pattern.permute.xlu0 0
      %1810 = vperm.xlu0 %1809, %v1808
      %v1811 = vpop.permute.xlu0 %1810
      %vm1812 = vcmp.eq.s32.totalorder %v1562, %v1811
      %v1813 = vsel %vm1812, 1, 0
      %v1814 = vcvt.s32.f32 %v1813
      %v1816 = vsel %vm990, %v1814, 0
      %1818 = vmatprep.subr.mxu0 0.0
      %1819 = vmatpush1.msra.mxu0 0.0
      %1820 = vmatprep.subr.mxu0 0.0
      %1821 = vmatpush1.msra.mxu0 0.0
      %1822 = vmatprep.subr.mxu0 0.0
      %1823 = vmatpush1.msra.mxu0 0.0
      %1824 = vmatprep.subr.mxu0 0.0
      %1825 = vmatpush1.msra.mxu0 0.0
      %1826 = vmatprep.subr.mxu0 0.0
      %1827 = vmatpush1.msra.mxu0 0.0
      %1828 = vmatprep.subr.mxu0 0.0
      %1829 = vmatpush1.msra.mxu0 0.0
      %1830 = vmatprep.subr.mxu0 0.0
      %1831 = vmatpush1.msra.mxu0 0.0
      %1832 = vmatprep.subr.mxu0 0.0
      %1833 = vmatpush1.msra.mxu0 0.0
      %1834 = vmatprep.subr.mxu0 0.0
      %1835 = vmatpush1.msra.mxu0 0.0
      %1836 = vmatprep.subr.mxu0 0.0
      %1837 = vmatpush1.msra.mxu0 0.0
      %1838 = vmatprep.subr.mxu0 0.0
      %1839 = vmatpush1.msra.mxu0 0.0
      %1840 = vmatprep.subr.mxu0 0.0
      %1841 = vmatpush1.msra.mxu0 0.0
      %1842 = vmatprep.subr.mxu0 0.0
      %1843 = vmatpush1.msra.mxu0 0.0
      %1844 = vmatprep.subr.mxu0 0.0
      %1845 = vmatpush1.msra.mxu0 0.0
      %1846 = vmatprep.subr.mxu0 0.0
      %1847 = vmatpush1.msra.mxu0 0.0
      %1848 = vmatprep.subr.mxu0 0.0
      %1849 = vmatpush1.msra.mxu0 %v1555
      %1850 = vmatprep.subr.mxu0 0.0
      %1851 = vmatpush2.msra.mxu0 0.0
      %1852 = vmatprep.subr.mxu0 0.0
      %1853 = vmatpush2.msra.mxu0 0.0
      %1854 = vmatprep.subr.mxu0 0.0
      %1855 = vmatpush2.msra.mxu0 0.0
      %1856 = vmatprep.subr.mxu0 0.0
      %1857 = vmatpush2.msra.mxu0 0.0
      %1858 = vmatprep.subr.mxu0 0.0
      %1859 = vmatpush2.msra.mxu0 0.0
      %1860 = vmatprep.subr.mxu0 0.0
      %1861 = vmatpush2.msra.mxu0 0.0
      %1862 = vmatprep.subr.mxu0 0.0
      %1863 = vmatpush2.msra.mxu0 0.0
      %1864 = vmatprep.subr.mxu0 0.0
      %1865 = vmatpush2.msra.mxu0 0.0
      %1866 = vmatprep.subr.mxu0 0.0
      %1867 = vmatpush2.msra.mxu0 0.0
      %1868 = vmatprep.subr.mxu0 0.0
      %1869 = vmatpush2.msra.mxu0 0.0
      %1870 = vmatprep.subr.mxu0 0.0
      %1871 = vmatpush2.msra.mxu0 0.0
      %1872 = vmatprep.subr.mxu0 0.0
      %1873 = vmatpush2.msra.mxu0 0.0
      %1874 = vmatprep.subr.mxu0 0.0
      %1875 = vmatpush2.msra.mxu0 0.0
      %1876 = vmatprep.subr.mxu0 0.0
      %1877 = vmatpush2.msra.mxu0 0.0
      %1878 = vmatprep.subr.mxu0 0.0
      %1879 = vmatpush2.msra.mxu0 0.0
      %1880 = vmatprep.subr.mxu0 0.0
      %1881 = vmatpush2.msra.mxu0 0.0
      %1882 = vmatprep.mubr.f32.mxu0 0.0
      %1883 = vmatmul.mubr.f32.gmra.mxu0 %v1816
      %v1884 = vpop.f32.mrf.mxu0
      %v1885 = vadd.f32 0.0, %v1884
      %v1886 = vpop.f32.mrf.mxu0
      %1887 = vdwg.mxu0
      %1889 = vrot.lane.b32.xlu0 %v1805, 32
      %v1890 = vpop.permute.xlu0 %1889
      %1893 = vrot.lane.b32.xlu0 %v1885, 48
      %v1894 = vpop.permute.xlu0 %1893
      %v1896 = vsel %vm1569, %v1724, %v1890
      %vm1897 = vcmask 392192
      %v1898 = vsel %vm1897, %v1896, %v1894
      %v1899 = vld [vmem:[%s14] sm:$0xff]
      %v1900 = vld [vmem:[%s14 + $0x8] sm:$0xff]
      %v1901 = vld [vmem:[%s14 + $0x10] sm:$0xff]
      %v1902 = vld [vmem:[%s14 + $0x18] sm:$0xff]
      %v1903 = vld [vmem:[%s14 + $0x20] sm:$0xff]
      %v1904 = vld [vmem:[%s14 + $0x28] sm:$0xff]
      %v1905 = vld [vmem:[%s14 + $0x30] sm:$0xff]
      %v1906 = vld [vmem:[%s14 + $0x38] sm:$0xff]
      %v1907 = vld [vmem:[%s15] sm:$0x1]
      %v1909 = vlaneseq
      %v1910 = vshrl.u32 %v1909, 7
      %v1911 = vsub.s32 0, %v1910
      %v1912 = vrot.slane %v1907, %v1911
      %vm1914 = vcmask 523264
      %v1916 = vsel %vm1914, %v1898, 0
      %1918 = vmatprep.subr.mxu0 0.0
      %1919 = vmatpush1.msra.mxu0 0.0
      %1920 = vmatprep.subr.mxu0 0.0
      %1921 = vmatpush1.msra.mxu0 0.0
      %1922 = vmatprep.subr.mxu0 0.0
      %1923 = vmatpush1.msra.mxu0 0.0
      %1924 = vmatprep.subr.mxu0 0.0
      %1925 = vmatpush1.msra.mxu0 0.0
      %1926 = vmatprep.subr.mxu0 0.0
      %1927 = vmatpush1.msra.mxu0 0.0
      %1928 = vmatprep.subr.mxu0 0.0
      %1929 = vmatpush1.msra.mxu0 0.0
      %1930 = vmatprep.subr.mxu0 0.0
      %1931 = vmatpush1.msra.mxu0 0.0
      %1932 = vmatprep.subr.mxu0 0.0
      %1933 = vmatpush1.msra.mxu0 0.0
      %1934 = vmatprep.subr.mxu0 0.0
      %1935 = vmatpush1.msra.mxu0 %v1906
      %1936 = vmatprep.subr.mxu0 0.0
      %1937 = vmatpush1.msra.mxu0 %v1905
      %1938 = vmatprep.subr.mxu0 0.0
      %1939 = vmatpush1.msra.mxu0 %v1904
      %1940 = vmatprep.subr.mxu0 0.0
      %1941 = vmatpush1.msra.mxu0 %v1903
      %1942 = vmatprep.subr.mxu0 0.0
      %1943 = vmatpush1.msra.mxu0 %v1902
      %1944 = vmatprep.subr.mxu0 0.0
      %1945 = vmatpush1.msra.mxu0 %v1901
      %1946 = vmatprep.subr.mxu0 0.0
      %1947 = vmatpush1.msra.mxu0 %v1900
      %1948 = vmatprep.subr.mxu0 0.0
      %1949 = vmatpush1.msra.mxu0 %v1899
      %1950 = vmatprep.subr.mxu0 0.0
      %1951 = vmatpush2.msra.mxu0 0.0
      %1952 = vmatprep.subr.mxu0 0.0
      %1953 = vmatpush2.msra.mxu0 0.0
      %1954 = vmatprep.subr.mxu0 0.0
      %1955 = vmatpush2.msra.mxu0 0.0
      %1956 = vmatprep.subr.mxu0 0.0
      %1957 = vmatpush2.msra.mxu0 0.0
      %1958 = vmatprep.subr.mxu0 0.0
      %1959 = vmatpush2.msra.mxu0 0.0
      %1960 = vmatprep.subr.mxu0 0.0
      %1961 = vmatpush2.msra.mxu0 0.0
      %1962 = vmatprep.subr.mxu0 0.0
      %1963 = vmatpush2.msra.mxu0 0.0
      %1964 = vmatprep.subr.mxu0 0.0
      %1965 = vmatpush2.msra.mxu0 0.0
      %1966 = vmatprep.subr.mxu0 0.0
      %1967 = vmatpush2.msra.mxu0 0.0
      %1968 = vmatprep.subr.mxu0 0.0
      %1969 = vmatpush2.msra.mxu0 0.0
      %1970 = vmatprep.subr.mxu0 0.0
      %1971 = vmatpush2.msra.mxu0 0.0
      %1972 = vmatprep.subr.mxu0 0.0
      %1973 = vmatpush2.msra.mxu0 0.0
      %1974 = vmatprep.subr.mxu0 0.0
      %1975 = vmatpush2.msra.mxu0 0.0
      %1976 = vmatprep.subr.mxu0 0.0
      %1977 = vmatpush2.msra.mxu0 0.0
      %1978 = vmatprep.subr.mxu0 0.0
      %1979 = vmatpush2.msra.mxu0 0.0
      %1980 = vmatprep.subr.mxu0 0.0
      %1981 = vmatpush2.msra.mxu0 0.0
      %1982 = vmatprep.mubr.f32.mxu0 0.0
      %1983 = vmatmul.mubr.f32.gmra.mxu0 %v1916
      %v1984 = vpop.f32.mrf.mxu0
      %v1985 = vadd.f32 %v1912, %v1984
      %v1986 = vpop.f32.mrf.mxu0
      %1987 = vdwg.mxu0
      %v1988 = vmax.f32 %v1985, 0.0
      %v1989 = vld [vmem:[%s16] sm:$0xff]
      %v1990 = vld [vmem:[%s16 + $0x8] sm:$0xff]
      %v1991 = vld [vmem:[%s16 + $0x10] sm:$0xff]
      %v1992 = vld [vmem:[%s16 + $0x18] sm:$0xff]
      %v1993 = vld [vmem:[%s16 + $0x20] sm:$0xff]
      %v1994 = vld [vmem:[%s16 + $0x28] sm:$0xff]
      %v1995 = vld [vmem:[%s16 + $0x30] sm:$0xff]
      %v1996 = vld [vmem:[%s16 + $0x38] sm:$0xff]
      %v1997 = vld [vmem:[%s17] sm:$0x1]
      %v1999 = vlaneseq
      %v2000 = vshrl.u32 %v1999, 7
      %v2001 = vsub.s32 0, %v2000
      %v2002 = vrot.slane %v1997, %v2001
      %2004 = vmatprep.subr.mxu0 0.0
      %2005 = vmatpush1.msra.mxu0 0.0
      %2006 = vmatprep.subr.mxu0 0.0
      %2007 = vmatpush1.msra.mxu0 0.0
      %2008 = vmatprep.subr.mxu0 0.0
      %2009 = vmatpush1.msra.mxu0 0.0
      %2010 = vmatprep.subr.mxu0 0.0
      %2011 = vmatpush1.msra.mxu0 0.0
      %2012 = vmatprep.subr.mxu0 0.0
      %2013 = vmatpush1.msra.mxu0 0.0
      %2014 = vmatprep.subr.mxu0 0.0
      %2015 = vmatpush1.msra.mxu0 0.0
      %2016 = vmatprep.subr.mxu0 0.0
      %2017 = vmatpush1.msra.mxu0 0.0
      %2018 = vmatprep.subr.mxu0 0.0
      %2019 = vmatpush1.msra.mxu0 0.0
      %2020 = vmatprep.subr.mxu0 0.0
      %2021 = vmatpush1.msra.mxu0 %v1996
      %2022 = vmatprep.subr.mxu0 0.0
      %2023 = vmatpush1.msra.mxu0 %v1995
      %2024 = vmatprep.subr.mxu0 0.0
      %2025 = vmatpush1.msra.mxu0 %v1994
      %2026 = vmatprep.subr.mxu0 0.0
      %2027 = vmatpush1.msra.mxu0 %v1993
      %2028 = vmatprep.subr.mxu0 0.0
      %2029 = vmatpush1.msra.mxu0 %v1992
      %2030 = vmatprep.subr.mxu0 0.0
      %2031 = vmatpush1.msra.mxu0 %v1991
      %2032 = vmatprep.subr.mxu0 0.0
      %2033 = vmatpush1.msra.mxu0 %v1990
      %2034 = vmatprep.subr.mxu0 0.0
      %2035 = vmatpush1.msra.mxu0 %v1989
      %2036 = vmatprep.subr.mxu0 0.0
      %2037 = vmatpush2.msra.mxu0 0.0
      %2038 = vmatprep.subr.mxu0 0.0
      %2039 = vmatpush2.msra.mxu0 0.0
      %2040 = vmatprep.subr.mxu0 0.0
      %2041 = vmatpush2.msra.mxu0 0.0
      %2042 = vmatprep.subr.mxu0 0.0
      %2043 = vmatpush2.msra.mxu0 0.0
      %2044 = vmatprep.subr.mxu0 0.0
      %2045 = vmatpush2.msra.mxu0 0.0
      %2046 = vmatprep.subr.mxu0 0.0
      %2047 = vmatpush2.msra.mxu0 0.0
      %2048 = vmatprep.subr.mxu0 0.0
      %2049 = vmatpush2.msra.mxu0 0.0
      %2050 = vmatprep.subr.mxu0 0.0
      %2051 = vmatpush2.msra.mxu0 0.0
      %2052 = vmatprep.subr.mxu0 0.0
      %2053 = vmatpush2.msra.mxu0 0.0
      %2054 = vmatprep.subr.mxu0 0.0
      %2055 = vmatpush2.msra.mxu0 0.0
      %2056 = vmatprep.subr.mxu0 0.0
      %2057 = vmatpush2.msra.mxu0 0.0
      %2058 = vmatprep.subr.mxu0 0.0
      %2059 = vmatpush2.msra.mxu0 0.0
      %2060 = vmatprep.subr.mxu0 0.0
      %2061 = vmatpush2.msra.mxu0 0.0
      %2062 = vmatprep.subr.mxu0 0.0
      %2063 = vmatpush2.msra.mxu0 0.0
      %2064 = vmatprep.subr.mxu0 0.0
      %2065 = vmatpush2.msra.mxu0 0.0
      %2066 = vmatprep.subr.mxu0 0.0
      %2067 = vmatpush2.msra.mxu0 0.0
      %2068 = vmatprep.mubr.f32.mxu0 0.0
      %2069 = vmatmul.mubr.f32.gmra.mxu0 %v1916
      %v2070 = vpop.f32.mrf.mxu0
      %v2071 = vadd.f32 %v2002, %v2070
      %v2072 = vpop.f32.mrf.mxu0
      %2073 = vdwg.mxu0
      %v2074 = vmax.f32 %v2071, 0.0
      %v2075 = vld [vmem:[%s18] sm:$0xff]
      %v2076 = vld [vmem:[%s18 + $0x8] sm:$0xff]
      %v2077 = vld [vmem:[%s18 + $0x10] sm:$0xff]
      %v2078 = vld [vmem:[%s18 + $0x18] sm:$0xff]
      %v2079 = vld [vmem:[%s18 + $0x20] sm:$0xff]
      %v2080 = vld [vmem:[%s18 + $0x28] sm:$0xff]
      %v2081 = vld [vmem:[%s18 + $0x30] sm:$0xff]
      %v2082 = vld [vmem:[%s18 + $0x38] sm:$0xff]
      %v2083 = vld [vmem:[%s18 + $0x40] sm:$0xff]
      %v2084 = vld [vmem:[%s18 + $0x48] sm:$0xff]
      %v2085 = vld [vmem:[%s18 + $0x50] sm:$0xff]
      %v2086 = vld [vmem:[%s18 + $0x58] sm:$0xff]
      %v2087 = vld [vmem:[%s18 + $0x60] sm:$0xff]
      %v2088 = vld [vmem:[%s18 + $0x68] sm:$0xff]
      %v2089 = vld [vmem:[%s18 + $0x70] sm:$0xff]
      %v2090 = vld [vmem:[%s18 + $0x78] sm:$0xff]
      %v2091 = vld [vmem:[%s18 + $0x80] sm:$0xff]
      %v2092 = vld [vmem:[%s18 + $0x88] sm:$0xff]
      %v2093 = vld [vmem:[%s18 + $0x90] sm:$0xff]
      %v2094 = vld [vmem:[%s18 + $0x98] sm:$0xff]
      %v2095 = vld [vmem:[%s18 + $0xa0] sm:$0xff]
      %v2096 = vld [vmem:[%s18 + $0xa8] sm:$0xff]
      %v2097 = vld [vmem:[%s18 + $0xb0] sm:$0xff]
      %v2098 = vld [vmem:[%s18 + $0xb8] sm:$0xff]
      %v2099 = vld [vmem:[%s18 + $0xc0] sm:$0xff]
      %v2100 = vld [vmem:[%s18 + $0xc8] sm:$0xff]
      %v2101 = vld [vmem:[%s18 + $0xd0] sm:$0xff]
      %v2102 = vld [vmem:[%s18 + $0xd8] sm:$0xff]
      %v2103 = vld [vmem:[%s18 + $0xe0] sm:$0xff]
      %v2104 = vld [vmem:[%s18 + $0xe8] sm:$0xff]
      %v2105 = vld [vmem:[%s18 + $0xf0] sm:$0xff]
      %v2106 = vld [vmem:[%s18 + $0xf8] sm:$0xff]
      %v2107 = vld [vmem:[%s18 + $0x100] sm:$0xff]
      %v2108 = vld [vmem:[%s18 + $0x108] sm:$0xff]
      %v2109 = vld [vmem:[%s18 + $0x110] sm:$0xff]
      %v2110 = vld [vmem:[%s18 + $0x118] sm:$0xff]
      %v2111 = vld [vmem:[%s18 + $0x120] sm:$0xff]
      %v2112 = vld [vmem:[%s18 + $0x128] sm:$0xff]
      %v2113 = vld [vmem:[%s18 + $0x130] sm:$0xff]
      %v2114 = vld [vmem:[%s18 + $0x138] sm:$0xff]
      %v2115 = vld [vmem:[%s18 + $0x140] sm:$0xff]
      %v2116 = vld [vmem:[%s18 + $0x148] sm:$0xff]
      %v2117 = vld [vmem:[%s18 + $0x150] sm:$0xff]
      %v2118 = vld [vmem:[%s18 + $0x158] sm:$0xff]
      %v2119 = vld [vmem:[%s18 + $0x160] sm:$0xff]
      %v2120 = vld [vmem:[%s18 + $0x168] sm:$0xff]
      %v2121 = vld [vmem:[%s18 + $0x170] sm:$0xff]
      %v2122 = vld [vmem:[%s18 + $0x178] sm:$0xff]
      %2123 = vmatprep.subr.mxu0 %v2121
      %2124 = vmatpush1.msra.mxu0 %v2120
      %2125 = vmatprep.subr.mxu0 %v2118
      %2126 = vmatpush1.msra.mxu0 %v2117
      %2127 = vmatprep.subr.mxu0 %v2115
      %2128 = vmatpush1.msra.mxu0 %v2114
      %2129 = vmatprep.subr.mxu0 %v2112
      %2130 = vmatpush1.msra.mxu0 %v2111
      %2131 = vmatprep.subr.mxu0 %v2109
      %2132 = vmatpush1.msra.mxu0 %v2108
      %2133 = vmatprep.subr.mxu0 %v2106
      %2134 = vmatpush1.msra.mxu0 %v2105
      %2135 = vmatprep.subr.mxu0 %v2103
      %2136 = vmatpush1.msra.mxu0 %v2102
      %2137 = vmatprep.subr.mxu0 %v2100
      %2138 = vmatpush1.msra.mxu0 %v2099
      %2139 = vmatprep.subr.mxu0 %v2097
      %2140 = vmatpush1.msra.mxu0 %v2096
      %2141 = vmatprep.subr.mxu0 %v2094
      %2142 = vmatpush1.msra.mxu0 %v2093
      %2143 = vmatprep.subr.mxu0 %v2091
      %2144 = vmatpush1.msra.mxu0 %v2090
      %2145 = vmatprep.subr.mxu0 %v2088
      %2146 = vmatpush1.msra.mxu0 %v2087
      %2147 = vmatprep.subr.mxu0 %v2085
      %2148 = vmatpush1.msra.mxu0 %v2084
      %2149 = vmatprep.subr.mxu0 %v2082
      %2150 = vmatpush1.msra.mxu0 %v2081
      %2151 = vmatprep.subr.mxu0 %v2079
      %2152 = vmatpush1.msra.mxu0 %v2078
      %2153 = vmatprep.subr.mxu0 %v2076
      %2154 = vmatpush1.msra.mxu0 %v2075
      %2155 = vmatprep.subr.mxu0 0.0
      %2156 = vmatpush2.msra.mxu0 0.0
      %2157 = vmatprep.subr.mxu0 0.0
      %2158 = vmatpush2.msra.mxu0 0.0
      %2159 = vmatprep.subr.mxu0 0.0
      %2160 = vmatpush2.msra.mxu0 0.0
      %2161 = vmatprep.subr.mxu0 0.0
      %2162 = vmatpush2.msra.mxu0 0.0
      %2163 = vmatprep.subr.mxu0 0.0
      %2164 = vmatpush2.msra.mxu0 0.0
      %2165 = vmatprep.subr.mxu0 0.0
      %2166 = vmatpush2.msra.mxu0 0.0
      %2167 = vmatprep.subr.mxu0 0.0
      %2168 = vmatpush2.msra.mxu0 0.0
      %2169 = vmatprep.subr.mxu0 0.0
      %2170 = vmatpush2.msra.mxu0 0.0
      %2171 = vmatprep.subr.mxu0 0.0
      %2172 = vmatpush2.msra.mxu0 0.0
      %2173 = vmatprep.subr.mxu0 0.0
      %2174 = vmatpush2.msra.mxu0 0.0
      %2175 = vmatprep.subr.mxu0 0.0
      %2176 = vmatpush2.msra.mxu0 0.0
      %2177 = vmatprep.subr.mxu0 0.0
      %2178 = vmatpush2.msra.mxu0 0.0
      %2179 = vmatprep.subr.mxu0 0.0
      %2180 = vmatpush2.msra.mxu0 0.0
      %2181 = vmatprep.subr.mxu0 0.0
      %2182 = vmatpush2.msra.mxu0 0.0
      %2183 = vmatprep.subr.mxu0 0.0
      %2184 = vmatpush2.msra.mxu0 0.0
      %2185 = vmatprep.subr.mxu0 0.0
      %2186 = vmatpush2.msra.mxu0 0.0
      %2187 = vmatprep.mubr.f32.mxu0 0.0
      %2188 = vmatmul.mubr.f32.gmra.mxu0 %v1988
      %v2189 = vpop.f32.mrf.mxu0
      %v2190 = vadd.f32 0.0, %v2189
      %v2191 = vpop.f32.mrf.mxu0
      %v2192 = vadd.f32 0.0, %v2191
      %2193 = vdwg.mxu0
      %2194 = vmatprep.subr.mxu0 0.0
      %2195 = vmatpush1.msra.mxu0 %v2122
      %2196 = vmatprep.subr.mxu0 0.0
      %2197 = vmatpush1.msra.mxu0 %v2119
      %2198 = vmatprep.subr.mxu0 0.0
      %2199 = vmatpush1.msra.mxu0 %v2116
      %2200 = vmatprep.subr.mxu0 0.0
      %2201 = vmatpush1.msra.mxu0 %v2113
      %2202 = vmatprep.subr.mxu0 0.0
      %2203 = vmatpush1.msra.mxu0 %v2110
      %2204 = vmatprep.subr.mxu0 0.0
      %2205 = vmatpush1.msra.mxu0 %v2107
      %2206 = vmatprep.subr.mxu0 0.0
      %2207 = vmatpush1.msra.mxu0 %v2104
      %2208 = vmatprep.subr.mxu0 0.0
      %2209 = vmatpush1.msra.mxu0 %v2101
      %2210 = vmatprep.subr.mxu0 0.0
      %2211 = vmatpush1.msra.mxu0 %v2098
      %2212 = vmatprep.subr.mxu0 0.0
      %2213 = vmatpush1.msra.mxu0 %v2095
      %2214 = vmatprep.subr.mxu0 0.0
      %2215 = vmatpush1.msra.mxu0 %v2092
      %2216 = vmatprep.subr.mxu0 0.0
      %2217 = vmatpush1.msra.mxu0 %v2089
      %2218 = vmatprep.subr.mxu0 0.0
      %2219 = vmatpush1.msra.mxu0 %v2086
      %2220 = vmatprep.subr.mxu0 0.0
      %2221 = vmatpush1.msra.mxu0 %v2083
      %2222 = vmatprep.subr.mxu0 0.0
      %2223 = vmatpush1.msra.mxu0 %v2080
      %2224 = vmatprep.subr.mxu0 0.0
      %2225 = vmatpush1.msra.mxu0 %v2077
      %2226 = vmatprep.subr.mxu0 0.0
      %2227 = vmatpush2.msra.mxu0 0.0
      %2228 = vmatprep.subr.mxu0 0.0
      %2229 = vmatpush2.msra.mxu0 0.0
      %2230 = vmatprep.subr.mxu0 0.0
      %2231 = vmatpush2.msra.mxu0 0.0
      %2232 = vmatprep.subr.mxu0 0.0
      %2233 = vmatpush2.msra.mxu0 0.0
      %2234 = vmatprep.subr.mxu0 0.0
      %2235 = vmatpush2.msra.mxu0 0.0
      %2236 = vmatprep.subr.mxu0 0.0
      %2237 = vmatpush2.msra.mxu0 0.0
      %2238 = vmatprep.subr.mxu0 0.0
      %2239 = vmatpush2.msra.mxu0 0.0
      %2240 = vmatprep.subr.mxu0 0.0
      %2241 = vmatpush2.msra.mxu0 0.0
      %2242 = vmatprep.subr.mxu0 0.0
      %2243 = vmatpush2.msra.mxu0 0.0
      %2244 = vmatprep.subr.mxu0 0.0
      %2245 = vmatpush2.msra.mxu0 0.0
      %2246 = vmatprep.subr.mxu0 0.0
      %2247 = vmatpush2.msra.mxu0 0.0
      %2248 = vmatprep.subr.mxu0 0.0
      %2249 = vmatpush2.msra.mxu0 0.0
      %2250 = vmatprep.subr.mxu0 0.0
      %2251 = vmatpush2.msra.mxu0 0.0
      %2252 = vmatprep.subr.mxu0 0.0
      %2253 = vmatpush2.msra.mxu0 0.0
      %2254 = vmatprep.subr.mxu0 0.0
      %2255 = vmatpush2.msra.mxu0 0.0
      %2256 = vmatprep.subr.mxu0 0.0
      %2257 = vmatpush2.msra.mxu0 0.0
      %2258 = vmatprep.mubr.f32.mxu0 0.0
      %2259 = vmatmul.mubr.f32.gmra.mxu0 %v1988
      %v2260 = vpop.f32.mrf.mxu0
      %v2261 = vadd.f32 0.0, %v2260
      %v2262 = vpop.f32.mrf.mxu0
      %2263 = vdwg.mxu0
      %v2264 = vld [vmem:[%s19] sm:$0xff]
      %v2265 = vld [vmem:[%s19 + $0x8] sm:$0xff]
      %v2266 = vld [vmem:[%s19 + $0x10] sm:$0xff]
      %v2267 = vld [vmem:[%s19 + $0x18] sm:$0xff]
      %v2268 = vld [vmem:[%s19 + $0x20] sm:$0xff]
      %v2269 = vld [vmem:[%s19 + $0x28] sm:$0xff]
      %v2270 = vld [vmem:[%s19 + $0x30] sm:$0xff]
      %v2271 = vld [vmem:[%s19 + $0x38] sm:$0xff]
      %v2272 = vld [vmem:[%s19 + $0x40] sm:$0xff]
      %v2273 = vld [vmem:[%s19 + $0x48] sm:$0xff]
      %v2274 = vld [vmem:[%s19 + $0x50] sm:$0xff]
      %v2275 = vld [vmem:[%s19 + $0x58] sm:$0xff]
      %v2276 = vld [vmem:[%s19 + $0x60] sm:$0xff]
      %v2277 = vld [vmem:[%s19 + $0x68] sm:$0xff]
      %v2278 = vld [vmem:[%s19 + $0x70] sm:$0xff]
      %v2279 = vld [vmem:[%s19 + $0x78] sm:$0xff]
      %v2280 = vld [vmem:[%s21] sm:$0x1]
      %v2282 = vlaneseq
      %v2283 = vshrl.u32 %v2282, 7
      %v2284 = vsub.s32 0, %v2283
      %v2285 = vrot.slane %v2280, %v2284
      %2287 = vmatprep.subr.mxu0 0.0
      %2288 = vmatpush1.msra.mxu0 %v2279
      %2289 = vmatprep.subr.mxu0 0.0
      %2290 = vmatpush1.msra.mxu0 %v2278
      %2291 = vmatprep.subr.mxu0 0.0
      %2292 = vmatpush1.msra.mxu0 %v2277
      %2293 = vmatprep.subr.mxu0 0.0
      %2294 = vmatpush1.msra.mxu0 %v2276
      %2295 = vmatprep.subr.mxu0 0.0
      %2296 = vmatpush1.msra.mxu0 %v2275
      %2297 = vmatprep.subr.mxu0 0.0
      %2298 = vmatpush1.msra.mxu0 %v2274
      %2299 = vmatprep.subr.mxu0 0.0
      %2300 = vmatpush1.msra.mxu0 %v2273
      %2301 = vmatprep.subr.mxu0 0.0
      %2302 = vmatpush1.msra.mxu0 %v2272
      %2303 = vmatprep.subr.mxu0 0.0
      %2304 = vmatpush1.msra.mxu0 %v2271
      %2305 = vmatprep.subr.mxu0 0.0
      %2306 = vmatpush1.msra.mxu0 %v2270
      %2307 = vmatprep.subr.mxu0 0.0
      %2308 = vmatpush1.msra.mxu0 %v2269
      %2309 = vmatprep.subr.mxu0 0.0
      %2310 = vmatpush1.msra.mxu0 %v2268
      %2311 = vmatprep.subr.mxu0 0.0
      %2312 = vmatpush1.msra.mxu0 %v2267
      %2313 = vmatprep.subr.mxu0 0.0
      %2314 = vmatpush1.msra.mxu0 %v2266
      %2315 = vmatprep.subr.mxu0 0.0
      %2316 = vmatpush1.msra.mxu0 %v2265
      %2317 = vmatprep.subr.mxu0 0.0
      %2318 = vmatpush1.msra.mxu0 %v2264
      %2319 = vmatprep.subr.mxu0 0.0
      %2320 = vmatpush2.msra.mxu0 0.0
      %2321 = vmatprep.subr.mxu0 0.0
      %2322 = vmatpush2.msra.mxu0 0.0
      %2323 = vmatprep.subr.mxu0 0.0
      %2324 = vmatpush2.msra.mxu0 0.0
      %2325 = vmatprep.subr.mxu0 0.0
      %2326 = vmatpush2.msra.mxu0 0.0
      %2327 = vmatprep.subr.mxu0 0.0
      %2328 = vmatpush2.msra.mxu0 0.0
      %2329 = vmatprep.subr.mxu0 0.0
      %2330 = vmatpush2.msra.mxu0 0.0
      %2331 = vmatprep.subr.mxu0 0.0
      %2332 = vmatpush2.msra.mxu0 0.0
      %2333 = vmatprep.subr.mxu0 0.0
      %2334 = vmatpush2.msra.mxu0 0.0
      %2335 = vmatprep.subr.mxu0 0.0
      %2336 = vmatpush2.msra.mxu0 0.0
      %2337 = vmatprep.subr.mxu0 0.0
      %2338 = vmatpush2.msra.mxu0 0.0
      %2339 = vmatprep.subr.mxu0 0.0
      %2340 = vmatpush2.msra.mxu0 0.0
      %2341 = vmatprep.subr.mxu0 0.0
      %2342 = vmatpush2.msra.mxu0 0.0
      %2343 = vmatprep.subr.mxu0 0.0
      %2344 = vmatpush2.msra.mxu0 0.0
      %2345 = vmatprep.subr.mxu0 0.0
      %2346 = vmatpush2.msra.mxu0 0.0
      %2347 = vmatprep.subr.mxu0 0.0
      %2348 = vmatpush2.msra.mxu0 0.0
      %2349 = vmatprep.subr.mxu0 0.0
      %2350 = vmatpush2.msra.mxu0 0.0
      %2351 = vmatprep.mubr.f32.mxu0 0.0
      %2352 = vmatmul.mubr.f32.gmra.mxu0 %v1988
      %v2353 = vpop.f32.mrf.mxu0
      %v2354 = vadd.f32 %v2285, %v2353
      %v2355 = vpop.f32.mrf.mxu0
      %2356 = vdwg.mxu0
      %v2357 = vld [vmem:[%s20] sm:$0x1f]
      %2358 = vmatprep.subr.mxu0 0.0
      %2359 = vmatpush1.xpose.msra.mxu0 0.0
      %2360 = vmatprep.subr.mxu0 0.0
      %2361 = vmatpush1.xpose.msra.mxu0 0.0
      %2362 = vmatprep.subr.mxu0 0.0
      %2363 = vmatpush1.xpose.msra.mxu0 0.0
      %2364 = vmatprep.subr.mxu0 0.0
      %2365 = vmatpush1.xpose.msra.mxu0 0.0
      %2366 = vmatprep.subr.mxu0 0.0
      %2367 = vmatpush1.xpose.msra.mxu0 0.0
      %2368 = vmatprep.subr.mxu0 0.0
      %2369 = vmatpush1.xpose.msra.mxu0 0.0
      %2370 = vmatprep.subr.mxu0 0.0
      %2371 = vmatpush1.xpose.msra.mxu0 0.0
      %2372 = vmatprep.subr.mxu0 0.0
      %2373 = vmatpush1.xpose.msra.mxu0 0.0
      %2374 = vmatprep.subr.mxu0 0.0
      %2375 = vmatpush1.xpose.msra.mxu0 0.0
      %2376 = vmatprep.subr.mxu0 0.0
      %2377 = vmatpush1.xpose.msra.mxu0 0.0
      %2378 = vmatprep.subr.mxu0 0.0
      %2379 = vmatpush1.xpose.msra.mxu0 0.0
      %2380 = vmatprep.subr.mxu0 0.0
      %2381 = vmatpush1.xpose.msra.mxu0 0.0
      %2382 = vmatprep.subr.mxu0 0.0
      %2383 = vmatpush1.xpose.msra.mxu0 0.0
      %2384 = vmatprep.subr.mxu0 0.0
      %2385 = vmatpush1.xpose.msra.mxu0 0.0
      %2386 = vmatprep.subr.mxu0 0.0
      %2387 = vmatpush1.xpose.msra.mxu0 0.0
      %2388 = vmatprep.subr.mxu0 0.0
      %2389 = vmatpush1.xpose.msra.mxu0 %v2074
      %2390 = vmatprep.subr.mxu0 0.0
      %2391 = vmatpush2.xpose.msra.mxu0 0.0
      %2392 = vmatprep.subr.mxu0 0.0
      %2393 = vmatpush2.xpose.msra.mxu0 0.0
      %2394 = vmatprep.subr.mxu0 0.0
      %2395 = vmatpush2.xpose.msra.mxu0 0.0
      %2396 = vmatprep.subr.mxu0 0.0
      %2397 = vmatpush2.xpose.msra.mxu0 0.0
      %2398 = vmatprep.subr.mxu0 0.0
      %2399 = vmatpush2.xpose.msra.mxu0 0.0
      %2400 = vmatprep.subr.mxu0 0.0
      %2401 = vmatpush2.xpose.msra.mxu0 0.0
      %2402 = vmatprep.subr.mxu0 0.0
      %2403 = vmatpush2.xpose.msra.mxu0 0.0
      %2404 = vmatprep.subr.mxu0 0.0
      %2405 = vmatpush2.xpose.msra.mxu0 0.0
      %2406 = vmatprep.subr.mxu0 0.0
      %2407 = vmatpush2.xpose.msra.mxu0 0.0
      %2408 = vmatprep.subr.mxu0 0.0
      %2409 = vmatpush2.xpose.msra.mxu0 0.0
      %2410 = vmatprep.subr.mxu0 0.0
      %2411 = vmatpush2.xpose.msra.mxu0 0.0
      %2412 = vmatprep.subr.mxu0 0.0
      %2413 = vmatpush2.xpose.msra.mxu0 0.0
      %2414 = vmatprep.subr.mxu0 0.0
      %2415 = vmatpush2.xpose.msra.mxu0 0.0
      %2416 = vmatprep.subr.mxu0 0.0
      %2417 = vmatpush2.xpose.msra.mxu0 0.0
      %2418 = vmatprep.subr.mxu0 0.0
      %2419 = vmatpush2.xpose.msra.mxu0 0.0
      %2420 = vmatprep.subr.mxu0 0.0
      %2421 = vmatpush2.xpose.msra.mxu0 0.0
      %2422 = vmatprep.mubr.f32.mxu0 0.0
      %2423 = vmatmul.mubr.f32.gmra.mxu0 %v2357
      %v2424 = vpop.f32.mrf.mxu0
      %v2425 = vadd.f32 0.0, %v2424
      %v2426 = vpop.f32.mrf.mxu0
      %2427 = vdwg.mxu0
      %2429 = vset.pattern.permute.xlu0 0
      %2430 = vperm.xlu0 %2429, %v2354
      %v2431 = vpop.permute.xlu0 %2430
      %v2434 = vsel %vm1914, %v2190, 0
      %v2437 = vsel %vm1914, %v2074, 0
      %2439 = vmatprep.subr.mxu0 0.0
      %2440 = vmatpush1.xpose.msra.mxu0 0.0
      %2441 = vmatprep.subr.mxu0 0.0
      %2442 = vmatpush1.xpose.msra.mxu0 0.0
      %2443 = vmatprep.subr.mxu0 0.0
      %2444 = vmatpush1.xpose.msra.mxu0 0.0
      %2445 = vmatprep.subr.mxu0 0.0
      %2446 = vmatpush1.xpose.msra.mxu0 0.0
      %2447 = vmatprep.subr.mxu0 0.0
      %2448 = vmatpush1.xpose.msra.mxu0 0.0
      %2449 = vmatprep.subr.mxu0 0.0
      %2450 = vmatpush1.xpose.msra.mxu0 0.0
      %2451 = vmatprep.subr.mxu0 0.0
      %2452 = vmatpush1.xpose.msra.mxu0 0.0
      %2453 = vmatprep.subr.mxu0 0.0
      %2454 = vmatpush1.xpose.msra.mxu0 0.0
      %2455 = vmatprep.subr.mxu0 0.0
      %2456 = vmatpush1.xpose.msra.mxu0 0.0
      %2457 = vmatprep.subr.mxu0 0.0
      %2458 = vmatpush1.xpose.msra.mxu0 0.0
      %2459 = vmatprep.subr.mxu0 0.0
      %2460 = vmatpush1.xpose.msra.mxu0 0.0
      %2461 = vmatprep.subr.mxu0 0.0
      %2462 = vmatpush1.xpose.msra.mxu0 0.0
      %2463 = vmatprep.subr.mxu0 0.0
      %2464 = vmatpush1.xpose.msra.mxu0 0.0
      %2465 = vmatprep.subr.mxu0 0.0
      %2466 = vmatpush1.xpose.msra.mxu0 0.0
      %2467 = vmatprep.subr.mxu0 0.0
      %2468 = vmatpush1.xpose.msra.mxu0 0.0
      %2469 = vmatprep.subr.mxu0 0.0
      %2470 = vmatpush1.xpose.msra.mxu0 %v2437
      %2471 = vmatprep.subr.mxu0 0.0
      %2472 = vmatpush2.xpose.msra.mxu0 0.0
      %2473 = vmatprep.subr.mxu0 0.0
      %2474 = vmatpush2.xpose.msra.mxu0 0.0
      %2475 = vmatprep.subr.mxu0 0.0
      %2476 = vmatpush2.xpose.msra.mxu0 0.0
      %2477 = vmatprep.subr.mxu0 0.0
      %2478 = vmatpush2.xpose.msra.mxu0 0.0
      %2479 = vmatprep.subr.mxu0 0.0
      %2480 = vmatpush2.xpose.msra.mxu0 0.0
      %2481 = vmatprep.subr.mxu0 0.0
      %2482 = vmatpush2.xpose.msra.mxu0 0.0
      %2483 = vmatprep.subr.mxu0 0.0
      %2484 = vmatpush2.xpose.msra.mxu0 0.0
      %2485 = vmatprep.subr.mxu0 0.0
      %2486 = vmatpush2.xpose.msra.mxu0 0.0
      %2487 = vmatprep.subr.mxu0 0.0
      %2488 = vmatpush2.xpose.msra.mxu0 0.0
      %2489 = vmatprep.subr.mxu0 0.0
      %2490 = vmatpush2.xpose.msra.mxu0 0.0
      %2491 = vmatprep.subr.mxu0 0.0
      %2492 = vmatpush2.xpose.msra.mxu0 0.0
      %2493 = vmatprep.subr.mxu0 0.0
      %2494 = vmatpush2.xpose.msra.mxu0 0.0
      %2495 = vmatprep.subr.mxu0 0.0
      %2496 = vmatpush2.xpose.msra.mxu0 0.0
      %2497 = vmatprep.subr.mxu0 0.0
      %2498 = vmatpush2.xpose.msra.mxu0 0.0
      %2499 = vmatprep.subr.mxu0 0.0
      %2500 = vmatpush2.xpose.msra.mxu0 0.0
      %2501 = vmatprep.subr.mxu0 0.0
      %2502 = vmatpush2.xpose.msra.mxu0 0.0
      %2503 = vmatprep.mubr.f32.mxu0 0.0
      %2504 = vmatmul.mubr.f32.gmra.mxu0 %v2434
      %v2505 = vpop.f32.mrf.mxu0
      %v2506 = vadd.f32 %v2431, %v2505
      %v2507 = vpop.f32.mrf.mxu0
      %2508 = vdwg.mxu0
      %v2509 = vlaneseq
      %v2510 = vshrl.u32 %v2509, 7
      %v2511 = vsub.s32 0, %v2510
      %v2512 = vrot.slane %v2425, %v2511
      %v2513 = vadd.f32 %v2506, %v2512
      %2514 = vst.msk [vmem:[%s714] sm:$0xff] %vm990, %v2513
      %2515 = vset.pattern.permute.xlu0 1
      %2516 = vperm.xlu0 %2515, %v2354
      %v2517 = vpop.permute.xlu0 %2516
      %2519 = vrot.lane.b32.xlu0 %v2190, 64
      %v2520 = vpop.permute.xlu0 %2519
      %2521 = vrot.lane.b32.xlu0 %v2074, 64
      %v2522 = vpop.permute.xlu0 %2521
      %v2523 = vsel %vm1914, %v2520, 0
      %v2525 = vsel %vm1914, %v2522, 0
      %2527 = vmatprep.subr.mxu0 0.0
      %2528 = vmatpush1.xpose.msra.mxu0 0.0
      %2529 = vmatprep.subr.mxu0 0.0
      %2530 = vmatpush1.xpose.msra.mxu0 0.0
      %2531 = vmatprep.subr.mxu0 0.0
      %2532 = vmatpush1.xpose.msra.mxu0 0.0
      %2533 = vmatprep.subr.mxu0 0.0
      %2534 = vmatpush1.xpose.msra.mxu0 0.0
      %2535 = vmatprep.subr.mxu0 0.0
      %2536 = vmatpush1.xpose.msra.mxu0 0.0
      %2537 = vmatprep.subr.mxu0 0.0
      %2538 = vmatpush1.xpose.msra.mxu0 0.0
      %2539 = vmatprep.subr.mxu0 0.0
      %2540 = vmatpush1.xpose.msra.mxu0 0.0
      %2541 = vmatprep.subr.mxu0 0.0
      %2542 = vmatpush1.xpose.msra.mxu0 0.0
      %2543 = vmatprep.subr.mxu0 0.0
      %2544 = vmatpush1.xpose.msra.mxu0 0.0
      %2545 = vmatprep.subr.mxu0 0.0
      %2546 = vmatpush1.xpose.msra.mxu0 0.0
      %2547 = vmatprep.subr.mxu0 0.0
      %2548 = vmatpush1.xpose.msra.mxu0 0.0
      %2549 = vmatprep.subr.mxu0 0.0
      %2550 = vmatpush1.xpose.msra.mxu0 0.0
      %2551 = vmatprep.subr.mxu0 0.0
      %2552 = vmatpush1.xpose.msra.mxu0 0.0
      %2553 = vmatprep.subr.mxu0 0.0
      %2554 = vmatpush1.xpose.msra.mxu0 0.0
      %2555 = vmatprep.subr.mxu0 0.0
      %2556 = vmatpush1.xpose.msra.mxu0 0.0
      %2557 = vmatprep.subr.mxu0 0.0
      %2558 = vmatpush1.xpose.msra.mxu0 %v2525
      %2559 = vmatprep.subr.mxu0 0.0
      %2560 = vmatpush2.xpose.msra.mxu0 0.0
      %2561 = vmatprep.subr.mxu0 0.0
      %2562 = vmatpush2.xpose.msra.mxu0 0.0
      %2563 = vmatprep.subr.mxu0 0.0
      %2564 = vmatpush2.xpose.msra.mxu0 0.0
      %2565 = vmatprep.subr.mxu0 0.0
      %2566 = vmatpush2.xpose.msra.mxu0 0.0
      %2567 = vmatprep.subr.mxu0 0.0
      %2568 = vmatpush2.xpose.msra.mxu0 0.0
      %2569 = vmatprep.subr.mxu0 0.0
      %2570 = vmatpush2.xpose.msra.mxu0 0.0
      %2571 = vmatprep.subr.mxu0 0.0
      %2572 = vmatpush2.xpose.msra.mxu0 0.0
      %2573 = vmatprep.subr.mxu0 0.0
      %2574 = vmatpush2.xpose.msra.mxu0 0.0
      %2575 = vmatprep.subr.mxu0 0.0
      %2576 = vmatpush2.xpose.msra.mxu0 0.0
      %2577 = vmatprep.subr.mxu0 0.0
      %2578 = vmatpush2.xpose.msra.mxu0 0.0
      %2579 = vmatprep.subr.mxu0 0.0
      %2580 = vmatpush2.xpose.msra.mxu0 0.0
      %2581 = vmatprep.subr.mxu0 0.0
      %2582 = vmatpush2.xpose.msra.mxu0 0.0
      %2583 = vmatprep.subr.mxu0 0.0
      %2584 = vmatpush2.xpose.msra.mxu0 0.0
      %2585 = vmatprep.subr.mxu0 0.0
      %2586 = vmatpush2.xpose.msra.mxu0 0.0
      %2587 = vmatprep.subr.mxu0 0.0
      %2588 = vmatpush2.xpose.msra.mxu0 0.0
      %2589 = vmatprep.subr.mxu0 0.0
      %2590 = vmatpush2.xpose.msra.mxu0 0.0
      %2591 = vmatprep.mubr.f32.mxu0 0.0
      %2592 = vmatmul.mubr.f32.gmra.mxu0 %v2523
      %v2593 = vpop.f32.mrf.mxu0
      %v2594 = vadd.f32 %v2517, %v2593
      %v2595 = vpop.f32.mrf.mxu0
      %2596 = vdwg.mxu0
      %v2597 = vlaneseq
      %v2598 = vshrl.u32 %v2597, 7
      %v2599 = vsub.s32 1, %v2598
      %v2600 = vrot.slane %v2425, %v2599
      %v2601 = vadd.f32 %v2594, %v2600
      %s2602 = scalar_lea.vmem %s714, 8
      %2603 = vst.msk [vmem:[%s2602] sm:$0xff] %vm990, %v2601
      %2604 = vset.pattern.permute.xlu0 2
      %2605 = vperm.xlu0 %2604, %v2354
      %v2606 = vpop.permute.xlu0 %2605
      %v2609 = vsel %vm1914, %v2192, 0
      %2611 = vmatprep.subr.mxu0 0.0
      %2612 = vmatpush1.xpose.msra.mxu0 0.0
      %2613 = vmatprep.subr.mxu0 0.0
      %2614 = vmatpush1.xpose.msra.mxu0 0.0
      %2615 = vmatprep.subr.mxu0 0.0
      %2616 = vmatpush1.xpose.msra.mxu0 0.0
      %2617 = vmatprep.subr.mxu0 0.0
      %2618 = vmatpush1.xpose.msra.mxu0 0.0
      %2619 = vmatprep.subr.mxu0 0.0
      %2620 = vmatpush1.xpose.msra.mxu0 0.0
      %2621 = vmatprep.subr.mxu0 0.0
      %2622 = vmatpush1.xpose.msra.mxu0 0.0
      %2623 = vmatprep.subr.mxu0 0.0
      %2624 = vmatpush1.xpose.msra.mxu0 0.0
      %2625 = vmatprep.subr.mxu0 0.0
      %2626 = vmatpush1.xpose.msra.mxu0 0.0
      %2627 = vmatprep.subr.mxu0 0.0
      %2628 = vmatpush1.xpose.msra.mxu0 0.0
      %2629 = vmatprep.subr.mxu0 0.0
      %2630 = vmatpush1.xpose.msra.mxu0 0.0
      %2631 = vmatprep.subr.mxu0 0.0
      %2632 = vmatpush1.xpose.msra.mxu0 0.0
      %2633 = vmatprep.subr.mxu0 0.0
      %2634 = vmatpush1.xpose.msra.mxu0 0.0
      %2635 = vmatprep.subr.mxu0 0.0
      %2636 = vmatpush1.xpose.msra.mxu0 0.0
      %2637 = vmatprep.subr.mxu0 0.0
      %2638 = vmatpush1.xpose.msra.mxu0 0.0
      %2639 = vmatprep.subr.mxu0 0.0
      %2640 = vmatpush1.xpose.msra.mxu0 0.0
      %2641 = vmatprep.subr.mxu0 0.0
      %2642 = vmatpush1.xpose.msra.mxu0 %v2525
      %2643 = vmatprep.subr.mxu0 0.0
      %2644 = vmatpush2.xpose.msra.mxu0 0.0
      %2645 = vmatprep.subr.mxu0 0.0
      %2646 = vmatpush2.xpose.msra.mxu0 0.0
      %2647 = vmatprep.subr.mxu0 0.0
      %2648 = vmatpush2.xpose.msra.mxu0 0.0
      %2649 = vmatprep.subr.mxu0 0.0
      %2650 = vmatpush2.xpose.msra.mxu0 0.0
      %2651 = vmatprep.subr.mxu0 0.0
      %2652 = vmatpush2.xpose.msra.mxu0 0.0
      %2653 = vmatprep.subr.mxu0 0.0
      %2654 = vmatpush2.xpose.msra.mxu0 0.0
      %2655 = vmatprep.subr.mxu0 0.0
      %2656 = vmatpush2.xpose.msra.mxu0 0.0
      %2657 = vmatprep.subr.mxu0 0.0
      %2658 = vmatpush2.xpose.msra.mxu0 0.0
      %2659 = vmatprep.subr.mxu0 0.0
      %2660 = vmatpush2.xpose.msra.mxu0 0.0
      %2661 = vmatprep.subr.mxu0 0.0
      %2662 = vmatpush2.xpose.msra.mxu0 0.0
      %2663 = vmatprep.subr.mxu0 0.0
      %2664 = vmatpush2.xpose.msra.mxu0 0.0
      %2665 = vmatprep.subr.mxu0 0.0
      %2666 = vmatpush2.xpose.msra.mxu0 0.0
      %2667 = vmatprep.subr.mxu0 0.0
      %2668 = vmatpush2.xpose.msra.mxu0 0.0
      %2669 = vmatprep.subr.mxu0 0.0
      %2670 = vmatpush2.xpose.msra.mxu0 0.0
      %2671 = vmatprep.subr.mxu0 0.0
      %2672 = vmatpush2.xpose.msra.mxu0 0.0
      %2673 = vmatprep.subr.mxu0 0.0
      %2674 = vmatpush2.xpose.msra.mxu0 0.0
      %2675 = vmatprep.mubr.f32.mxu0 0.0
      %2676 = vmatmul.mubr.f32.gmra.mxu0 %v2609
      %v2677 = vpop.f32.mrf.mxu0
      %v2678 = vadd.f32 %v2606, %v2677
      %v2679 = vpop.f32.mrf.mxu0
      %2680 = vdwg.mxu0
      %v2681 = vlaneseq
      %v2682 = vshrl.u32 %v2681, 7
      %v2683 = vsub.s32 2, %v2682
      %v2684 = vrot.slane %v2425, %v2683
      %v2685 = vadd.f32 %v2678, %v2684
      %s2686 = scalar_lea.vmem %s714, 16
      %2687 = vst.msk [vmem:[%s2686] sm:$0xff] %vm990, %v2685
      %2688 = vset.pattern.permute.xlu0 3
      %2689 = vperm.xlu0 %2688, %v2354
      %v2690 = vpop.permute.xlu0 %2689
      %2692 = vrot.lane.b32.xlu0 %v2192, 64
      %v2693 = vpop.permute.xlu0 %2692
      %v2694 = vsel %vm1914, %v2693, 0
      %2696 = vmatprep.subr.mxu0 0.0
      %2697 = vmatpush1.xpose.msra.mxu0 0.0
      %2698 = vmatprep.subr.mxu0 0.0
      %2699 = vmatpush1.xpose.msra.mxu0 0.0
      %2700 = vmatprep.subr.mxu0 0.0
      %2701 = vmatpush1.xpose.msra.mxu0 0.0
      %2702 = vmatprep.subr.mxu0 0.0
      %2703 = vmatpush1.xpose.msra.mxu0 0.0
      %2704 = vmatprep.subr.mxu0 0.0
      %2705 = vmatpush1.xpose.msra.mxu0 0.0
      %2706 = vmatprep.subr.mxu0 0.0
      %2707 = vmatpush1.xpose.msra.mxu0 0.0
      %2708 = vmatprep.subr.mxu0 0.0
      %2709 = vmatpush1.xpose.msra.mxu0 0.0
      %2710 = vmatprep.subr.mxu0 0.0
      %2711 = vmatpush1.xpose.msra.mxu0 0.0
      %2712 = vmatprep.subr.mxu0 0.0
      %2713 = vmatpush1.xpose.msra.mxu0 0.0
      %2714 = vmatprep.subr.mxu0 0.0
      %2715 = vmatpush1.xpose.msra.mxu0 0.0
      %2716 = vmatprep.subr.mxu0 0.0
      %2717 = vmatpush1.xpose.msra.mxu0 0.0
      %2718 = vmatprep.subr.mxu0 0.0
      %2719 = vmatpush1.xpose.msra.mxu0 0.0
      %2720 = vmatprep.subr.mxu0 0.0
      %2721 = vmatpush1.xpose.msra.mxu0 0.0
      %2722 = vmatprep.subr.mxu0 0.0
      %2723 = vmatpush1.xpose.msra.mxu0 0.0
      %2724 = vmatprep.subr.mxu0 0.0
      %2725 = vmatpush1.xpose.msra.mxu0 0.0
      %2726 = vmatprep.subr.mxu0 0.0
      %2727 = vmatpush1.xpose.msra.mxu0 %v2525
      %2728 = vmatprep.subr.mxu0 0.0
      %2729 = vmatpush2.xpose.msra.mxu0 0.0
      %2730 = vmatprep.subr.mxu0 0.0
      %2731 = vmatpush2.xpose.msra.mxu0 0.0
      %2732 = vmatprep.subr.mxu0 0.0
      %2733 = vmatpush2.xpose.msra.mxu0 0.0
      %2734 = vmatprep.subr.mxu0 0.0
      %2735 = vmatpush2.xpose.msra.mxu0 0.0
      %2736 = vmatprep.subr.mxu0 0.0
      %2737 = vmatpush2.xpose.msra.mxu0 0.0
      %2738 = vmatprep.subr.mxu0 0.0
      %2739 = vmatpush2.xpose.msra.mxu0 0.0
      %2740 = vmatprep.subr.mxu0 0.0
      %2741 = vmatpush2.xpose.msra.mxu0 0.0
      %2742 = vmatprep.subr.mxu0 0.0
      %2743 = vmatpush2.xpose.msra.mxu0 0.0
      %2744 = vmatprep.subr.mxu0 0.0
      %2745 = vmatpush2.xpose.msra.mxu0 0.0
      %2746 = vmatprep.subr.mxu0 0.0
      %2747 = vmatpush2.xpose.msra.mxu0 0.0
      %2748 = vmatprep.subr.mxu0 0.0
      %2749 = vmatpush2.xpose.msra.mxu0 0.0
      %2750 = vmatprep.subr.mxu0 0.0
      %2751 = vmatpush2.xpose.msra.mxu0 0.0
      %2752 = vmatprep.subr.mxu0 0.0
      %2753 = vmatpush2.xpose.msra.mxu0 0.0
      %2754 = vmatprep.subr.mxu0 0.0
      %2755 = vmatpush2.xpose.msra.mxu0 0.0
      %2756 = vmatprep.subr.mxu0 0.0
      %2757 = vmatpush2.xpose.msra.mxu0 0.0
      %2758 = vmatprep.subr.mxu0 0.0
      %2759 = vmatpush2.xpose.msra.mxu0 0.0
      %2760 = vmatprep.mubr.f32.mxu0 0.0
      %2761 = vmatmul.mubr.f32.gmra.mxu0 %v2694
      %v2762 = vpop.f32.mrf.mxu0
      %v2763 = vadd.f32 %v2690, %v2762
      %v2764 = vpop.f32.mrf.mxu0
      %2765 = vdwg.mxu0
      %v2766 = vlaneseq
      %v2767 = vshrl.u32 %v2766, 7
      %v2768 = vsub.s32 3, %v2767
      %v2769 = vrot.slane %v2425, %v2768
      %v2770 = vadd.f32 %v2763, %v2769
      %s2771 = scalar_lea.vmem %s714, 24
      %2772 = vst.msk [vmem:[%s2771] sm:$0xff] %vm990, %v2770
      %2773 = vset.pattern.permute.xlu0 4
      %2774 = vperm.xlu0 %2773, %v2354
      %v2775 = vpop.permute.xlu0 %2774
      %v2778 = vsel %vm1914, %v2261, 0
      %2780 = vmatprep.subr.mxu0 0.0
      %2781 = vmatpush1.xpose.msra.mxu0 0.0
      %2782 = vmatprep.subr.mxu0 0.0
      %2783 = vmatpush1.xpose.msra.mxu0 0.0
      %2784 = vmatprep.subr.mxu0 0.0
      %2785 = vmatpush1.xpose.msra.mxu0 0.0
      %2786 = vmatprep.subr.mxu0 0.0
      %2787 = vmatpush1.xpose.msra.mxu0 0.0
      %2788 = vmatprep.subr.mxu0 0.0
      %2789 = vmatpush1.xpose.msra.mxu0 0.0
      %2790 = vmatprep.subr.mxu0 0.0
      %2791 = vmatpush1.xpose.msra.mxu0 0.0
      %2792 = vmatprep.subr.mxu0 0.0
      %2793 = vmatpush1.xpose.msra.mxu0 0.0
      %2794 = vmatprep.subr.mxu0 0.0
      %2795 = vmatpush1.xpose.msra.mxu0 0.0
      %2796 = vmatprep.subr.mxu0 0.0
      %2797 = vmatpush1.xpose.msra.mxu0 0.0
      %2798 = vmatprep.subr.mxu0 0.0
      %2799 = vmatpush1.xpose.msra.mxu0 0.0
      %2800 = vmatprep.subr.mxu0 0.0
      %2801 = vmatpush1.xpose.msra.mxu0 0.0
      %2802 = vmatprep.subr.mxu0 0.0
      %2803 = vmatpush1.xpose.msra.mxu0 0.0
      %2804 = vmatprep.subr.mxu0 0.0
      %2805 = vmatpush1.xpose.msra.mxu0 0.0
      %2806 = vmatprep.subr.mxu0 0.0
      %2807 = vmatpush1.xpose.msra.mxu0 0.0
      %2808 = vmatprep.subr.mxu0 0.0
      %2809 = vmatpush1.xpose.msra.mxu0 0.0
      %2810 = vmatprep.subr.mxu0 0.0
      %2811 = vmatpush1.xpose.msra.mxu0 %v2525
      %2812 = vmatprep.subr.mxu0 0.0
      %2813 = vmatpush2.xpose.msra.mxu0 0.0
      %2814 = vmatprep.subr.mxu0 0.0
      %2815 = vmatpush2.xpose.msra.mxu0 0.0
      %2816 = vmatprep.subr.mxu0 0.0
      %2817 = vmatpush2.xpose.msra.mxu0 0.0
      %2818 = vmatprep.subr.mxu0 0.0
      %2819 = vmatpush2.xpose.msra.mxu0 0.0
      %2820 = vmatprep.subr.mxu0 0.0
      %2821 = vmatpush2.xpose.msra.mxu0 0.0
      %2822 = vmatprep.subr.mxu0 0.0
      %2823 = vmatpush2.xpose.msra.mxu0 0.0
      %2824 = vmatprep.subr.mxu0 0.0
      %2825 = vmatpush2.xpose.msra.mxu0 0.0
      %2826 = vmatprep.subr.mxu0 0.0
      %2827 = vmatpush2.xpose.msra.mxu0 0.0
      %2828 = vmatprep.subr.mxu0 0.0
      %2829 = vmatpush2.xpose.msra.mxu0 0.0
      %2830 = vmatprep.subr.mxu0 0.0
      %2831 = vmatpush2.xpose.msra.mxu0 0.0
      %2832 = vmatprep.subr.mxu0 0.0
      %2833 = vmatpush2.xpose.msra.mxu0 0.0
      %2834 = vmatprep.subr.mxu0 0.0
      %2835 = vmatpush2.xpose.msra.mxu0 0.0
      %2836 = vmatprep.subr.mxu0 0.0
      %2837 = vmatpush2.xpose.msra.mxu0 0.0
      %2838 = vmatprep.subr.mxu0 0.0
      %2839 = vmatpush2.xpose.msra.mxu0 0.0
      %2840 = vmatprep.subr.mxu0 0.0
      %2841 = vmatpush2.xpose.msra.mxu0 0.0
      %2842 = vmatprep.subr.mxu0 0.0
      %2843 = vmatpush2.xpose.msra.mxu0 0.0
      %2844 = vmatprep.mubr.f32.mxu0 0.0
      %2845 = vmatmul.mubr.f32.gmra.mxu0 %v2778
      %v2846 = vpop.f32.mrf.mxu0
      %v2847 = vadd.f32 %v2775, %v2846
      %v2848 = vpop.f32.mrf.mxu0
      %2849 = vdwg.mxu0
      %v2850 = vlaneseq
      %v2851 = vshrl.u32 %v2850, 7
      %v2852 = vsub.s32 4, %v2851
      %v2853 = vrot.slane %v2425, %v2852
      %v2854 = vadd.f32 %v2847, %v2853
      %s2855 = scalar_lea.vmem %s714, 32
      %2856 = vst.msk [vmem:[%s2855] sm:$0xff] %vm990, %v2854
      %p2857 = scmp.lt.s32.totalorder %s33, 1
      %s2858 = scalar_select %p2857, %s33, 1
      %s2859 = smul.addr %s2858, 5
      %s2860 = smul.addr %s2859, 8
      %s2861 = scalar_lea.vmem %s22, %s2860
      // Predicated region
      $region109: #{_forward_jit.1} parent=107 // pred_check
        %p2862 = pneg %p528
      $region110: #{_forward_jit.1} parent=107 // pred_check_branch
        %2864 = sbr.rel (%p2862) target = $region112
      $region111: #{_forward_jit.1} parent=107 // pred_region
        _
      $region112: #{_forward_jit.1} parent=107 // pred_fallthru
        _
    $region108: #{_forward_jit.1} parent=5 // pred_fallthru
      _
    %p2865 = scmp.le.s32.totalorder 2, %s28
    // Predicated region
    $region113: #{_forward_jit.1} parent=5 // pred_check
      %p2866 = pneg %p2865
    $region114: #{_forward_jit.1} parent=5 // pred_check_branch
      %2868 = sbr.rel (%p2866) target = $region116
    $region115: #{_forward_jit.1} parent=5 // pred_region
      %s2869 = ssub.s32 %s28, 2
      // Predicated region
      $region117: #{_forward_jit.1} parent=115 // pred_check
        %p2870 = pneg %p534
      $region118: #{_forward_jit.1} parent=115 // pred_check_branch
        %2872 = sbr.rel (%p2870) target = $region120
      $region119: #{_forward_jit.1} parent=115 // pred_region
        %p2873 = scmp.lt.s32.totalorder %s34, 1
        %s2874 = scalar_select %p2873, %s34, 1
        %s2875 = smul.addr %s2874, 5
        %s2876 = smul.addr %s2875, 8
        %s2877 = scalar_lea.vmem %s22, %s2876
      $region120: #{_forward_jit.1} parent=115 // pred_fallthru
        _
    $region116: #{_forward_jit.1} parent=5 // pred_fallthru
      _
  $region6: #{_forward_jit.1} parent=0 // loop_footer
    %s32 = sadd.s32 1, %s28
  $region7: #{_forward_jit.1} parent=0 // loop_footer_branch
    %27 = sbr.rel target = $region3
  $region8: #{_forward_jit.1} parent=0 // loop_exit
    _

</llo_original>
